<compile_context>
chip_gen: v7x
topology: tpu7x:2x2x1
jax: 0.10.0
libtpu: 0.0.40
codegen_flags: <defaults>
</compile_context>

<pallas_src>
import math
import jax
import jax.numpy as jnp
from jax.experimental import pallas as pl
from jax.experimental.pallas import tpu as pltpu

# ----------------------------- config (small synthetic BERT) ----------------
VOCAB = 100
MAX_POS = 64
TYPE_VOCAB = 2
HIDDEN = 32
NUM_HEADS = 2
HEAD_DIM = HIDDEN // NUM_HEADS
INTERMEDIATE = 64
NUM_LAYERS = 2
LN_EPS = 1e-12


# ----------------------------- fused Pallas kernel --------------------------
def _layernorm(x, g, b):
    mean = jnp.mean(x, axis=-1, keepdims=True)
    var = jnp.mean((x - mean) ** 2, axis=-1, keepdims=True)
    inv = jax.lax.rsqrt(var + LN_EPS)
    return (x - mean) * inv * g + b


def _bert_kernel(emb_ref, mask_ref,
                 wqkv_ref, bqkv_ref, wo_ref, bo_ref,
                 ln1_g_ref, ln1_b_ref,
                 w1_ref, b1_ref, w2_ref, b2_ref,
                 ln2_g_ref, ln2_b_ref,
                 emb_ln_g_ref, emb_ln_b_ref,
                 pool_w_ref, pool_b_ref,
                 hidden_ref, pooled_ref):
    # One grid step == one batch element. Everything below stays in VMEM/vregs.
    x = emb_ref[0]                     # (S, H)  summed word+pos+type embeddings
    add_mask = mask_ref[0]             # (1, S)  additive attention mask

    h = _layernorm(x, emb_ln_g_ref[...], emb_ln_b_ref[...])

    scale = 1.0 / math.sqrt(HEAD_DIM)
    for l in range(NUM_LAYERS):        # static unroll over layers (weights resident)
        # --- fused QKV projection: one (S,H) @ (H,3H) matmul -----------------
        qkv = (jnp.dot(h, wqkv_ref[l], preferred_element_type=jnp.float32)
               + bqkv_ref[l])          # (S, 3H)
        wo_l = wo_ref[l]               # (H, H)

        # --- per-head attention with fused output projection ----------------
        attn_acc = None
        for hd in range(NUM_HEADS):    # static unroll over heads (no transposes)
            q = qkv[:, hd * HEAD_DIM:(hd + 1) * HEAD_DIM] * scale
            k = qkv[:, HIDDEN + hd * HEAD_DIM: HIDDEN + (hd + 1) * HEAD_DIM]
            v = qkv[:, 2 * HIDDEN + hd * HEAD_DIM: 2 * HIDDEN + (hd + 1) * HEAD_DIM]
            s = jnp.dot(q, k.T, preferred_element_type=jnp.float32) + add_mask
            s = s - jnp.max(s, axis=-1, keepdims=True)
            p = jnp.exp(s)
            p = p * pl.reciprocal(jnp.sum(p, axis=-1, keepdims=True), approx=True)
            ctx = jnp.dot(p, v, preferred_element_type=jnp.float32)       # (S, Dh)
            contrib = jnp.dot(ctx, wo_l[hd * HEAD_DIM:(hd + 1) * HEAD_DIM, :],
                              preferred_element_type=jnp.float32)         # (S, H)
            attn_acc = contrib if attn_acc is None else attn_acc + contrib
        attn_out = attn_acc + bo_ref[l]

        # --- residual + LN1 (residual folded into the layernorm) ------------
        h = _layernorm(h + attn_out, ln1_g_ref[l], ln1_b_ref[l])

        # --- FFN -------------------------------------------------------------
        ffn_h = (jnp.dot(h, w1_ref[l], preferred_element_type=jnp.float32)
                 + b1_ref[l])
        # TODO(synk): HF/PyTorch BERT uses exact erf-GELU; tanh approximation
        # used here (EUP-friendly), ~1e-3 level difference vs. reference.
        ffn_h = jax.nn.gelu(ffn_h, approximate=True)
        ffn_out = (jnp.dot(ffn_h, w2_ref[l], preferred_element_type=jnp.float32)
                   + b2_ref[l])

        # --- residual + LN2 ---------------------------------------------------
        h = _layernorm(h + ffn_out, ln2_g_ref[l], ln2_b_ref[l])

    # last_hidden_state for this batch element
    hidden_ref[0] = h

    # pooler: tanh(dense(CLS)) fused into the same kernel
    cls = h[0:1, :]                                                      # (1, H)
    pooled_ref[0] = jnp.tanh(
        jnp.dot(cls, pool_w_ref[...], preferred_element_type=jnp.float32)
        + pool_b_ref[...])


def bert_layer_forward(params, bert_tokens, bert_mask, bert_tok_typeid):
    """Mirrors BertLayer.forward: returns (last_hidden_state, pooler_output)."""
    B, S = bert_tokens.shape

    # Embedding gathers stay in JAX (no clean Pallas gather at this size);
    # the sum is fused by XLA and the LayerNorm happens inside the kernel.
    we = params["word_emb"][bert_tokens]                         # (B, S, H)
    pe = params["pos_emb"][jnp.arange(S)][None, :, :]            # (1, S, H)
    te = params["type_emb"][bert_tok_typeid]                     # (B, S, H)
    emb = we + pe + te                                           # (B, S, H)

    # Additive attention mask, kept as (B, 1, S) -- never duplicated per head.
    add_mask = ((1.0 - bert_mask.astype(jnp.float32)) * -10000.0)[:, None, :]

    in_arrays = [
        emb, add_mask,
        params["wqkv"], params["bqkv"], params["wo"], params["bo"],
        params["ln1_g"], params["ln1_b"],
        params["w1"], params["b1"], params["w2"], params["b2"],
        params["ln2_g"], params["ln2_b"],
        params["emb_ln_g"], params["emb_ln_b"],
        params["pool_w"], params["pool_b"],
    ]

    def whole(arr):
        nd = arr.ndim
        return pl.BlockSpec(arr.shape, lambda b, _n=nd: (0,) * _n)

    in_specs = [
        pl.BlockSpec((1, S, HIDDEN), lambda b: (b, 0, 0)),   # embeddings, per batch
        pl.BlockSpec((1, 1, S), lambda b: (b, 0, 0)),        # additive mask, per batch
    ] + [whole(a) for a in in_arrays[2:]]                    # weights: fully resident

    out_shapes = (
        jax.ShapeDtypeStruct((B, S, HIDDEN), jnp.float32),   # last_hidden_state
        jax.ShapeDtypeStruct((B, 1, HIDDEN), jnp.float32),   # pooler_output
    )
    out_specs = (
        pl.BlockSpec((1, S, HIDDEN), lambda b: (b, 0, 0)),
        pl.BlockSpec((1, 1, HIDDEN), lambda b: (b, 0, 0)),
    )

    last_hidden, pooled = pl.pallas_call(
        _bert_kernel,
        out_shape=out_shapes,
        grid=(B,),
        in_specs=in_specs,
        out_specs=out_specs,
        compiler_params=pltpu.CompilerParams(
            dimension_semantics=("parallel",)),   # engages both TCs on v7x
    )(*in_arrays)

    return last_hidden, pooled.reshape(B, HIDDEN)


bert_layer_forward_jit = jax.jit(bert_layer_forward)


# ----------------------------- deterministic init ---------------------------
def init_params(key):
    ks = jax.random.split(key, 8)

    def nrm(k, shape):
        return 0.02 * jax.random.normal(k, shape, dtype=jnp.float32)

    return {
        "word_emb": nrm(ks[0], (VOCAB, HIDDEN)),
        "pos_emb": nrm(ks[1], (MAX_POS, HIDDEN)),
        "type_emb": nrm(ks[2], (TYPE_VOCAB, HIDDEN)),
        "emb_ln_g": jnp.ones((1, HIDDEN), jnp.float32),
        "emb_ln_b": jnp.zeros((1, HIDDEN), jnp.float32),
        # per-layer weights stacked along a leading NUM_LAYERS axis; Q/K/V fused.
        "wqkv": nrm(ks[3], (NUM_LAYERS, HIDDEN, 3 * HIDDEN)),
        "bqkv": jnp.zeros((NUM_LAYERS, 1, 3 * HIDDEN), jnp.float32),
        "wo": nrm(ks[4], (NUM_LAYERS, HIDDEN, HIDDEN)),
        "bo": jnp.zeros((NUM_LAYERS, 1, HIDDEN), jnp.float32),
        "ln1_g": jnp.ones((NUM_LAYERS, 1, HIDDEN), jnp.float32),
        "ln1_b": jnp.zeros((NUM_LAYERS, 1, HIDDEN), jnp.float32),
        "w1": nrm(ks[5], (NUM_LAYERS, HIDDEN, INTERMEDIATE)),
        "b1": jnp.zeros((NUM_LAYERS, 1, INTERMEDIATE), jnp.float32),
        "w2": nrm(ks[6], (NUM_LAYERS, INTERMEDIATE, HIDDEN)),
        "b2": jnp.zeros((NUM_LAYERS, 1, HIDDEN), jnp.float32),
        "ln2_g": jnp.ones((NUM_LAYERS, 1, HIDDEN), jnp.float32),
        "ln2_b": jnp.zeros((NUM_LAYERS, 1, HIDDEN), jnp.float32),
        "pool_w": nrm(ks[7], (HIDDEN, HIDDEN)),
        "pool_b": jnp.zeros((1, HIDDEN), jnp.float32),
    }


# ----------------------------- main ------------------------------------------
if __name__ == "__main__":
    key = jax.random.PRNGKey(0)
    pkey, tkey = jax.random.split(key)
    params = init_params(pkey)

    B, S = 2, 8
    bert_tokens = jax.random.randint(tkey, (B, S), 0, VOCAB, dtype=jnp.int32)
    bert_mask = jnp.ones((B, S), jnp.int32).at[1, 6:].set(0)       # pad tail of ex. 1
    bert_tok_typeid = jnp.zeros((B, S), jnp.int32).at[:, 4:].set(1)

    last_hidden, pooled = bert_layer_forward_jit(
        params, bert_tokens, bert_mask, bert_tok_typeid)
    jax.block_until_ready((last_hidden, pooled))

    assert last_hidden.shape == (B, S, HIDDEN) and last_hidden.dtype == jnp.float32
    assert pooled.shape == (B, HIDDEN) and pooled.dtype == jnp.float32
    assert bool(jnp.all(jnp.isfinite(last_hidden))) and bool(jnp.all(jnp.isfinite(pooled)))
    print("KERNEL_OK")
</pallas_src>

<mosaic_0001>
module attributes {stable_mosaic.version = 11 : i64} {
  func.func @_bert_kernel(%arg0: i32, %arg1: memref<1x8x32xf32, #tpu.memory_space<vmem>>, %arg2: memref<1x1x8xf32, #tpu.memory_space<vmem>>, %arg3: memref<2x32x96xf32, #tpu.memory_space<vmem>>, %arg4: memref<2x1x96xf32, #tpu.memory_space<vmem>>, %arg5: memref<2x32x32xf32, #tpu.memory_space<vmem>>, %arg6: memref<2x1x32xf32, #tpu.memory_space<vmem>>, %arg7: memref<2x1x32xf32, #tpu.memory_space<vmem>>, %arg8: memref<2x1x32xf32, #tpu.memory_space<vmem>>, %arg9: memref<2x32x64xf32, #tpu.memory_space<vmem>>, %arg10: memref<2x1x64xf32, #tpu.memory_space<vmem>>, %arg11: memref<2x64x32xf32, #tpu.memory_space<vmem>>, %arg12: memref<2x1x32xf32, #tpu.memory_space<vmem>>, %arg13: memref<2x1x32xf32, #tpu.memory_space<vmem>>, %arg14: memref<2x1x32xf32, #tpu.memory_space<vmem>>, %arg15: memref<1x32xf32, #tpu.memory_space<vmem>>, %arg16: memref<1x32xf32, #tpu.memory_space<vmem>>, %arg17: memref<32x32xf32, #tpu.memory_space<vmem>>, %arg18: memref<1x32xf32, #tpu.memory_space<vmem>>, %arg19: memref<1x8x32xf32, #tpu.memory_space<vmem>>, %arg20: memref<1x1x32xf32, #tpu.memory_space<vmem>>) attributes {dimension_semantics = [#tpu.dimension_semantics<parallel>], iteration_bounds = array<i64: 2>, scalar_prefetch = 0 : i64, scratch_operands = 0 : i64, tpu.core_type = #tpu.core_type<tc>, window_params = [{transform_indices = @transform_0, window_bounds = array<i64: 1, 8, 32>}, {transform_indices = @transform_1, window_bounds = array<i64: 1, 1, 8>}, {pipeline_mode = #tpu.pipeline_mode<synchronous>, transform_indices = @transform_2, window_bounds = array<i64: 2, 32, 96>}, {pipeline_mode = #tpu.pipeline_mode<synchronous>, transform_indices = @transform_3, window_bounds = array<i64: 2, 1, 96>}, {pipeline_mode = #tpu.pipeline_mode<synchronous>, transform_indices = @transform_4, window_bounds = array<i64: 2, 32, 32>}, {pipeline_mode = #tpu.pipeline_mode<synchronous>, transform_indices = @transform_5, window_bounds = array<i64: 2, 1, 32>}, {pipeline_mode = #tpu.pipeline_mode<synchronous>, transform_indices = @transform_6, window_bounds = array<i64: 2, 1, 32>}, {pipeline_mode = #tpu.pipeline_mode<synchronous>, transform_indices = @transform_7, window_bounds = array<i64: 2, 1, 32>}, {pipeline_mode = #tpu.pipeline_mode<synchronous>, transform_indices = @transform_8, window_bounds = array<i64: 2, 32, 64>}, {pipeline_mode = #tpu.pipeline_mode<synchronous>, transform_indices = @transform_9, window_bounds = array<i64: 2, 1, 64>}, {pipeline_mode = #tpu.pipeline_mode<synchronous>, transform_indices = @transform_10, window_bounds = array<i64: 2, 64, 32>}, {pipeline_mode = #tpu.pipeline_mode<synchronous>, transform_indices = @transform_11, window_bounds = array<i64: 2, 1, 32>}, {pipeline_mode = #tpu.pipeline_mode<synchronous>, transform_indices = @transform_12, window_bounds = array<i64: 2, 1, 32>}, {pipeline_mode = #tpu.pipeline_mode<synchronous>, transform_indices = @transform_13, window_bounds = array<i64: 2, 1, 32>}, {pipeline_mode = #tpu.pipeline_mode<synchronous>, transform_indices = @transform_14, window_bounds = array<i64: 1, 32>}, {pipeline_mode = #tpu.pipeline_mode<synchronous>, transform_indices = @transform_15, window_bounds = array<i64: 1, 32>}, {pipeline_mode = #tpu.pipeline_mode<synchronous>, transform_indices = @transform_16, window_bounds = array<i64: 32, 32>}, {pipeline_mode = #tpu.pipeline_mode<synchronous>, transform_indices = @transform_17, window_bounds = array<i64: 1, 32>}, {transform_indices = @transform_18, window_bounds = array<i64: 1, 8, 32>}, {transform_indices = @transform_19, window_bounds = array<i64: 1, 1, 32>}]} {
    %c0 = arith.constant 0 : index
    %c0_0 = arith.constant 0 : index
    %c0_1 = arith.constant 0 : index
    %0 = vector.load %arg1[%c0, %c0_0, %c0_1] : memref<1x8x32xf32, #tpu.memory_space<vmem>>, vector<1x8x32xf32>
    %1 = vector.shape_cast %0 : vector<1x8x32xf32> to vector<8x32xf32>
    %c0_2 = arith.constant 0 : index
    %c0_3 = arith.constant 0 : index
    %c0_4 = arith.constant 0 : index
    %2 = vector.load %arg2[%c0_2, %c0_3, %c0_4] : memref<1x1x8xf32, #tpu.memory_space<vmem>>, vector<1x1x8xf32>
    %3 = vector.shape_cast %2 : vector<1x1x8xf32> to vector<1x8xf32>
    %c0_5 = arith.constant 0 : index
    %c0_6 = arith.constant 0 : index
    %4 = vector.load %arg15[%c0_5, %c0_6] : memref<1x32xf32, #tpu.memory_space<vmem>>, vector<1x32xf32>
    %c0_7 = arith.constant 0 : index
    %c0_8 = arith.constant 0 : index
    %5 = vector.load %arg16[%c0_7, %c0_8] : memref<1x32xf32, #tpu.memory_space<vmem>>, vector<1x32xf32>
    %cst = arith.constant dense<0.000000e+00> : vector<8xf32>
    %6 = vector.multi_reduction <add>, %1, %cst [1] : vector<8x32xf32> to vector<8xf32>
    %7 = vector.shape_cast %6 : vector<8xf32> to vector<8x1xf32>
    %cst_9 = arith.constant 3.200000e+01 : f32
    %8 = vector.broadcast %cst_9 : f32 to vector<8x1xf32>
    %9 = arith.divf %7, %8 : vector<8x1xf32>
    %10 = vector.broadcast %9 : vector<8x1xf32> to vector<8x32xf32>
    %11 = arith.subf %1, %10 : vector<8x32xf32>
    %12 = arith.mulf %11, %11 : vector<8x32xf32>
    %cst_10 = arith.constant dense<0.000000e+00> : vector<8xf32>
    %13 = vector.multi_reduction <add>, %12, %cst_10 [1] : vector<8x32xf32> to vector<8xf32>
    %14 = vector.shape_cast %13 : vector<8xf32> to vector<8x1xf32>
    %cst_11 = arith.constant 3.200000e+01 : f32
    %15 = vector.broadcast %cst_11 : f32 to vector<8x1xf32>
    %16 = arith.divf %14, %15 : vector<8x1xf32>
    %cst_12 = arith.constant 9.99999996E-13 : f32
    %17 = vector.broadcast %cst_12 : f32 to vector<8x1xf32>
    %18 = arith.addf %16, %17 : vector<8x1xf32>
    %19 = math.rsqrt %18 : vector<8x1xf32>
    %20 = vector.broadcast %9 : vector<8x1xf32> to vector<8x32xf32>
    %21 = arith.subf %1, %20 : vector<8x32xf32>
    %22 = vector.broadcast %19 : vector<8x1xf32> to vector<8x32xf32>
    %23 = arith.mulf %21, %22 : vector<8x32xf32>
    %24 = vector.broadcast %4 : vector<1x32xf32> to vector<8x32xf32>
    %25 = arith.mulf %23, %24 : vector<8x32xf32>
    %26 = vector.broadcast %5 : vector<1x32xf32> to vector<8x32xf32>
    %27 = arith.addf %25, %26 : vector<8x32xf32>
    %c0_13 = arith.constant 0 : index
    %c0_14 = arith.constant 0 : index
    %c0_15 = arith.constant 0 : index
    %28 = vector.load %arg3[%c0_13, %c0_14, %c0_15] : memref<2x32x96xf32, #tpu.memory_space<vmem>>, vector<1x32x96xf32>
    %29 = vector.shape_cast %28 : vector<1x32x96xf32> to vector<32x96xf32>
    %cst_16 = arith.constant dense<0.000000e+00> : vector<8x96xf32>
    %30 = tpu.matmul %27, %29, %cst_16 {dimension_numbers = #tpu.dot_dimension_numbers<[1], [0], [0], [1], [0, 0, 1, 1], [], []>} : vector<8x32xf32>, vector<32x96xf32>, vector<8x96xf32> -> vector<8x96xf32>
    %c0_17 = arith.constant 0 : index
    %c0_18 = arith.constant 0 : index
    %c0_19 = arith.constant 0 : index
    %31 = vector.load %arg4[%c0_17, %c0_18, %c0_19] : memref<2x1x96xf32, #tpu.memory_space<vmem>>, vector<1x1x96xf32>
    %32 = vector.shape_cast %31 : vector<1x1x96xf32> to vector<1x96xf32>
    %33 = vector.broadcast %32 : vector<1x96xf32> to vector<8x96xf32>
    %34 = arith.addf %30, %33 : vector<8x96xf32>
    %c0_20 = arith.constant 0 : index
    %c0_21 = arith.constant 0 : index
    %c0_22 = arith.constant 0 : index
    %35 = vector.load %arg5[%c0_20, %c0_21, %c0_22] : memref<2x32x32xf32, #tpu.memory_space<vmem>>, vector<1x32x32xf32>
    %36 = vector.shape_cast %35 : vector<1x32x32xf32> to vector<32x32xf32>
    %37 = vector.extract_strided_slice %34 {offsets = [0, 0], sizes = [8, 16], strides = [1, 1]} : vector<8x96xf32> to vector<8x16xf32>
    %cst_23 = arith.constant 2.500000e-01 : f32
    %38 = vector.broadcast %cst_23 : f32 to vector<8x16xf32>
    %39 = arith.mulf %37, %38 : vector<8x16xf32>
    %40 = vector.extract_strided_slice %34 {offsets = [0, 32], sizes = [8, 16], strides = [1, 1]} : vector<8x96xf32> to vector<8x16xf32>
    %41 = vector.extract_strided_slice %34 {offsets = [0, 64], sizes = [8, 16], strides = [1, 1]} : vector<8x96xf32> to vector<8x16xf32>
    %42 = tpu.transpose %40, [1, 0] : vector<8x16xf32> -> vector<16x8xf32>
    %cst_24 = arith.constant dense<0.000000e+00> : vector<8x8xf32>
    %43 = tpu.matmul %39, %42, %cst_24 {dimension_numbers = #tpu.dot_dimension_numbers<[1], [0], [0], [1], [0, 0, 1, 1], [], []>} : vector<8x16xf32>, vector<16x8xf32>, vector<8x8xf32> -> vector<8x8xf32>
    %44 = vector.broadcast %3 : vector<1x8xf32> to vector<8x8xf32>
    %45 = arith.addf %43, %44 : vector<8x8xf32>
    %cst_25 = arith.constant dense<0xFF800000> : vector<8xf32>
    %46 = vector.multi_reduction <maximumf>, %45, %cst_25 [1] : vector<8x8xf32> to vector<8xf32>
    %47 = vector.shape_cast %46 : vector<8xf32> to vector<8x1xf32>
    %48 = vector.broadcast %47 : vector<8x1xf32> to vector<8x8xf32>
    %49 = arith.subf %45, %48 : vector<8x8xf32>
    %50 = math.exp %49 : vector<8x8xf32>
    %cst_26 = arith.constant dense<0.000000e+00> : vector<8xf32>
    %51 = vector.multi_reduction <add>, %50, %cst_26 [1] : vector<8x8xf32> to vector<8xf32>
    %52 = vector.shape_cast %51 : vector<8xf32> to vector<8x1xf32>
    %53 = tpu.reciprocal %52 {approx = true} : vector<8x1xf32> -> vector<8x1xf32>
    %54 = vector.broadcast %53 : vector<8x1xf32> to vector<8x8xf32>
    %55 = arith.mulf %50, %54 : vector<8x8xf32>
    %cst_27 = arith.constant dense<0.000000e+00> : vector<8x16xf32>
    %56 = tpu.matmul %55, %41, %cst_27 {dimension_numbers = #tpu.dot_dimension_numbers<[1], [0], [0], [1], [0, 0, 1, 1], [], []>} : vector<8x8xf32>, vector<8x16xf32>, vector<8x16xf32> -> vector<8x16xf32>
    %57 = vector.extract_strided_slice %36 {offsets = [0, 0], sizes = [16, 32], strides = [1, 1]} : vector<32x32xf32> to vector<16x32xf32>
    %cst_28 = arith.constant dense<0.000000e+00> : vector<8x32xf32>
    %58 = tpu.matmul %56, %57, %cst_28 {dimension_numbers = #tpu.dot_dimension_numbers<[1], [0], [0], [1], [0, 0, 1, 1], [], []>} : vector<8x16xf32>, vector<16x32xf32>, vector<8x32xf32> -> vector<8x32xf32>
    %59 = vector.extract_strided_slice %34 {offsets = [0, 16], sizes = [8, 16], strides = [1, 1]} : vector<8x96xf32> to vector<8x16xf32>
    %cst_29 = arith.constant 2.500000e-01 : f32
    %60 = vector.broadcast %cst_29 : f32 to vector<8x16xf32>
    %61 = arith.mulf %59, %60 : vector<8x16xf32>
    %62 = vector.extract_strided_slice %34 {offsets = [0, 48], sizes = [8, 16], strides = [1, 1]} : vector<8x96xf32> to vector<8x16xf32>
    %63 = vector.extract_strided_slice %34 {offsets = [0, 80], sizes = [8, 16], strides = [1, 1]} : vector<8x96xf32> to vector<8x16xf32>
    %64 = tpu.transpose %62, [1, 0] : vector<8x16xf32> -> vector<16x8xf32>
    %cst_30 = arith.constant dense<0.000000e+00> : vector<8x8xf32>
    %65 = tpu.matmul %61, %64, %cst_30 {dimension_numbers = #tpu.dot_dimension_numbers<[1], [0], [0], [1], [0, 0, 1, 1], [], []>} : vector<8x16xf32>, vector<16x8xf32>, vector<8x8xf32> -> vector<8x8xf32>
    %66 = vector.broadcast %3 : vector<1x8xf32> to vector<8x8xf32>
    %67 = arith.addf %65, %66 : vector<8x8xf32>
    %cst_31 = arith.constant dense<0xFF800000> : vector<8xf32>
    %68 = vector.multi_reduction <maximumf>, %67, %cst_31 [1] : vector<8x8xf32> to vector<8xf32>
    %69 = vector.shape_cast %68 : vector<8xf32> to vector<8x1xf32>
    %70 = vector.broadcast %69 : vector<8x1xf32> to vector<8x8xf32>
    %71 = arith.subf %67, %70 : vector<8x8xf32>
    %72 = math.exp %71 : vector<8x8xf32>
    %cst_32 = arith.constant dense<0.000000e+00> : vector<8xf32>
    %73 = vector.multi_reduction <add>, %72, %cst_32 [1] : vector<8x8xf32> to vector<8xf32>
    %74 = vector.shape_cast %73 : vector<8xf32> to vector<8x1xf32>
    %75 = tpu.reciprocal %74 {approx = true} : vector<8x1xf32> -> vector<8x1xf32>
    %76 = vector.broadcast %75 : vector<8x1xf32> to vector<8x8xf32>
    %77 = arith.mulf %72, %76 : vector<8x8xf32>
    %cst_33 = arith.constant dense<0.000000e+00> : vector<8x16xf32>
    %78 = tpu.matmul %77, %63, %cst_33 {dimension_numbers = #tpu.dot_dimension_numbers<[1], [0], [0], [1], [0, 0, 1, 1], [], []>} : vector<8x8xf32>, vector<8x16xf32>, vector<8x16xf32> -> vector<8x16xf32>
    %79 = vector.extract_strided_slice %36 {offsets = [16, 0], sizes = [16, 32], strides = [1, 1]} : vector<32x32xf32> to vector<16x32xf32>
    %cst_34 = arith.constant dense<0.000000e+00> : vector<8x32xf32>
    %80 = tpu.matmul %78, %79, %cst_34 {dimension_numbers = #tpu.dot_dimension_numbers<[1], [0], [0], [1], [0, 0, 1, 1], [], []>} : vector<8x16xf32>, vector<16x32xf32>, vector<8x32xf32> -> vector<8x32xf32>
    %81 = arith.addf %58, %80 : vector<8x32xf32>
    %c0_35 = arith.constant 0 : index
    %c0_36 = arith.constant 0 : index
    %c0_37 = arith.constant 0 : index
    %82 = vector.load %arg6[%c0_35, %c0_36, %c0_37] : memref<2x1x32xf32, #tpu.memory_space<vmem>>, vector<1x1x32xf32>
    %83 = vector.shape_cast %82 : vector<1x1x32xf32> to vector<1x32xf32>
    %84 = vector.broadcast %83 : vector<1x32xf32> to vector<8x32xf32>
    %85 = arith.addf %81, %84 : vector<8x32xf32>
    %86 = arith.addf %27, %85 : vector<8x32xf32>
    %c0_38 = arith.constant 0 : index
    %c0_39 = arith.constant 0 : index
    %c0_40 = arith.constant 0 : index
    %87 = vector.load %arg7[%c0_38, %c0_39, %c0_40] : memref<2x1x32xf32, #tpu.memory_space<vmem>>, vector<1x1x32xf32>
    %88 = vector.shape_cast %87 : vector<1x1x32xf32> to vector<1x32xf32>
    %c0_41 = arith.constant 0 : index
    %c0_42 = arith.constant 0 : index
    %c0_43 = arith.constant 0 : index
    %89 = vector.load %arg8[%c0_41, %c0_42, %c0_43] : memref<2x1x32xf32, #tpu.memory_space<vmem>>, vector<1x1x32xf32>
    %90 = vector.shape_cast %89 : vector<1x1x32xf32> to vector<1x32xf32>
    %cst_44 = arith.constant dense<0.000000e+00> : vector<8xf32>
    %91 = vector.multi_reduction <add>, %86, %cst_44 [1] : vector<8x32xf32> to vector<8xf32>
    %92 = vector.shape_cast %91 : vector<8xf32> to vector<8x1xf32>
    %cst_45 = arith.constant 3.200000e+01 : f32
    %93 = vector.broadcast %cst_45 : f32 to vector<8x1xf32>
    %94 = arith.divf %92, %93 : vector<8x1xf32>
    %95 = vector.broadcast %94 : vector<8x1xf32> to vector<8x32xf32>
    %96 = arith.subf %86, %95 : vector<8x32xf32>
    %97 = arith.mulf %96, %96 : vector<8x32xf32>
    %cst_46 = arith.constant dense<0.000000e+00> : vector<8xf32>
    %98 = vector.multi_reduction <add>, %97, %cst_46 [1] : vector<8x32xf32> to vector<8xf32>
    %99 = vector.shape_cast %98 : vector<8xf32> to vector<8x1xf32>
    %cst_47 = arith.constant 3.200000e+01 : f32
    %100 = vector.broadcast %cst_47 : f32 to vector<8x1xf32>
    %101 = arith.divf %99, %100 : vector<8x1xf32>
    %cst_48 = arith.constant 9.99999996E-13 : f32
    %102 = vector.broadcast %cst_48 : f32 to vector<8x1xf32>
    %103 = arith.addf %101, %102 : vector<8x1xf32>
    %104 = math.rsqrt %103 : vector<8x1xf32>
    %105 = vector.broadcast %94 : vector<8x1xf32> to vector<8x32xf32>
    %106 = arith.subf %86, %105 : vector<8x32xf32>
    %107 = vector.broadcast %104 : vector<8x1xf32> to vector<8x32xf32>
    %108 = arith.mulf %106, %107 : vector<8x32xf32>
    %109 = vector.broadcast %88 : vector<1x32xf32> to vector<8x32xf32>
    %110 = arith.mulf %108, %109 : vector<8x32xf32>
    %111 = vector.broadcast %90 : vector<1x32xf32> to vector<8x32xf32>
    %112 = arith.addf %110, %111 : vector<8x32xf32>
    %c0_49 = arith.constant 0 : index
    %c0_50 = arith.constant 0 : index
    %c0_51 = arith.constant 0 : index
    %113 = vector.load %arg9[%c0_49, %c0_50, %c0_51] : memref<2x32x64xf32, #tpu.memory_space<vmem>>, vector<1x32x64xf32>
    %114 = vector.shape_cast %113 : vector<1x32x64xf32> to vector<32x64xf32>
    %cst_52 = arith.constant dense<0.000000e+00> : vector<8x64xf32>
    %115 = tpu.matmul %112, %114, %cst_52 {dimension_numbers = #tpu.dot_dimension_numbers<[1], [0], [0], [1], [0, 0, 1, 1], [], []>} : vector<8x32xf32>, vector<32x64xf32>, vector<8x64xf32> -> vector<8x64xf32>
    %c0_53 = arith.constant 0 : index
    %c0_54 = arith.constant 0 : index
    %c0_55 = arith.constant 0 : index
    %116 = vector.load %arg10[%c0_53, %c0_54, %c0_55] : memref<2x1x64xf32, #tpu.memory_space<vmem>>, vector<1x1x64xf32>
    %117 = vector.shape_cast %116 : vector<1x1x64xf32> to vector<1x64xf32>
    %118 = vector.broadcast %117 : vector<1x64xf32> to vector<8x64xf32>
    %119 = arith.addf %115, %118 : vector<8x64xf32>
    %120 = arith.mulf %119, %119 : vector<8x64xf32>
    %121 = arith.mulf %119, %120 : vector<8x64xf32>
    %cst_56 = arith.constant 4.471500e-02 : f32
    %122 = vector.broadcast %cst_56 : f32 to vector<8x64xf32>
    %123 = arith.mulf %122, %121 : vector<8x64xf32>
    %124 = arith.addf %119, %123 : vector<8x64xf32>
    %cst_57 = arith.constant 0.797884583 : f32
    %125 = vector.broadcast %cst_57 : f32 to vector<8x64xf32>
    %126 = arith.mulf %125, %124 : vector<8x64xf32>
    %127 = math.tanh %126 : vector<8x64xf32>
    %cst_58 = arith.constant 1.000000e+00 : f32
    %128 = vector.broadcast %cst_58 : f32 to vector<8x64xf32>
    %129 = arith.addf %128, %127 : vector<8x64xf32>
    %cst_59 = arith.constant 5.000000e-01 : f32
    %130 = vector.broadcast %cst_59 : f32 to vector<8x64xf32>
    %131 = arith.mulf %130, %129 : vector<8x64xf32>
    %132 = arith.mulf %119, %131 : vector<8x64xf32>
    %c0_60 = arith.constant 0 : index
    %c0_61 = arith.constant 0 : index
    %c0_62 = arith.constant 0 : index
    %133 = vector.load %arg11[%c0_60, %c0_61, %c0_62] : memref<2x64x32xf32, #tpu.memory_space<vmem>>, vector<1x64x32xf32>
    %134 = vector.shape_cast %133 : vector<1x64x32xf32> to vector<64x32xf32>
    %cst_63 = arith.constant dense<0.000000e+00> : vector<8x32xf32>
    %135 = tpu.matmul %132, %134, %cst_63 {dimension_numbers = #tpu.dot_dimension_numbers<[1], [0], [0], [1], [0, 0, 1, 1], [], []>} : vector<8x64xf32>, vector<64x32xf32>, vector<8x32xf32> -> vector<8x32xf32>
    %c0_64 = arith.constant 0 : index
    %c0_65 = arith.constant 0 : index
    %c0_66 = arith.constant 0 : index
    %136 = vector.load %arg12[%c0_64, %c0_65, %c0_66] : memref<2x1x32xf32, #tpu.memory_space<vmem>>, vector<1x1x32xf32>
    %137 = vector.shape_cast %136 : vector<1x1x32xf32> to vector<1x32xf32>
    %138 = vector.broadcast %137 : vector<1x32xf32> to vector<8x32xf32>
    %139 = arith.addf %135, %138 : vector<8x32xf32>
    %140 = arith.addf %112, %139 : vector<8x32xf32>
    %c0_67 = arith.constant 0 : index
    %c0_68 = arith.constant 0 : index
    %c0_69 = arith.constant 0 : index
    %141 = vector.load %arg13[%c0_67, %c0_68, %c0_69] : memref<2x1x32xf32, #tpu.memory_space<vmem>>, vector<1x1x32xf32>
    %142 = vector.shape_cast %141 : vector<1x1x32xf32> to vector<1x32xf32>
    %c0_70 = arith.constant 0 : index
    %c0_71 = arith.constant 0 : index
    %c0_72 = arith.constant 0 : index
    %143 = vector.load %arg14[%c0_70, %c0_71, %c0_72] : memref<2x1x32xf32, #tpu.memory_space<vmem>>, vector<1x1x32xf32>
    %144 = vector.shape_cast %143 : vector<1x1x32xf32> to vector<1x32xf32>
    %cst_73 = arith.constant dense<0.000000e+00> : vector<8xf32>
    %145 = vector.multi_reduction <add>, %140, %cst_73 [1] : vector<8x32xf32> to vector<8xf32>
    %146 = vector.shape_cast %145 : vector<8xf32> to vector<8x1xf32>
    %cst_74 = arith.constant 3.200000e+01 : f32
    %147 = vector.broadcast %cst_74 : f32 to vector<8x1xf32>
    %148 = arith.divf %146, %147 : vector<8x1xf32>
    %149 = vector.broadcast %148 : vector<8x1xf32> to vector<8x32xf32>
    %150 = arith.subf %140, %149 : vector<8x32xf32>
    %151 = arith.mulf %150, %150 : vector<8x32xf32>
    %cst_75 = arith.constant dense<0.000000e+00> : vector<8xf32>
    %152 = vector.multi_reduction <add>, %151, %cst_75 [1] : vector<8x32xf32> to vector<8xf32>
    %153 = vector.shape_cast %152 : vector<8xf32> to vector<8x1xf32>
    %cst_76 = arith.constant 3.200000e+01 : f32
    %154 = vector.broadcast %cst_76 : f32 to vector<8x1xf32>
    %155 = arith.divf %153, %154 : vector<8x1xf32>
    %cst_77 = arith.constant 9.99999996E-13 : f32
    %156 = vector.broadcast %cst_77 : f32 to vector<8x1xf32>
    %157 = arith.addf %155, %156 : vector<8x1xf32>
    %158 = math.rsqrt %157 : vector<8x1xf32>
    %159 = vector.broadcast %148 : vector<8x1xf32> to vector<8x32xf32>
    %160 = arith.subf %140, %159 : vector<8x32xf32>
    %161 = vector.broadcast %158 : vector<8x1xf32> to vector<8x32xf32>
    %162 = arith.mulf %160, %161 : vector<8x32xf32>
    %163 = vector.broadcast %142 : vector<1x32xf32> to vector<8x32xf32>
    %164 = arith.mulf %162, %163 : vector<8x32xf32>
    %165 = vector.broadcast %144 : vector<1x32xf32> to vector<8x32xf32>
    %166 = arith.addf %164, %165 : vector<8x32xf32>
    %c1 = arith.constant 1 : index
    %c0_78 = arith.constant 0 : index
    %c0_79 = arith.constant 0 : index
    %167 = vector.load %arg3[%c1, %c0_78, %c0_79] : memref<2x32x96xf32, #tpu.memory_space<vmem>>, vector<1x32x96xf32>
    %168 = vector.shape_cast %167 : vector<1x32x96xf32> to vector<32x96xf32>
    %cst_80 = arith.constant dense<0.000000e+00> : vector<8x96xf32>
    %169 = tpu.matmul %166, %168, %cst_80 {dimension_numbers = #tpu.dot_dimension_numbers<[1], [0], [0], [1], [0, 0, 1, 1], [], []>} : vector<8x32xf32>, vector<32x96xf32>, vector<8x96xf32> -> vector<8x96xf32>
    %c1_81 = arith.constant 1 : index
    %c0_82 = arith.constant 0 : index
    %c0_83 = arith.constant 0 : index
    %170 = vector.load %arg4[%c1_81, %c0_82, %c0_83] : memref<2x1x96xf32, #tpu.memory_space<vmem>>, vector<1x1x96xf32>
    %171 = vector.shape_cast %170 : vector<1x1x96xf32> to vector<1x96xf32>
    %172 = vector.broadcast %171 : vector<1x96xf32> to vector<8x96xf32>
    %173 = arith.addf %169, %172 : vector<8x96xf32>
    %c1_84 = arith.constant 1 : index
    %c0_85 = arith.constant 0 : index
    %c0_86 = arith.constant 0 : index
    %174 = vector.load %arg5[%c1_84, %c0_85, %c0_86] : memref<2x32x32xf32, #tpu.memory_space<vmem>>, vector<1x32x32xf32>
    %175 = vector.shape_cast %174 : vector<1x32x32xf32> to vector<32x32xf32>
    %176 = vector.extract_strided_slice %173 {offsets = [0, 0], sizes = [8, 16], strides = [1, 1]} : vector<8x96xf32> to vector<8x16xf32>
    %cst_87 = arith.constant 2.500000e-01 : f32
    %177 = vector.broadcast %cst_87 : f32 to vector<8x16xf32>
    %178 = arith.mulf %176, %177 : vector<8x16xf32>
    %179 = vector.extract_strided_slice %173 {offsets = [0, 32], sizes = [8, 16], strides = [1, 1]} : vector<8x96xf32> to vector<8x16xf32>
    %180 = vector.extract_strided_slice %173 {offsets = [0, 64], sizes = [8, 16], strides = [1, 1]} : vector<8x96xf32> to vector<8x16xf32>
    %181 = tpu.transpose %179, [1, 0] : vector<8x16xf32> -> vector<16x8xf32>
    %cst_88 = arith.constant dense<0.000000e+00> : vector<8x8xf32>
    %182 = tpu.matmul %178, %181, %cst_88 {dimension_numbers = #tpu.dot_dimension_numbers<[1], [0], [0], [1], [0, 0, 1, 1], [], []>} : vector<8x16xf32>, vector<16x8xf32>, vector<8x8xf32> -> vector<8x8xf32>
    %183 = vector.broadcast %3 : vector<1x8xf32> to vector<8x8xf32>
    %184 = arith.addf %182, %183 : vector<8x8xf32>
    %cst_89 = arith.constant dense<0xFF800000> : vector<8xf32>
    %185 = vector.multi_reduction <maximumf>, %184, %cst_89 [1] : vector<8x8xf32> to vector<8xf32>
    %186 = vector.shape_cast %185 : vector<8xf32> to vector<8x1xf32>
    %187 = vector.broadcast %186 : vector<8x1xf32> to vector<8x8xf32>
    %188 = arith.subf %184, %187 : vector<8x8xf32>
    %189 = math.exp %188 : vector<8x8xf32>
    %cst_90 = arith.constant dense<0.000000e+00> : vector<8xf32>
    %190 = vector.multi_reduction <add>, %189, %cst_90 [1] : vector<8x8xf32> to vector<8xf32>
    %191 = vector.shape_cast %190 : vector<8xf32> to vector<8x1xf32>
    %192 = tpu.reciprocal %191 {approx = true} : vector<8x1xf32> -> vector<8x1xf32>
    %193 = vector.broadcast %192 : vector<8x1xf32> to vector<8x8xf32>
    %194 = arith.mulf %189, %193 : vector<8x8xf32>
    %cst_91 = arith.constant dense<0.000000e+00> : vector<8x16xf32>
    %195 = tpu.matmul %194, %180, %cst_91 {dimension_numbers = #tpu.dot_dimension_numbers<[1], [0], [0], [1], [0, 0, 1, 1], [], []>} : vector<8x8xf32>, vector<8x16xf32>, vector<8x16xf32> -> vector<8x16xf32>
    %196 = vector.extract_strided_slice %175 {offsets = [0, 0], sizes = [16, 32], strides = [1, 1]} : vector<32x32xf32> to vector<16x32xf32>
    %cst_92 = arith.constant dense<0.000000e+00> : vector<8x32xf32>
    %197 = tpu.matmul %195, %196, %cst_92 {dimension_numbers = #tpu.dot_dimension_numbers<[1], [0], [0], [1], [0, 0, 1, 1], [], []>} : vector<8x16xf32>, vector<16x32xf32>, vector<8x32xf32> -> vector<8x32xf32>
    %198 = vector.extract_strided_slice %173 {offsets = [0, 16], sizes = [8, 16], strides = [1, 1]} : vector<8x96xf32> to vector<8x16xf32>
    %cst_93 = arith.constant 2.500000e-01 : f32
    %199 = vector.broadcast %cst_93 : f32 to vector<8x16xf32>
    %200 = arith.mulf %198, %199 : vector<8x16xf32>
    %201 = vector.extract_strided_slice %173 {offsets = [0, 48], sizes = [8, 16], strides = [1, 1]} : vector<8x96xf32> to vector<8x16xf32>
    %202 = vector.extract_strided_slice %173 {offsets = [0, 80], sizes = [8, 16], strides = [1, 1]} : vector<8x96xf32> to vector<8x16xf32>
    %203 = tpu.transpose %201, [1, 0] : vector<8x16xf32> -> vector<16x8xf32>
    %cst_94 = arith.constant dense<0.000000e+00> : vector<8x8xf32>
    %204 = tpu.matmul %200, %203, %cst_94 {dimension_numbers = #tpu.dot_dimension_numbers<[1], [0], [0], [1], [0, 0, 1, 1], [], []>} : vector<8x16xf32>, vector<16x8xf32>, vector<8x8xf32> -> vector<8x8xf32>
    %205 = vector.broadcast %3 : vector<1x8xf32> to vector<8x8xf32>
    %206 = arith.addf %204, %205 : vector<8x8xf32>
    %cst_95 = arith.constant dense<0xFF800000> : vector<8xf32>
    %207 = vector.multi_reduction <maximumf>, %206, %cst_95 [1] : vector<8x8xf32> to vector<8xf32>
    %208 = vector.shape_cast %207 : vector<8xf32> to vector<8x1xf32>
    %209 = vector.broadcast %208 : vector<8x1xf32> to vector<8x8xf32>
    %210 = arith.subf %206, %209 : vector<8x8xf32>
    %211 = math.exp %210 : vector<8x8xf32>
    %cst_96 = arith.constant dense<0.000000e+00> : vector<8xf32>
    %212 = vector.multi_reduction <add>, %211, %cst_96 [1] : vector<8x8xf32> to vector<8xf32>
    %213 = vector.shape_cast %212 : vector<8xf32> to vector<8x1xf32>
    %214 = tpu.reciprocal %213 {approx = true} : vector<8x1xf32> -> vector<8x1xf32>
    %215 = vector.broadcast %214 : vector<8x1xf32> to vector<8x8xf32>
    %216 = arith.mulf %211, %215 : vector<8x8xf32>
    %cst_97 = arith.constant dense<0.000000e+00> : vector<8x16xf32>
    %217 = tpu.matmul %216, %202, %cst_97 {dimension_numbers = #tpu.dot_dimension_numbers<[1], [0], [0], [1], [0, 0, 1, 1], [], []>} : vector<8x8xf32>, vector<8x16xf32>, vector<8x16xf32> -> vector<8x16xf32>
    %218 = vector.extract_strided_slice %175 {offsets = [16, 0], sizes = [16, 32], strides = [1, 1]} : vector<32x32xf32> to vector<16x32xf32>
    %cst_98 = arith.constant dense<0.000000e+00> : vector<8x32xf32>
    %219 = tpu.matmul %217, %218, %cst_98 {dimension_numbers = #tpu.dot_dimension_numbers<[1], [0], [0], [1], [0, 0, 1, 1], [], []>} : vector<8x16xf32>, vector<16x32xf32>, vector<8x32xf32> -> vector<8x32xf32>
    %220 = arith.addf %197, %219 : vector<8x32xf32>
    %c1_99 = arith.constant 1 : index
    %c0_100 = arith.constant 0 : index
    %c0_101 = arith.constant 0 : index
    %221 = vector.load %arg6[%c1_99, %c0_100, %c0_101] : memref<2x1x32xf32, #tpu.memory_space<vmem>>, vector<1x1x32xf32>
    %222 = vector.shape_cast %221 : vector<1x1x32xf32> to vector<1x32xf32>
    %223 = vector.broadcast %222 : vector<1x32xf32> to vector<8x32xf32>
    %224 = arith.addf %220, %223 : vector<8x32xf32>
    %225 = arith.addf %166, %224 : vector<8x32xf32>
    %c1_102 = arith.constant 1 : index
    %c0_103 = arith.constant 0 : index
    %c0_104 = arith.constant 0 : index
    %226 = vector.load %arg7[%c1_102, %c0_103, %c0_104] : memref<2x1x32xf32, #tpu.memory_space<vmem>>, vector<1x1x32xf32>
    %227 = vector.shape_cast %226 : vector<1x1x32xf32> to vector<1x32xf32>
    %c1_105 = arith.constant 1 : index
    %c0_106 = arith.constant 0 : index
    %c0_107 = arith.constant 0 : index
    %228 = vector.load %arg8[%c1_105, %c0_106, %c0_107] : memref<2x1x32xf32, #tpu.memory_space<vmem>>, vector<1x1x32xf32>
    %229 = vector.shape_cast %228 : vector<1x1x32xf32> to vector<1x32xf32>
    %cst_108 = arith.constant dense<0.000000e+00> : vector<8xf32>
    %230 = vector.multi_reduction <add>, %225, %cst_108 [1] : vector<8x32xf32> to vector<8xf32>
    %231 = vector.shape_cast %230 : vector<8xf32> to vector<8x1xf32>
    %cst_109 = arith.constant 3.200000e+01 : f32
    %232 = vector.broadcast %cst_109 : f32 to vector<8x1xf32>
    %233 = arith.divf %231, %232 : vector<8x1xf32>
    %234 = vector.broadcast %233 : vector<8x1xf32> to vector<8x32xf32>
    %235 = arith.subf %225, %234 : vector<8x32xf32>
    %236 = arith.mulf %235, %235 : vector<8x32xf32>
    %cst_110 = arith.constant dense<0.000000e+00> : vector<8xf32>
    %237 = vector.multi_reduction <add>, %236, %cst_110 [1] : vector<8x32xf32> to vector<8xf32>
    %238 = vector.shape_cast %237 : vector<8xf32> to vector<8x1xf32>
    %cst_111 = arith.constant 3.200000e+01 : f32
    %239 = vector.broadcast %cst_111 : f32 to vector<8x1xf32>
    %240 = arith.divf %238, %239 : vector<8x1xf32>
    %cst_112 = arith.constant 9.99999996E-13 : f32
    %241 = vector.broadcast %cst_112 : f32 to vector<8x1xf32>
    %242 = arith.addf %240, %241 : vector<8x1xf32>
    %243 = math.rsqrt %242 : vector<8x1xf32>
    %244 = vector.broadcast %233 : vector<8x1xf32> to vector<8x32xf32>
    %245 = arith.subf %225, %244 : vector<8x32xf32>
    %246 = vector.broadcast %243 : vector<8x1xf32> to vector<8x32xf32>
    %247 = arith.mulf %245, %246 : vector<8x32xf32>
    %248 = vector.broadcast %227 : vector<1x32xf32> to vector<8x32xf32>
    %249 = arith.mulf %247, %248 : vector<8x32xf32>
    %250 = vector.broadcast %229 : vector<1x32xf32> to vector<8x32xf32>
    %251 = arith.addf %249, %250 : vector<8x32xf32>
    %c1_113 = arith.constant 1 : index
    %c0_114 = arith.constant 0 : index
    %c0_115 = arith.constant 0 : index
    %252 = vector.load %arg9[%c1_113, %c0_114, %c0_115] : memref<2x32x64xf32, #tpu.memory_space<vmem>>, vector<1x32x64xf32>
    %253 = vector.shape_cast %252 : vector<1x32x64xf32> to vector<32x64xf32>
    %cst_116 = arith.constant dense<0.000000e+00> : vector<8x64xf32>
    %254 = tpu.matmul %251, %253, %cst_116 {dimension_numbers = #tpu.dot_dimension_numbers<[1], [0], [0], [1], [0, 0, 1, 1], [], []>} : vector<8x32xf32>, vector<32x64xf32>, vector<8x64xf32> -> vector<8x64xf32>
    %c1_117 = arith.constant 1 : index
    %c0_118 = arith.constant 0 : index
    %c0_119 = arith.constant 0 : index
    %255 = vector.load %arg10[%c1_117, %c0_118, %c0_119] : memref<2x1x64xf32, #tpu.memory_space<vmem>>, vector<1x1x64xf32>
    %256 = vector.shape_cast %255 : vector<1x1x64xf32> to vector<1x64xf32>
    %257 = vector.broadcast %256 : vector<1x64xf32> to vector<8x64xf32>
    %258 = arith.addf %254, %257 : vector<8x64xf32>
    %259 = arith.mulf %258, %258 : vector<8x64xf32>
    %260 = arith.mulf %258, %259 : vector<8x64xf32>
    %cst_120 = arith.constant 4.471500e-02 : f32
    %261 = vector.broadcast %cst_120 : f32 to vector<8x64xf32>
    %262 = arith.mulf %261, %260 : vector<8x64xf32>
    %263 = arith.addf %258, %262 : vector<8x64xf32>
    %cst_121 = arith.constant 0.797884583 : f32
    %264 = vector.broadcast %cst_121 : f32 to vector<8x64xf32>
    %265 = arith.mulf %264, %263 : vector<8x64xf32>
    %266 = math.tanh %265 : vector<8x64xf32>
    %cst_122 = arith.constant 1.000000e+00 : f32
    %267 = vector.broadcast %cst_122 : f32 to vector<8x64xf32>
    %268 = arith.addf %267, %266 : vector<8x64xf32>
    %cst_123 = arith.constant 5.000000e-01 : f32
    %269 = vector.broadcast %cst_123 : f32 to vector<8x64xf32>
    %270 = arith.mulf %269, %268 : vector<8x64xf32>
    %271 = arith.mulf %258, %270 : vector<8x64xf32>
    %c1_124 = arith.constant 1 : index
    %c0_125 = arith.constant 0 : index
    %c0_126 = arith.constant 0 : index
    %272 = vector.load %arg11[%c1_124, %c0_125, %c0_126] : memref<2x64x32xf32, #tpu.memory_space<vmem>>, vector<1x64x32xf32>
    %273 = vector.shape_cast %272 : vector<1x64x32xf32> to vector<64x32xf32>
    %cst_127 = arith.constant dense<0.000000e+00> : vector<8x32xf32>
    %274 = tpu.matmul %271, %273, %cst_127 {dimension_numbers = #tpu.dot_dimension_numbers<[1], [0], [0], [1], [0, 0, 1, 1], [], []>} : vector<8x64xf32>, vector<64x32xf32>, vector<8x32xf32> -> vector<8x32xf32>
    %c1_128 = arith.constant 1 : index
    %c0_129 = arith.constant 0 : index
    %c0_130 = arith.constant 0 : index
    %275 = vector.load %arg12[%c1_128, %c0_129, %c0_130] : memref<2x1x32xf32, #tpu.memory_space<vmem>>, vector<1x1x32xf32>
    %276 = vector.shape_cast %275 : vector<1x1x32xf32> to vector<1x32xf32>
    %277 = vector.broadcast %276 : vector<1x32xf32> to vector<8x32xf32>
    %278 = arith.addf %274, %277 : vector<8x32xf32>
    %279 = arith.addf %251, %278 : vector<8x32xf32>
    %c1_131 = arith.constant 1 : index
    %c0_132 = arith.constant 0 : index
    %c0_133 = arith.constant 0 : index
    %280 = vector.load %arg13[%c1_131, %c0_132, %c0_133] : memref<2x1x32xf32, #tpu.memory_space<vmem>>, vector<1x1x32xf32>
    %281 = vector.shape_cast %280 : vector<1x1x32xf32> to vector<1x32xf32>
    %c1_134 = arith.constant 1 : index
    %c0_135 = arith.constant 0 : index
    %c0_136 = arith.constant 0 : index
    %282 = vector.load %arg14[%c1_134, %c0_135, %c0_136] : memref<2x1x32xf32, #tpu.memory_space<vmem>>, vector<1x1x32xf32>
    %283 = vector.shape_cast %282 : vector<1x1x32xf32> to vector<1x32xf32>
    %cst_137 = arith.constant dense<0.000000e+00> : vector<8xf32>
    %284 = vector.multi_reduction <add>, %279, %cst_137 [1] : vector<8x32xf32> to vector<8xf32>
    %285 = vector.shape_cast %284 : vector<8xf32> to vector<8x1xf32>
    %cst_138 = arith.constant 3.200000e+01 : f32
    %286 = vector.broadcast %cst_138 : f32 to vector<8x1xf32>
    %287 = arith.divf %285, %286 : vector<8x1xf32>
    %288 = vector.broadcast %287 : vector<8x1xf32> to vector<8x32xf32>
    %289 = arith.subf %279, %288 : vector<8x32xf32>
    %290 = arith.mulf %289, %289 : vector<8x32xf32>
    %cst_139 = arith.constant dense<0.000000e+00> : vector<8xf32>
    %291 = vector.multi_reduction <add>, %290, %cst_139 [1] : vector<8x32xf32> to vector<8xf32>
    %292 = vector.shape_cast %291 : vector<8xf32> to vector<8x1xf32>
    %cst_140 = arith.constant 3.200000e+01 : f32
    %293 = vector.broadcast %cst_140 : f32 to vector<8x1xf32>
    %294 = arith.divf %292, %293 : vector<8x1xf32>
    %cst_141 = arith.constant 9.99999996E-13 : f32
    %295 = vector.broadcast %cst_141 : f32 to vector<8x1xf32>
    %296 = arith.addf %294, %295 : vector<8x1xf32>
    %297 = math.rsqrt %296 : vector<8x1xf32>
    %298 = vector.broadcast %287 : vector<8x1xf32> to vector<8x32xf32>
    %299 = arith.subf %279, %298 : vector<8x32xf32>
    %300 = vector.broadcast %297 : vector<8x1xf32> to vector<8x32xf32>
    %301 = arith.mulf %299, %300 : vector<8x32xf32>
    %302 = vector.broadcast %281 : vector<1x32xf32> to vector<8x32xf32>
    %303 = arith.mulf %301, %302 : vector<8x32xf32>
    %304 = vector.broadcast %283 : vector<1x32xf32> to vector<8x32xf32>
    %305 = arith.addf %303, %304 : vector<8x32xf32>
    %c0_142 = arith.constant 0 : index
    %c0_143 = arith.constant 0 : index
    %c0_144 = arith.constant 0 : index
    %306 = vector.load %arg19[%c0_142, %c0_143, %c0_144] : memref<1x8x32xf32, #tpu.memory_space<vmem>>, vector<1x8x32xf32>
    %307 = vector.shape_cast %306 : vector<1x8x32xf32> to vector<8x32xf32>
    %308 = vector.shape_cast %305 : vector<8x32xf32> to vector<1x8x32xf32>
    tpu.vector_store %arg19[%c0_142, %c0_143, %c0_144], %308 {strides = array<i32>} : memref<1x8x32xf32, #tpu.memory_space<vmem>>, vector<1x8x32xf32>,
    %309 = vector.extract_strided_slice %305 {offsets = [0, 0], sizes = [1, 32], strides = [1, 1]} : vector<8x32xf32> to vector<1x32xf32>
    %c0_145 = arith.constant 0 : index
    %c0_146 = arith.constant 0 : index
    %310 = vector.load %arg17[%c0_145, %c0_146] : memref<32x32xf32, #tpu.memory_space<vmem>>, vector<32x32xf32>
    %cst_147 = arith.constant dense<0.000000e+00> : vector<1x32xf32>
    %311 = tpu.matmul %309, %310, %cst_147 {dimension_numbers = #tpu.dot_dimension_numbers<[1], [0], [0], [1], [0, 0, 1, 1], [], []>} : vector<1x32xf32>, vector<32x32xf32>, vector<1x32xf32> -> vector<1x32xf32>
    %c0_148 = arith.constant 0 : index
    %c0_149 = arith.constant 0 : index
    %312 = vector.load %arg18[%c0_148, %c0_149] : memref<1x32xf32, #tpu.memory_space<vmem>>, vector<1x32xf32>
    %313 = arith.addf %311, %312 : vector<1x32xf32>
    %314 = math.tanh %313 : vector<1x32xf32>
    %c0_150 = arith.constant 0 : index
    %c0_151 = arith.constant 0 : index
    %c0_152 = arith.constant 0 : index
    %315 = vector.load %arg20[%c0_150, %c0_151, %c0_152] : memref<1x1x32xf32, #tpu.memory_space<vmem>>, vector<1x1x32xf32>
    %316 = vector.shape_cast %315 : vector<1x1x32xf32> to vector<1x32xf32>
    %317 = vector.shape_cast %314 : vector<1x32xf32> to vector<1x1x32xf32>
    tpu.vector_store %arg20[%c0_150, %c0_151, %c0_152], %317 {strides = array<i32>} : memref<1x1x32xf32, #tpu.memory_space<vmem>>, vector<1x1x32xf32>,
    return
  }
  func.func @transform_0(%arg0: i32) -> (i32, i32, i32) {
    %c0_i32 = arith.constant 0 : i32
    %c0_i32_0 = arith.constant 0 : i32
    %c0_i32_1 = arith.constant 0 : i32
    return %arg0, %c0_i32, %c0_i32_0 : i32, i32, i32
  }
  func.func @transform_1(%arg0: i32) -> (i32, i32, i32) {
    %c0_i32 = arith.constant 0 : i32
    %c0_i32_0 = arith.constant 0 : i32
    %c0_i32_1 = arith.constant 0 : i32
    return %arg0, %c0_i32, %c0_i32_0 : i32, i32, i32
  }
  func.func @transform_2(%arg0: i32) -> (i32, i32, i32) {
    %c0_i32 = arith.constant 0 : i32
    %c0_i32_0 = arith.constant 0 : i32
    %c0_i32_1 = arith.constant 0 : i32
    %c0_i32_2 = arith.constant 0 : i32
    return %c0_i32, %c0_i32_0, %c0_i32_1 : i32, i32, i32
  }
  func.func @transform_3(%arg0: i32) -> (i32, i32, i32) {
    %c0_i32 = arith.constant 0 : i32
    %c0_i32_0 = arith.constant 0 : i32
    %c0_i32_1 = arith.constant 0 : i32
    %c0_i32_2 = arith.constant 0 : i32
    return %c0_i32, %c0_i32_0, %c0_i32_1 : i32, i32, i32
  }
  func.func @transform_4(%arg0: i32) -> (i32, i32, i32) {
    %c0_i32 = arith.constant 0 : i32
    %c0_i32_0 = arith.constant 0 : i32
    %c0_i32_1 = arith.constant 0 : i32
    %c0_i32_2 = arith.constant 0 : i32
    return %c0_i32, %c0_i32_0, %c0_i32_1 : i32, i32, i32
  }
  func.func @transform_5(%arg0: i32) -> (i32, i32, i32) {
    %c0_i32 = arith.constant 0 : i32
    %c0_i32_0 = arith.constant 0 : i32
    %c0_i32_1 = arith.constant 0 : i32
    %c0_i32_2 = arith.constant 0 : i32
    return %c0_i32, %c0_i32_0, %c0_i32_1 : i32, i32, i32
  }
  func.func @transform_6(%arg0: i32) -> (i32, i32, i32) {
    %c0_i32 = arith.constant 0 : i32
    %c0_i32_0 = arith.constant 0 : i32
    %c0_i32_1 = arith.constant 0 : i32
    %c0_i32_2 = arith.constant 0 : i32
    return %c0_i32, %c0_i32_0, %c0_i32_1 : i32, i32, i32
  }
  func.func @transform_7(%arg0: i32) -> (i32, i32, i32) {
    %c0_i32 = arith.constant 0 : i32
    %c0_i32_0 = arith.constant 0 : i32
    %c0_i32_1 = arith.constant 0 : i32
    %c0_i32_2 = arith.constant 0 : i32
    return %c0_i32, %c0_i32_0, %c0_i32_1 : i32, i32, i32
  }
  func.func @transform_8(%arg0: i32) -> (i32, i32, i32) {
    %c0_i32 = arith.constant 0 : i32
    %c0_i32_0 = arith.constant 0 : i32
    %c0_i32_1 = arith.constant 0 : i32
    %c0_i32_2 = arith.constant 0 : i32
    return %c0_i32, %c0_i32_0, %c0_i32_1 : i32, i32, i32
  }
  func.func @transform_9(%arg0: i32) -> (i32, i32, i32) {
    %c0_i32 = arith.constant 0 : i32
    %c0_i32_0 = arith.constant 0 : i32
    %c0_i32_1 = arith.constant 0 : i32
    %c0_i32_2 = arith.constant 0 : i32
    return %c0_i32, %c0_i32_0, %c0_i32_1 : i32, i32, i32
  }
  func.func @transform_10(%arg0: i32) -> (i32, i32, i32) {
    %c0_i32 = arith.constant 0 : i32
    %c0_i32_0 = arith.constant 0 : i32
    %c0_i32_1 = arith.constant 0 : i32
    %c0_i32_2 = arith.constant 0 : i32
    return %c0_i32, %c0_i32_0, %c0_i32_1 : i32, i32, i32
  }
  func.func @transform_11(%arg0: i32) -> (i32, i32, i32) {
    %c0_i32 = arith.constant 0 : i32
    %c0_i32_0 = arith.constant 0 : i32
    %c0_i32_1 = arith.constant 0 : i32
    %c0_i32_2 = arith.constant 0 : i32
    return %c0_i32, %c0_i32_0, %c0_i32_1 : i32, i32, i32
  }
  func.func @transform_12(%arg0: i32) -> (i32, i32, i32) {
    %c0_i32 = arith.constant 0 : i32
    %c0_i32_0 = arith.constant 0 : i32
    %c0_i32_1 = arith.constant 0 : i32
    %c0_i32_2 = arith.constant 0 : i32
    return %c0_i32, %c0_i32_0, %c0_i32_1 : i32, i32, i32
  }
  func.func @transform_13(%arg0: i32) -> (i32, i32, i32) {
    %c0_i32 = arith.constant 0 : i32
    %c0_i32_0 = arith.constant 0 : i32
    %c0_i32_1 = arith.constant 0 : i32
    %c0_i32_2 = arith.constant 0 : i32
    return %c0_i32, %c0_i32_0, %c0_i32_1 : i32, i32, i32
  }
  func.func @transform_14(%arg0: i32) -> (i32, i32) {
    %c0_i32 = arith.constant 0 : i32
    %c0_i32_0 = arith.constant 0 : i32
    %c0_i32_1 = arith.constant 0 : i32
    return %c0_i32, %c0_i32_0 : i32, i32
  }
  func.func @transform_15(%arg0: i32) -> (i32, i32) {
    %c0_i32 = arith.constant 0 : i32
    %c0_i32_0 = arith.constant 0 : i32
    %c0_i32_1 = arith.constant 0 : i32
    return %c0_i32, %c0_i32_0 : i32, i32
  }
  func.func @transform_16(%arg0: i32) -> (i32, i32) {
    %c0_i32 = arith.constant 0 : i32
    %c0_i32_0 = arith.constant 0 : i32
    %c0_i32_1 = arith.constant 0 : i32
    return %c0_i32, %c0_i32_0 : i32, i32
  }
  func.func @transform_17(%arg0: i32) -> (i32, i32) {
    %c0_i32 = arith.constant 0 : i32
    %c0_i32_0 = arith.constant 0 : i32
    %c0_i32_1 = arith.constant 0 : i32
    return %c0_i32, %c0_i32_0 : i32, i32
  }
  func.func @transform_18(%arg0: i32) -> (i32, i32, i32) {
    %c0_i32 = arith.constant 0 : i32
    %c0_i32_0 = arith.constant 0 : i32
    %c0_i32_1 = arith.constant 0 : i32
    return %arg0, %c0_i32, %c0_i32_0 : i32, i32, i32
  }
  func.func @transform_19(%arg0: i32) -> (i32, i32, i32) {
    %c0_i32 = arith.constant 0 : i32
    %c0_i32_0 = arith.constant 0 : i32
    %c0_i32_1 = arith.constant 0 : i32
    return %arg0, %c0_i32, %c0_i32_0 : i32, i32, i32
  }
}

</mosaic_0001>

<llo_original>
// kernel: bert_layer_forward.1
$region0: #{bert_layer_forward.1}
  #allocation0 [shape = 'u32[]', space=smem, size = 0x4, offset = 0x4, fixed_abs, tag = 'smem constant byte address 0x4 - core index']
  #allocation1 [shape = 'u32[144,128]{1,0:T(1,128)}', space=vmem, size = 0x12000, scoped, tag = 'internal scratch']
  %s0 = inlined_call_operand.vmem [shape: f32[2,8,32], index: 0, kind: input, shape index: {}]
  %s1 = inlined_call_operand.vmem [shape: f32[2,1,8], index: 1, kind: input, shape index: {}]
  %s2 = inlined_call_operand.vmem [shape: f32[2,32,96], index: 2, kind: input, shape index: {}]
  %s3 = inlined_call_operand.vmem [shape: f32[2,1,96], index: 3, kind: input, shape index: {}]
  %s4 = inlined_call_operand.vmem [shape: f32[2,32,32], index: 4, kind: input, shape index: {}]
  %s5 = inlined_call_operand.vmem [shape: f32[2,1,32], index: 5, kind: input, shape index: {}]
  %s6 = inlined_call_operand.vmem [shape: f32[2,1,32], index: 6, kind: input, shape index: {}]
  %s7 = inlined_call_operand.vmem [shape: f32[2,1,32], index: 7, kind: input, shape index: {}]
  %s8 = inlined_call_operand.vmem [shape: f32[2,32,64], index: 8, kind: input, shape index: {}]
  %s9 = inlined_call_operand.vmem [shape: f32[2,1,64], index: 9, kind: input, shape index: {}]
  %s10 = inlined_call_operand.vmem [shape: f32[2,64,32], index: 10, kind: input, shape index: {}]
  %s11 = inlined_call_operand.vmem [shape: f32[2,1,32], index: 11, kind: input, shape index: {}]
  %s12 = inlined_call_operand.vmem [shape: f32[2,1,32], index: 12, kind: input, shape index: {}]
  %s13 = inlined_call_operand.vmem [shape: f32[2,1,32], index: 13, kind: input, shape index: {}]
  %s14 = inlined_call_operand.vmem [shape: f32[1,32], index: 14, kind: input, shape index: {}]
  %s15 = inlined_call_operand.vmem [shape: f32[1,32], index: 15, kind: input, shape index: {}]
  %s16 = inlined_call_operand.vmem [shape: f32[32,32], index: 16, kind: input, shape index: {}]
  %s17 = inlined_call_operand.vmem [shape: f32[1,32], index: 17, kind: input, shape index: {}]
  %s18 = inlined_call_operand.hbm [shape: f32[2,8,32], index: 18, kind: output, shape index: {0}]
  %s19 = inlined_call_operand.hbm [shape: f32[2,1,32], index: 19, kind: output, shape index: {1}]
  %20 = xla_tuple %s18, %s19
  %s21 = sld [smem:[#allocation0]]
  $region113: #{bert_layer_forward.1} parent=0
    _
  %s23 = ssub.s32 1, %s21
  %s24 = scalar_select 0, %s23, %s21
  $region1: #{bert_layer_forward.1} parent=0
    #allocation2 [shape = 'u8[8192]{0}', space=vmem, size = 0x2000, scoped, tag = 'output window, operand 0']
    #allocation3 [shape = 's32[2]{0}', space=sflag, size = 0x8, scoped, tag = 'scoped memory for bert_layer_forward.1']
    #allocation4 [shape = 'u8[1024]{0}', space=vmem, size = 0x400, scoped, tag = 'output window, operand 1']
    #allocation5 [shape = 's32[2]{0}', space=sflag, size = 0x8, scoped, tag = 'scoped memory for bert_layer_forward.1']
    %25 = vsyncpa [#allocation3], 0
    %s26 = scalar_lea.sflag [#allocation3], 1
    %27 = vsyncpa %s26, 0
    %28 = vsyncpa [#allocation5], 0
    %s29 = scalar_lea.sflag [#allocation5], 1
    %30 = vsyncpa %s29, 0
    loop: start=0, step=1, limit=4
    $region2: #{bert_layer_forward.1} parent=1 // loop_pre_header
      _
    $region3: #{bert_layer_forward.1} parent=1 // loop_header
      %s32 = sphi 0, %s36
      %p33 = scmp.ge.s32.totalorder %s32, 4
      %s42 = sphi 0, %s44
      %s45 = sphi 0, %s42
      %s46 = sphi 0, %s45
      %s62 = sphi 0, %s46
      %s68 = sphi 0, %s70
      %s71 = sphi 0, %s68
      %s72 = sphi 0, %s71
      %s88 = sphi 0, %s72
      %s92 = sphi 0, %s92
      %s94 = sphi 0, %s92
      %s95 = sphi 0, %s94
      %s109 = sphi 0, %s95
      %s113 = sphi 0, %s113
      %s115 = sphi 0, %s113
      %s116 = sphi 0, %s115
      %s130 = sphi 0, %s116
      %s134 = sphi 0, %s134
      %s136 = sphi 0, %s134
      %s137 = sphi 0, %s136
      %s151 = sphi 0, %s137
      %s155 = sphi 0, %s155
      %s157 = sphi 0, %s155
      %s158 = sphi 0, %s157
      %s172 = sphi 0, %s158
      %s176 = sphi 0, %s176
      %s178 = sphi 0, %s176
      %s179 = sphi 0, %s178
      %s193 = sphi 0, %s179
      %s197 = sphi 0, %s197
      %s199 = sphi 0, %s197
      %s200 = sphi 0, %s199
      %s214 = sphi 0, %s200
      %s218 = sphi 0, %s218
      %s220 = sphi 0, %s218
      %s221 = sphi 0, %s220
      %s235 = sphi 0, %s221
      %s239 = sphi 0, %s239
      %s241 = sphi 0, %s239
      %s242 = sphi 0, %s241
      %s256 = sphi 0, %s242
      %s260 = sphi 0, %s260
      %s262 = sphi 0, %s260
      %s263 = sphi 0, %s262
      %s277 = sphi 0, %s263
      %s281 = sphi 0, %s281
      %s283 = sphi 0, %s281
      %s284 = sphi 0, %s283
      %s298 = sphi 0, %s284
      %s302 = sphi 0, %s302
      %s304 = sphi 0, %s302
      %s305 = sphi 0, %s304
      %s319 = sphi 0, %s305
      %s323 = sphi 0, %s323
      %s325 = sphi 0, %s323
      %s326 = sphi 0, %s325
      %s340 = sphi 0, %s326
      %s344 = sphi 0, %s344
      %s346 = sphi 0, %s344
      %s347 = sphi 0, %s346
      %s361 = sphi 0, %s347
      %s365 = sphi 0, %s365
      %s367 = sphi 0, %s365
      %s368 = sphi 0, %s367
      %s382 = sphi 0, %s368
      %s386 = sphi 0, %s386
      %s388 = sphi 0, %s386
      %s389 = sphi 0, %s388
      %s403 = sphi 0, %s389
      %s407 = sphi 0, %s407
      %s409 = sphi 0, %s407
      %s410 = sphi 0, %s409
      %s424 = sphi 0, %s410
      %s430 = sphi 0, %s432
      %s433 = sphi 0, %s430
      %s434 = sphi 0, %s433
      %s450 = sphi 0, %s434
      %s456 = sphi 0, %s458
      %s459 = sphi 0, %s456
      %s460 = sphi 0, %s459
      %s476 = sphi 0, %s460
    $region4: #{bert_layer_forward.1} parent=1 // loop_header_branch
      %35 = sbr.rel (%p33) target = $region8
    $region5: #{bert_layer_forward.1} parent=1 // loop_body
      %s37 = ssub.s32 %s32, 1
      %s38 = ssub.s32 %s32, 2
      %s39 = sadd.s32 %s32, 1
      %s40 = ssub.s32 %s32, %s39
      %p41 = scmp.eq.s32.totalorder %s40, 0
      %s43 = sadd.s32 %s42, 1
      %s44 = scalar_select %p41, %s42, %s43
      %p47 = pneg %p41
      %p48 = scmp.eq.s32.totalorder %s32, 1
      %p49 = por %p47, %p48
      %p50 = scmp.ne.s32.totalorder %s42, %s45
      %p51 = scmp.eq.s32.totalorder %s32, 0
      %p52 = por %p50, %p51
      %p53 = scmp.ne.s32.totalorder %s42, %s45
      %p54 = scmp.eq.s32.totalorder %s37, 1
      %p55 = por %p53, %p54
      %p56 = scmp.ne.s32.totalorder %s45, %s46
      %p57 = scmp.eq.s32.totalorder %s37, 0
      %p58 = por %p56, %p57
      %p59 = scmp.ne.s32.totalorder %s45, %s46
      %p60 = scmp.eq.s32.totalorder %s38, 1
      %p61 = por %p59, %p60
      %p63 = scmp.ne.s32.totalorder %s46, %s62
      %p64 = scmp.eq.s32.totalorder %s38, 0
      %p65 = por %p63, %p64
      %s66 = ssub.s32 %s32, %s39
      %p67 = scmp.eq.s32.totalorder %s66, 0
      %s69 = sadd.s32 %s68, 1
      %s70 = scalar_select %p67, %s68, %s69
      %p73 = pneg %p67
      %p74 = scmp.eq.s32.totalorder %s32, 1
      %p75 = por %p73, %p74
      %p76 = scmp.ne.s32.totalorder %s68, %s71
      %p77 = scmp.eq.s32.totalorder %s32, 0
      %p78 = por %p76, %p77
      %p79 = scmp.ne.s32.totalorder %s68, %s71
      %p80 = scmp.eq.s32.totalorder %s37, 1
      %p81 = por %p79, %p80
      %p82 = scmp.ne.s32.totalorder %s71, %s72
      %p83 = scmp.eq.s32.totalorder %s37, 0
      %p84 = por %p82, %p83
      %p85 = scmp.ne.s32.totalorder %s71, %s72
      %p86 = scmp.eq.s32.totalorder %s38, 1
      %p87 = por %p85, %p86
      %p89 = scmp.ne.s32.totalorder %s72, %s88
      %p90 = scmp.eq.s32.totalorder %s38, 0
      %p91 = por %p89, %p90
      %s93 = sadd.s32 %s92, 1
      %p96 = scmp.eq.s32.totalorder %s32, 1
      %p97 = scmp.ne.s32.totalorder %s92, %s94
      %p98 = scmp.eq.s32.totalorder %s32, 0
      %p99 = por %p97, %p98
      %p100 = scmp.ne.s32.totalorder %s92, %s94
      %p101 = scmp.eq.s32.totalorder %s37, 1
      %p102 = por %p100, %p101
      %p103 = scmp.ne.s32.totalorder %s94, %s95
      %p104 = scmp.eq.s32.totalorder %s37, 0
      %p105 = por %p103, %p104
      %p106 = scmp.ne.s32.totalorder %s94, %s95
      %p107 = scmp.eq.s32.totalorder %s38, 1
      %p108 = por %p106, %p107
      %p110 = scmp.ne.s32.totalorder %s95, %s109
      %p111 = scmp.eq.s32.totalorder %s38, 0
      %p112 = por %p110, %p111
      %s114 = sadd.s32 %s113, 1
      %p117 = scmp.eq.s32.totalorder %s32, 1
      %p118 = scmp.ne.s32.totalorder %s113, %s115
      %p119 = scmp.eq.s32.totalorder %s32, 0
      %p120 = por %p118, %p119
      %p121 = scmp.ne.s32.totalorder %s113, %s115
      %p122 = scmp.eq.s32.totalorder %s37, 1
      %p123 = por %p121, %p122
      %p124 = scmp.ne.s32.totalorder %s115, %s116
      %p125 = scmp.eq.s32.totalorder %s37, 0
      %p126 = por %p124, %p125
      %p127 = scmp.ne.s32.totalorder %s115, %s116
      %p128 = scmp.eq.s32.totalorder %s38, 1
      %p129 = por %p127, %p128
      %p131 = scmp.ne.s32.totalorder %s116, %s130
      %p132 = scmp.eq.s32.totalorder %s38, 0
      %p133 = por %p131, %p132
      %s135 = sadd.s32 %s134, 1
      %p138 = scmp.eq.s32.totalorder %s32, 1
      %p139 = scmp.ne.s32.totalorder %s134, %s136
      %p140 = scmp.eq.s32.totalorder %s32, 0
      %p141 = por %p139, %p140
      %p142 = scmp.ne.s32.totalorder %s134, %s136
      %p143 = scmp.eq.s32.totalorder %s37, 1
      %p144 = por %p142, %p143
      %p145 = scmp.ne.s32.totalorder %s136, %s137
      %p146 = scmp.eq.s32.totalorder %s37, 0
      %p147 = por %p145, %p146
      %p148 = scmp.ne.s32.totalorder %s136, %s137
      %p149 = scmp.eq.s32.totalorder %s38, 1
      %p150 = por %p148, %p149
      %p152 = scmp.ne.s32.totalorder %s137, %s151
      %p153 = scmp.eq.s32.totalorder %s38, 0
      %p154 = por %p152, %p153
      %s156 = sadd.s32 %s155, 1
      %p159 = scmp.eq.s32.totalorder %s32, 1
      %p160 = scmp.ne.s32.totalorder %s155, %s157
      %p161 = scmp.eq.s32.totalorder %s32, 0
      %p162 = por %p160, %p161
      %p163 = scmp.ne.s32.totalorder %s155, %s157
      %p164 = scmp.eq.s32.totalorder %s37, 1
      %p165 = por %p163, %p164
      %p166 = scmp.ne.s32.totalorder %s157, %s158
      %p167 = scmp.eq.s32.totalorder %s37, 0
      %p168 = por %p166, %p167
      %p169 = scmp.ne.s32.totalorder %s157, %s158
      %p170 = scmp.eq.s32.totalorder %s38, 1
      %p171 = por %p169, %p170
      %p173 = scmp.ne.s32.totalorder %s158, %s172
      %p174 = scmp.eq.s32.totalorder %s38, 0
      %p175 = por %p173, %p174
      %s177 = sadd.s32 %s176, 1
      %p180 = scmp.eq.s32.totalorder %s32, 1
      %p181 = scmp.ne.s32.totalorder %s176, %s178
      %p182 = scmp.eq.s32.totalorder %s32, 0
      %p183 = por %p181, %p182
      %p184 = scmp.ne.s32.totalorder %s176, %s178
      %p185 = scmp.eq.s32.totalorder %s37, 1
      %p186 = por %p184, %p185
      %p187 = scmp.ne.s32.totalorder %s178, %s179
      %p188 = scmp.eq.s32.totalorder %s37, 0
      %p189 = por %p187, %p188
      %p190 = scmp.ne.s32.totalorder %s178, %s179
      %p191 = scmp.eq.s32.totalorder %s38, 1
      %p192 = por %p190, %p191
      %p194 = scmp.ne.s32.totalorder %s179, %s193
      %p195 = scmp.eq.s32.totalorder %s38, 0
      %p196 = por %p194, %p195
      %s198 = sadd.s32 %s197, 1
      %p201 = scmp.eq.s32.totalorder %s32, 1
      %p202 = scmp.ne.s32.totalorder %s197, %s199
      %p203 = scmp.eq.s32.totalorder %s32, 0
      %p204 = por %p202, %p203
      %p205 = scmp.ne.s32.totalorder %s197, %s199
      %p206 = scmp.eq.s32.totalorder %s37, 1
      %p207 = por %p205, %p206
      %p208 = scmp.ne.s32.totalorder %s199, %s200
      %p209 = scmp.eq.s32.totalorder %s37, 0
      %p210 = por %p208, %p209
      %p211 = scmp.ne.s32.totalorder %s199, %s200
      %p212 = scmp.eq.s32.totalorder %s38, 1
      %p213 = por %p211, %p212
      %p215 = scmp.ne.s32.totalorder %s200, %s214
      %p216 = scmp.eq.s32.totalorder %s38, 0
      %p217 = por %p215, %p216
      %s219 = sadd.s32 %s218, 1
      %p222 = scmp.eq.s32.totalorder %s32, 1
      %p223 = scmp.ne.s32.totalorder %s218, %s220
      %p224 = scmp.eq.s32.totalorder %s32, 0
      %p225 = por %p223, %p224
      %p226 = scmp.ne.s32.totalorder %s218, %s220
      %p227 = scmp.eq.s32.totalorder %s37, 1
      %p228 = por %p226, %p227
      %p229 = scmp.ne.s32.totalorder %s220, %s221
      %p230 = scmp.eq.s32.totalorder %s37, 0
      %p231 = por %p229, %p230
      %p232 = scmp.ne.s32.totalorder %s220, %s221
      %p233 = scmp.eq.s32.totalorder %s38, 1
      %p234 = por %p232, %p233
      %p236 = scmp.ne.s32.totalorder %s221, %s235
      %p237 = scmp.eq.s32.totalorder %s38, 0
      %p238 = por %p236, %p237
      %s240 = sadd.s32 %s239, 1
      %p243 = scmp.eq.s32.totalorder %s32, 1
      %p244 = scmp.ne.s32.totalorder %s239, %s241
      %p245 = scmp.eq.s32.totalorder %s32, 0
      %p246 = por %p244, %p245
      %p247 = scmp.ne.s32.totalorder %s239, %s241
      %p248 = scmp.eq.s32.totalorder %s37, 1
      %p249 = por %p247, %p248
      %p250 = scmp.ne.s32.totalorder %s241, %s242
      %p251 = scmp.eq.s32.totalorder %s37, 0
      %p252 = por %p250, %p251
      %p253 = scmp.ne.s32.totalorder %s241, %s242
      %p254 = scmp.eq.s32.totalorder %s38, 1
      %p255 = por %p253, %p254
      %p257 = scmp.ne.s32.totalorder %s242, %s256
      %p258 = scmp.eq.s32.totalorder %s38, 0
      %p259 = por %p257, %p258
      %s261 = sadd.s32 %s260, 1
      %p264 = scmp.eq.s32.totalorder %s32, 1
      %p265 = scmp.ne.s32.totalorder %s260, %s262
      %p266 = scmp.eq.s32.totalorder %s32, 0
      %p267 = por %p265, %p266
      %p268 = scmp.ne.s32.totalorder %s260, %s262
      %p269 = scmp.eq.s32.totalorder %s37, 1
      %p270 = por %p268, %p269
      %p271 = scmp.ne.s32.totalorder %s262, %s263
      %p272 = scmp.eq.s32.totalorder %s37, 0
      %p273 = por %p271, %p272
      %p274 = scmp.ne.s32.totalorder %s262, %s263
      %p275 = scmp.eq.s32.totalorder %s38, 1
      %p276 = por %p274, %p275
      %p278 = scmp.ne.s32.totalorder %s263, %s277
      %p279 = scmp.eq.s32.totalorder %s38, 0
      %p280 = por %p278, %p279
      %s282 = sadd.s32 %s281, 1
      %p285 = scmp.eq.s32.totalorder %s32, 1
      %p286 = scmp.ne.s32.totalorder %s281, %s283
      %p287 = scmp.eq.s32.totalorder %s32, 0
      %p288 = por %p286, %p287
      %p289 = scmp.ne.s32.totalorder %s281, %s283
      %p290 = scmp.eq.s32.totalorder %s37, 1
      %p291 = por %p289, %p290
      %p292 = scmp.ne.s32.totalorder %s283, %s284
      %p293 = scmp.eq.s32.totalorder %s37, 0
      %p294 = por %p292, %p293
      %p295 = scmp.ne.s32.totalorder %s283, %s284
      %p296 = scmp.eq.s32.totalorder %s38, 1
      %p297 = por %p295, %p296
      %p299 = scmp.ne.s32.totalorder %s284, %s298
      %p300 = scmp.eq.s32.totalorder %s38, 0
      %p301 = por %p299, %p300
      %s303 = sadd.s32 %s302, 1
      %p306 = scmp.eq.s32.totalorder %s32, 1
      %p307 = scmp.ne.s32.totalorder %s302, %s304
      %p308 = scmp.eq.s32.totalorder %s32, 0
      %p309 = por %p307, %p308
      %p310 = scmp.ne.s32.totalorder %s302, %s304
      %p311 = scmp.eq.s32.totalorder %s37, 1
      %p312 = por %p310, %p311
      %p313 = scmp.ne.s32.totalorder %s304, %s305
      %p314 = scmp.eq.s32.totalorder %s37, 0
      %p315 = por %p313, %p314
      %p316 = scmp.ne.s32.totalorder %s304, %s305
      %p317 = scmp.eq.s32.totalorder %s38, 1
      %p318 = por %p316, %p317
      %p320 = scmp.ne.s32.totalorder %s305, %s319
      %p321 = scmp.eq.s32.totalorder %s38, 0
      %p322 = por %p320, %p321
      %s324 = sadd.s32 %s323, 1
      %p327 = scmp.eq.s32.totalorder %s32, 1
      %p328 = scmp.ne.s32.totalorder %s323, %s325
      %p329 = scmp.eq.s32.totalorder %s32, 0
      %p330 = por %p328, %p329
      %p331 = scmp.ne.s32.totalorder %s323, %s325
      %p332 = scmp.eq.s32.totalorder %s37, 1
      %p333 = por %p331, %p332
      %p334 = scmp.ne.s32.totalorder %s325, %s326
      %p335 = scmp.eq.s32.totalorder %s37, 0
      %p336 = por %p334, %p335
      %p337 = scmp.ne.s32.totalorder %s325, %s326
      %p338 = scmp.eq.s32.totalorder %s38, 1
      %p339 = por %p337, %p338
      %p341 = scmp.ne.s32.totalorder %s326, %s340
      %p342 = scmp.eq.s32.totalorder %s38, 0
      %p343 = por %p341, %p342
      %s345 = sadd.s32 %s344, 1
      %p348 = scmp.eq.s32.totalorder %s32, 1
      %p349 = scmp.ne.s32.totalorder %s344, %s346
      %p350 = scmp.eq.s32.totalorder %s32, 0
      %p351 = por %p349, %p350
      %p352 = scmp.ne.s32.totalorder %s344, %s346
      %p353 = scmp.eq.s32.totalorder %s37, 1
      %p354 = por %p352, %p353
      %p355 = scmp.ne.s32.totalorder %s346, %s347
      %p356 = scmp.eq.s32.totalorder %s37, 0
      %p357 = por %p355, %p356
      %p358 = scmp.ne.s32.totalorder %s346, %s347
      %p359 = scmp.eq.s32.totalorder %s38, 1
      %p360 = por %p358, %p359
      %p362 = scmp.ne.s32.totalorder %s347, %s361
      %p363 = scmp.eq.s32.totalorder %s38, 0
      %p364 = por %p362, %p363
      %s366 = sadd.s32 %s365, 1
      %p369 = scmp.eq.s32.totalorder %s32, 1
      %p370 = scmp.ne.s32.totalorder %s365, %s367
      %p371 = scmp.eq.s32.totalorder %s32, 0
      %p372 = por %p370, %p371
      %p373 = scmp.ne.s32.totalorder %s365, %s367
      %p374 = scmp.eq.s32.totalorder %s37, 1
      %p375 = por %p373, %p374
      %p376 = scmp.ne.s32.totalorder %s367, %s368
      %p377 = scmp.eq.s32.totalorder %s37, 0
      %p378 = por %p376, %p377
      %p379 = scmp.ne.s32.totalorder %s367, %s368
      %p380 = scmp.eq.s32.totalorder %s38, 1
      %p381 = por %p379, %p380
      %p383 = scmp.ne.s32.totalorder %s368, %s382
      %p384 = scmp.eq.s32.totalorder %s38, 0
      %p385 = por %p383, %p384
      %s387 = sadd.s32 %s386, 1
      %p390 = scmp.eq.s32.totalorder %s32, 1
      %p391 = scmp.ne.s32.totalorder %s386, %s388
      %p392 = scmp.eq.s32.totalorder %s32, 0
      %p393 = por %p391, %p392
      %p394 = scmp.ne.s32.totalorder %s386, %s388
      %p395 = scmp.eq.s32.totalorder %s37, 1
      %p396 = por %p394, %p395
      %p397 = scmp.ne.s32.totalorder %s388, %s389
      %p398 = scmp.eq.s32.totalorder %s37, 0
      %p399 = por %p397, %p398
      %p400 = scmp.ne.s32.totalorder %s388, %s389
      %p401 = scmp.eq.s32.totalorder %s38, 1
      %p402 = por %p400, %p401
      %p404 = scmp.ne.s32.totalorder %s389, %s403
      %p405 = scmp.eq.s32.totalorder %s38, 0
      %p406 = por %p404, %p405
      %s408 = sadd.s32 %s407, 1
      %p411 = scmp.eq.s32.totalorder %s32, 1
      %p412 = scmp.ne.s32.totalorder %s407, %s409
      %p413 = scmp.eq.s32.totalorder %s32, 0
      %p414 = por %p412, %p413
      %p415 = scmp.ne.s32.totalorder %s407, %s409
      %p416 = scmp.eq.s32.totalorder %s37, 1
      %p417 = por %p415, %p416
      %p418 = scmp.ne.s32.totalorder %s409, %s410
      %p419 = scmp.eq.s32.totalorder %s37, 0
      %p420 = por %p418, %p419
      %p421 = scmp.ne.s32.totalorder %s409, %s410
      %p422 = scmp.eq.s32.totalorder %s38, 1
      %p423 = por %p421, %p422
      %p425 = scmp.ne.s32.totalorder %s410, %s424
      %p426 = scmp.eq.s32.totalorder %s38, 0
      %p427 = por %p425, %p426
      %s428 = ssub.s32 %s32, %s39
      %p429 = scmp.eq.s32.totalorder %s428, 0
      %s431 = sadd.s32 %s430, 1
      %s432 = scalar_select %p429, %s430, %s431
      %p435 = pneg %p429
      %p436 = scmp.eq.s32.totalorder %s32, 1
      %p437 = por %p435, %p436
      %p438 = scmp.ne.s32.totalorder %s430, %s433
      %p439 = scmp.eq.s32.totalorder %s32, 0
      %p440 = por %p438, %p439
      %p441 = scmp.ne.s32.totalorder %s430, %s433
      %p442 = scmp.eq.s32.totalorder %s37, 1
      %p443 = por %p441, %p442
      %p444 = scmp.ne.s32.totalorder %s433, %s434
      %p445 = scmp.eq.s32.totalorder %s37, 0
      %p446 = por %p444, %p445
      %p447 = scmp.ne.s32.totalorder %s433, %s434
      %p448 = scmp.eq.s32.totalorder %s38, 1
      %p449 = por %p447, %p448
      %p451 = scmp.ne.s32.totalorder %s434, %s450
      %p452 = scmp.eq.s32.totalorder %s38, 0
      %p453 = por %p451, %p452
      %s454 = ssub.s32 %s32, %s39
      %p455 = scmp.eq.s32.totalorder %s454, 0
      %s457 = sadd.s32 %s456, 1
      %s458 = scalar_select %p455, %s456, %s457
      %p461 = pneg %p455
      %p462 = scmp.eq.s32.totalorder %s32, 1
      %p463 = por %p461, %p462
      %p464 = scmp.ne.s32.totalorder %s456, %s459
      %p465 = scmp.eq.s32.totalorder %s32, 0
      %p466 = por %p464, %p465
      %p467 = scmp.ne.s32.totalorder %s456, %s459
      %p468 = scmp.eq.s32.totalorder %s37, 1
      %p469 = por %p467, %p468
      %p470 = scmp.ne.s32.totalorder %s459, %s460
      %p471 = scmp.eq.s32.totalorder %s37, 0
      %p472 = por %p470, %p471
      %p473 = scmp.ne.s32.totalorder %s459, %s460
      %p474 = scmp.eq.s32.totalorder %s38, 1
      %p475 = por %p473, %p474
      %p477 = scmp.ne.s32.totalorder %s460, %s476
      %p478 = scmp.eq.s32.totalorder %s38, 0
      %p479 = por %p477, %p478
      %p480 = scmp.le.s32.totalorder 1, %s32
      %p481 = scmp.lt.s32.totalorder %s32, 3
      %p482 = pnand %p480, %p481
      %p483 = pneg %p482
      // Predicated region
      $region9: #{bert_layer_forward.1} parent=5 // pred_check
        _
      $region10: #{bert_layer_forward.1} parent=5 // pred_check_branch
        %485 = sbr.rel (%p482) target = $region12
      $region11: #{bert_layer_forward.1} parent=5 // pred_region
        %s486 = ssub.s32 %s32, 1
        // Predicated region
        $region13: #{bert_layer_forward.1} parent=11 // pred_check
          %p487 = pneg %p105
        $region14: #{bert_layer_forward.1} parent=11 // pred_check_branch
          %489 = sbr.rel (%p487) target = $region16
        $region15: #{bert_layer_forward.1} parent=11 // pred_region
          _
        $region16: #{bert_layer_forward.1} parent=11 // pred_fallthru
          _
        // Predicated region
        $region17: #{bert_layer_forward.1} parent=11 // pred_check
          %p490 = pneg %p126
        $region18: #{bert_layer_forward.1} parent=11 // pred_check_branch
          %492 = sbr.rel (%p490) target = $region20
        $region19: #{bert_layer_forward.1} parent=11 // pred_region
          _
        $region20: #{bert_layer_forward.1} parent=11 // pred_fallthru
          _
        // Predicated region
        $region21: #{bert_layer_forward.1} parent=11 // pred_check
          %p493 = pneg %p147
        $region22: #{bert_layer_forward.1} parent=11 // pred_check_branch
          %495 = sbr.rel (%p493) target = $region24
        $region23: #{bert_layer_forward.1} parent=11 // pred_region
          _
        $region24: #{bert_layer_forward.1} parent=11 // pred_fallthru
          _
        // Predicated region
        $region25: #{bert_layer_forward.1} parent=11 // pred_check
          %p496 = pneg %p168
        $region26: #{bert_layer_forward.1} parent=11 // pred_check_branch
          %498 = sbr.rel (%p496) target = $region28
        $region27: #{bert_layer_forward.1} parent=11 // pred_region
          _
        $region28: #{bert_layer_forward.1} parent=11 // pred_fallthru
          _
        // Predicated region
        $region29: #{bert_layer_forward.1} parent=11 // pred_check
          %p499 = pneg %p189
        $region30: #{bert_layer_forward.1} parent=11 // pred_check_branch
          %501 = sbr.rel (%p499) target = $region32
        $region31: #{bert_layer_forward.1} parent=11 // pred_region
          _
        $region32: #{bert_layer_forward.1} parent=11 // pred_fallthru
          _
        // Predicated region
        $region33: #{bert_layer_forward.1} parent=11 // pred_check
          %p502 = pneg %p210
        $region34: #{bert_layer_forward.1} parent=11 // pred_check_branch
          %504 = sbr.rel (%p502) target = $region36
        $region35: #{bert_layer_forward.1} parent=11 // pred_region
          _
        $region36: #{bert_layer_forward.1} parent=11 // pred_fallthru
          _
        // Predicated region
        $region37: #{bert_layer_forward.1} parent=11 // pred_check
          %p505 = pneg %p231
        $region38: #{bert_layer_forward.1} parent=11 // pred_check_branch
          %507 = sbr.rel (%p505) target = $region40
        $region39: #{bert_layer_forward.1} parent=11 // pred_region
          _
        $region40: #{bert_layer_forward.1} parent=11 // pred_fallthru
          _
        // Predicated region
        $region41: #{bert_layer_forward.1} parent=11 // pred_check
          %p508 = pneg %p252
        $region42: #{bert_layer_forward.1} parent=11 // pred_check_branch
          %510 = sbr.rel (%p508) target = $region44
        $region43: #{bert_layer_forward.1} parent=11 // pred_region
          _
        $region44: #{bert_layer_forward.1} parent=11 // pred_fallthru
          _
        // Predicated region
        $region45: #{bert_layer_forward.1} parent=11 // pred_check
          %p511 = pneg %p273
        $region46: #{bert_layer_forward.1} parent=11 // pred_check_branch
          %513 = sbr.rel (%p511) target = $region48
        $region47: #{bert_layer_forward.1} parent=11 // pred_region
          _
        $region48: #{bert_layer_forward.1} parent=11 // pred_fallthru
          _
        // Predicated region
        $region49: #{bert_layer_forward.1} parent=11 // pred_check
          %p514 = pneg %p294
        $region50: #{bert_layer_forward.1} parent=11 // pred_check_branch
          %516 = sbr.rel (%p514) target = $region52
        $region51: #{bert_layer_forward.1} parent=11 // pred_region
          _
        $region52: #{bert_layer_forward.1} parent=11 // pred_fallthru
          _
        // Predicated region
        $region53: #{bert_layer_forward.1} parent=11 // pred_check
          %p517 = pneg %p315
        $region54: #{bert_layer_forward.1} parent=11 // pred_check_branch
          %519 = sbr.rel (%p517) target = $region56
        $region55: #{bert_layer_forward.1} parent=11 // pred_region
          _
        $region56: #{bert_layer_forward.1} parent=11 // pred_fallthru
          _
        // Predicated region
        $region57: #{bert_layer_forward.1} parent=11 // pred_check
          %p520 = pneg %p336
        $region58: #{bert_layer_forward.1} parent=11 // pred_check_branch
          %522 = sbr.rel (%p520) target = $region60
        $region59: #{bert_layer_forward.1} parent=11 // pred_region
          _
        $region60: #{bert_layer_forward.1} parent=11 // pred_fallthru
          _
        // Predicated region
        $region61: #{bert_layer_forward.1} parent=11 // pred_check
          %p523 = pneg %p357
        $region62: #{bert_layer_forward.1} parent=11 // pred_check_branch
          %525 = sbr.rel (%p523) target = $region64
        $region63: #{bert_layer_forward.1} parent=11 // pred_region
          _
        $region64: #{bert_layer_forward.1} parent=11 // pred_fallthru
          _
        // Predicated region
        $region65: #{bert_layer_forward.1} parent=11 // pred_check
          %p526 = pneg %p378
        $region66: #{bert_layer_forward.1} parent=11 // pred_check_branch
          %528 = sbr.rel (%p526) target = $region68
        $region67: #{bert_layer_forward.1} parent=11 // pred_region
          _
        $region68: #{bert_layer_forward.1} parent=11 // pred_fallthru
          _
        // Predicated region
        $region69: #{bert_layer_forward.1} parent=11 // pred_check
          %p529 = pneg %p399
        $region70: #{bert_layer_forward.1} parent=11 // pred_check_branch
          %531 = sbr.rel (%p529) target = $region72
        $region71: #{bert_layer_forward.1} parent=11 // pred_region
          _
        $region72: #{bert_layer_forward.1} parent=11 // pred_fallthru
          _
        // Predicated region
        $region73: #{bert_layer_forward.1} parent=11 // pred_check
          %p532 = pneg %p420
        $region74: #{bert_layer_forward.1} parent=11 // pred_check_branch
          %534 = sbr.rel (%p532) target = $region76
        $region75: #{bert_layer_forward.1} parent=11 // pred_region
          _
        $region76: #{bert_layer_forward.1} parent=11 // pred_fallthru
          _
      $region12: #{bert_layer_forward.1} parent=5 // pred_fallthru
        _
      %p535 = scmp.lt.s32.totalorder %s32, 2
      // Predicated region
      $region77: #{bert_layer_forward.1} parent=5 // pred_check
        %p536 = pneg %p535
      $region78: #{bert_layer_forward.1} parent=5 // pred_check_branch
        %538 = sbr.rel (%p536) target = $region80
      $region79: #{bert_layer_forward.1} parent=5 // pred_region
        // Predicated region
        $region81: #{bert_layer_forward.1} parent=79 // pred_check
          %p539 = pneg %p52
        $region82: #{bert_layer_forward.1} parent=79 // pred_check_branch
          %541 = sbr.rel (%p539) target = $region84
        $region83: #{bert_layer_forward.1} parent=79 // pred_region
          %p542 = scmp.lt.s32.totalorder %s32, 1
          %s543 = scalar_select %p542, %s32, 1
          %s544 = smul.addr %s543, 8
          %s545 = scalar_lea.vmem %s0, %s544
        $region84: #{bert_layer_forward.1} parent=79 // pred_fallthru
          _
        // Predicated region
        $region85: #{bert_layer_forward.1} parent=79 // pred_check
          %p546 = pneg %p78
        $region86: #{bert_layer_forward.1} parent=79 // pred_check_branch
          %548 = sbr.rel (%p546) target = $region88
        $region87: #{bert_layer_forward.1} parent=79 // pred_region
          %p549 = scmp.lt.s32.totalorder %s32, 1
          %s550 = scalar_select %p549, %s32, 1
          %s551 = scalar_lea.vmem %s1, %s550
        $region88: #{bert_layer_forward.1} parent=79 // pred_fallthru
          _
      $region80: #{bert_layer_forward.1} parent=5 // pred_fallthru
        _
      %p552 = scmp.le.s32.totalorder 1, %s32
      %p553 = scmp.lt.s32.totalorder %s32, 3
      %p554 = pnand %p552, %p553
      %p555 = pneg %p554
      // Predicated region
      $region89: #{bert_layer_forward.1} parent=5 // pred_check
        _
      $region90: #{bert_layer_forward.1} parent=5 // pred_check_branch
        %557 = sbr.rel (%p554) target = $region92
      $region91: #{bert_layer_forward.1} parent=5 // pred_region
        %s558 = ssub.s32 %s32, 1
        %p559 = scmp.lt.s32.totalorder %s37, 1
        %s560 = scalar_select %p559, %s37, 1
        %s561 = smul.addr %s560, 8
        %s562 = scalar_lea.vmem %s0, %s561
        %p563 = pneg %p58
        %p564 = pneg %p55
        %p565 = scmp.lt.s32.totalorder %s37, 1
        %s566 = scalar_select %p565, %s37, 1
        %s567 = scalar_lea.vmem %s1, %s566
        %p568 = pneg %p84
        %p569 = pneg %p81
        %p570 = pneg %p105
        %p571 = pneg %p102
        %p572 = pneg %p126
        %p573 = pneg %p123
        %p574 = pneg %p147
        %p575 = pneg %p144
        %p576 = pneg %p168
        %p577 = pneg %p165
        %p578 = pneg %p189
        %p579 = pneg %p186
        %p580 = pneg %p210
        %p581 = pneg %p207
        %p582 = pneg %p231
        %p583 = pneg %p228
        %p584 = pneg %p252
        %p585 = pneg %p249
        %p586 = pneg %p273
        %p587 = pneg %p270
        %p588 = pneg %p294
        %p589 = pneg %p291
        %p590 = pneg %p315
        %p591 = pneg %p312
        %p592 = pneg %p336
        %p593 = pneg %p333
        %p594 = pneg %p357
        %p595 = pneg %p354
        %p596 = pneg %p378
        %p597 = pneg %p375
        %p598 = pneg %p399
        %p599 = pneg %p396
        %p600 = pneg %p420
        %p601 = pneg %p417
        %p602 = pneg %p446
        %p603 = pneg %p443
        %s604 = sand.u32 %s433, 1
        %s605 = scalar_lea.sflag [#allocation3], %s604
        %s606 = sand.u32 %s433, 1
        %s607 = smul.addr %s606, 8
        %s608 = scalar_lea.vmem [#allocation2], %s607
        %p609 = pneg %p472
        %p610 = pneg %p469
        %s611 = sand.u32 %s459, 1
        %s612 = scalar_lea.sflag [#allocation5], %s611
        %s613 = sand.u32 %s459, 1
        %s614 = scalar_lea.vmem [#allocation4], %s613
        %p615 = scmp.lt.s32.totalorder %s37, 1
        %s616 = scalar_select %p615, %s37, 1
        %s617 = smul.addr %s616, 8
        %s618 = scalar_lea.vmem %s0, %s617
        %p619 = scmp.lt.s32.totalorder %s37, 1
        %s620 = scalar_select %p619, %s37, 1
        %s621 = scalar_lea.vmem %s1, %s620
        %v622 = vld [vmem:[%s618] sm:$0xff]
        %v623 = vld [vmem:[%s621] sm:$0x1]
        %v624 = vld [vmem:[%s14] sm:$0x1]
        %v625 = vld [vmem:[%s15] sm:$0x1]
        %vm626 = vcmask 261120
        %v627 = vsel %vm626, %v622, 0.0
        %628 = vadd.xlane.f32.xlu0 %v627
        %v629 = vpop.xlane.xlu0 %628
        %v630 = vrcp.pop 32.0
        %v631 = vmul.f32 %v629, %v630
        %v632 = vsub.f32 %v622, %v631
        %v633 = vmul.f32 %v632, %v632
        %v634 = vsel %vm626, %v633, 0.0
        %635 = vadd.xlane.f32.xlu0 %v634
        %v636 = vpop.xlane.xlu0 %635
        %v637 = vmul.f32 %v636, %v630
        %v638 = vadd.f32 %v637, 1e-12
        %v639 = vrsqrt.pop %v638
        %v640 = vmul.f32 %v632, %v639
        %v642 = vlaneseq
        %v643 = vshrl.u32 %v642, 7
        %v644 = vsub.s32 0, %v643
        %v645 = vrot.slane %v624, %v644
        %v647 = vmul.f32 %v640, %v645
        %v649 = vlaneseq
        %v650 = vshrl.u32 %v649, 7
        %v651 = vsub.s32 0, %v650
        %v652 = vrot.slane %v625, %v651
        %v654 = vadd.f32 %v647, %v652
        %v655 = vld [vmem:[%s2] sm:$0xff]
        %v656 = vld [vmem:[%s2 + $0x8] sm:$0xff]
        %v657 = vld [vmem:[%s2 + $0x10] sm:$0xff]
        %v658 = vld [vmem:[%s2 + $0x18] sm:$0xff]
        %v659 = vld [vmem:[%s3] sm:$0x1]
        %v661 = vlaneseq
        %v662 = vshrl.u32 %v661, 7
        %v663 = vsub.s32 0, %v662
        %v664 = vrot.slane %v659, %v663
        %v667 = vsel %vm626, %v654, 0
        %669 = vmatprep.subr.mxu0 0.0
        %670 = vmatpush1.msra.mxu0 %v655
        %671 = vmatprep.subr.mxu0 0.0
        %672 = vmatpush1.msra.mxu0 %v656
        %673 = vmatprep.subr.mxu0 0.0
        %674 = vmatpush1.msra.mxu0 %v657
        %675 = vmatprep.subr.mxu0 0.0
        %676 = vmatpush1.msra.mxu0 %v658
        %677 = vmatprep.subr.mxu0 0.0
        %678 = vmatpush1.msra.mxu0 0.0
        %679 = vmatprep.subr.mxu0 0.0
        %680 = vmatpush1.msra.mxu0 0.0
        %681 = vmatprep.subr.mxu0 0.0
        %682 = vmatpush1.msra.mxu0 0.0
        %683 = vmatprep.subr.mxu0 0.0
        %684 = vmatpush1.msra.mxu0 0.0
        %685 = vmatprep.subr.mxu0 0.0
        %686 = vmatpush1.msra.mxu0 0.0
        %687 = vmatprep.subr.mxu0 0.0
        %688 = vmatpush1.msra.mxu0 0.0
        %689 = vmatprep.subr.mxu0 0.0
        %690 = vmatpush1.msra.mxu0 0.0
        %691 = vmatprep.subr.mxu0 0.0
        %692 = vmatpush1.msra.mxu0 0.0
        %693 = vmatprep.subr.mxu0 0.0
        %694 = vmatpush1.msra.mxu0 0.0
        %695 = vmatprep.subr.mxu0 0.0
        %696 = vmatpush1.msra.mxu0 0.0
        %697 = vmatprep.subr.mxu0 0.0
        %698 = vmatpush1.msra.mxu0 0.0
        %699 = vmatprep.subr.mxu0 0.0
        %700 = vmatpush1.msra.mxu0 0.0
        %701 = vmatprep.subr.mxu0 0.0
        %702 = vmatpush1.msra.mxu0 0.0
        %703 = vmatprep.subr.mxu0 0.0
        %704 = vmatpush1.msra.mxu0 0.0
        %705 = vmatprep.subr.mxu0 0.0
        %706 = vmatpush1.msra.mxu0 0.0
        %707 = vmatprep.subr.mxu0 0.0
        %708 = vmatpush1.msra.mxu0 0.0
        %709 = vmatprep.subr.mxu0 0.0
        %710 = vmatpush1.msra.mxu0 0.0
        %711 = vmatprep.subr.mxu0 0.0
        %712 = vmatpush1.msra.mxu0 0.0
        %713 = vmatprep.subr.mxu0 0.0
        %714 = vmatpush1.msra.mxu0 0.0
        %715 = vmatprep.subr.mxu0 0.0
        %716 = vmatpush1.msra.mxu0 0.0
        %717 = vmatprep.subr.mxu0 0.0
        %718 = vmatpush1.msra.mxu0 0.0
        %719 = vmatprep.subr.mxu0 0.0
        %720 = vmatpush1.msra.mxu0 0.0
        %721 = vmatprep.subr.mxu0 0.0
        %722 = vmatpush1.msra.mxu0 0.0
        %723 = vmatprep.subr.mxu0 0.0
        %724 = vmatpush1.msra.mxu0 0.0
        %725 = vmatprep.subr.mxu0 0.0
        %726 = vmatpush1.msra.mxu0 0.0
        %727 = vmatprep.subr.mxu0 0.0
        %728 = vmatpush1.msra.mxu0 0.0
        %729 = vmatprep.subr.mxu0 0.0
        %730 = vmatpush1.msra.mxu0 0.0
        %731 = vmatprep.subr.mxu0 0.0
        %732 = vmatpush1.msra.mxu0 0.0
        %733 = vmatprep.mubr.f32.mxu0 0.0
        %734 = vmatmul.mubr.f32.gmra.mrb[0].mxu0 %v667
        %v735 = vpop.f32.mrb[0].mxu0
        %v736 = vadd.f32 %v664, %v735
        %v737 = vpop.f32.mrb[0].mxu0
        %738 = vdwg.mxu0
        %v739 = vld [vmem:[%s4] sm:$0xff]
        %v740 = vld [vmem:[%s4 + $0x8] sm:$0xff]
        %v741 = vld [vmem:[%s4 + $0x10] sm:$0xff]
        %v742 = vld [vmem:[%s4 + $0x18] sm:$0xff]
        %v743 = vmul.f32 %v736, 0.25
        %v745 = vlaneseq
        %v746 = vshrl.u32 %v745, 7
        %v747 = vsub.s32 0, %v746
        %v748 = vrot.slane %v623, %v747
        %751 = vrot.lane.b32.xlu0 %v736, 96
        %v752 = vpop.permute.xlu0 %751
        %vm753 = vcmask 130048
        %v755 = vsel %vm753, %v743, 0
        %v757 = vsel %vm753, %v752, 0
        %759 = vmatprep.subr.mxu0 0.0
        %760 = vmatpush1.xpose.msra.mxu0 %v757
        %761 = vmatprep.subr.mxu0 0.0
        %762 = vmatpush1.xpose.msra.mxu0 0.0
        %763 = vmatprep.subr.mxu0 0.0
        %764 = vmatpush1.xpose.msra.mxu0 0.0
        %765 = vmatprep.subr.mxu0 0.0
        %766 = vmatpush1.xpose.msra.mxu0 0.0
        %767 = vmatprep.subr.mxu0 0.0
        %768 = vmatpush1.xpose.msra.mxu0 0.0
        %769 = vmatprep.subr.mxu0 0.0
        %770 = vmatpush1.xpose.msra.mxu0 0.0
        %771 = vmatprep.subr.mxu0 0.0
        %772 = vmatpush1.xpose.msra.mxu0 0.0
        %773 = vmatprep.subr.mxu0 0.0
        %774 = vmatpush1.xpose.msra.mxu0 0.0
        %775 = vmatprep.subr.mxu0 0.0
        %776 = vmatpush1.xpose.msra.mxu0 0.0
        %777 = vmatprep.subr.mxu0 0.0
        %778 = vmatpush1.xpose.msra.mxu0 0.0
        %779 = vmatprep.subr.mxu0 0.0
        %780 = vmatpush1.xpose.msra.mxu0 0.0
        %781 = vmatprep.subr.mxu0 0.0
        %782 = vmatpush1.xpose.msra.mxu0 0.0
        %783 = vmatprep.subr.mxu0 0.0
        %784 = vmatpush1.xpose.msra.mxu0 0.0
        %785 = vmatprep.subr.mxu0 0.0
        %786 = vmatpush1.xpose.msra.mxu0 0.0
        %787 = vmatprep.subr.mxu0 0.0
        %788 = vmatpush1.xpose.msra.mxu0 0.0
        %789 = vmatprep.subr.mxu0 0.0
        %790 = vmatpush1.xpose.msra.mxu0 0.0
        %791 = vmatprep.subr.mxu0 0.0
        %792 = vmatpush1.xpose.msra.mxu0 0.0
        %793 = vmatprep.subr.mxu0 0.0
        %794 = vmatpush1.xpose.msra.mxu0 0.0
        %795 = vmatprep.subr.mxu0 0.0
        %796 = vmatpush1.xpose.msra.mxu0 0.0
        %797 = vmatprep.subr.mxu0 0.0
        %798 = vmatpush1.xpose.msra.mxu0 0.0
        %799 = vmatprep.subr.mxu0 0.0
        %800 = vmatpush1.xpose.msra.mxu0 0.0
        %801 = vmatprep.subr.mxu0 0.0
        %802 = vmatpush1.xpose.msra.mxu0 0.0
        %803 = vmatprep.subr.mxu0 0.0
        %804 = vmatpush1.xpose.msra.mxu0 0.0
        %805 = vmatprep.subr.mxu0 0.0
        %806 = vmatpush1.xpose.msra.mxu0 0.0
        %807 = vmatprep.subr.mxu0 0.0
        %808 = vmatpush1.xpose.msra.mxu0 0.0
        %809 = vmatprep.subr.mxu0 0.0
        %810 = vmatpush1.xpose.msra.mxu0 0.0
        %811 = vmatprep.subr.mxu0 0.0
        %812 = vmatpush1.xpose.msra.mxu0 0.0
        %813 = vmatprep.subr.mxu0 0.0
        %814 = vmatpush1.xpose.msra.mxu0 0.0
        %815 = vmatprep.subr.mxu0 0.0
        %816 = vmatpush1.xpose.msra.mxu0 0.0
        %817 = vmatprep.subr.mxu0 0.0
        %818 = vmatpush1.xpose.msra.mxu0 0.0
        %819 = vmatprep.subr.mxu0 0.0
        %820 = vmatpush1.xpose.msra.mxu0 0.0
        %821 = vmatprep.subr.mxu0 0.0
        %822 = vmatpush1.xpose.msra.mxu0 0.0
        %823 = vmatprep.mubr.f32.mxu0 0.0
        %824 = vmatmul.mubr.f32.gmra.mrb[0].mxu0 %v755
        %v825 = vpop.f32.mrb[0].mxu0
        %v826 = vadd.f32 %v748, %v825
        %v827 = vpop.f32.mrb[0].mxu0
        %828 = vdwg.mxu0
        %vm829 = vcmask 64512
        %v830 = vsel %vm829, %v826, -inf
        %831 = vmax.xlane.f32.xlu0 %v830
        %v832 = vpop.xlane.xlu0 %831
        %v833 = vsub.f32 %v826, %v832
        %v834 = vmul.f32 %v833, 1.442695
        %v835 = vpow.pop %v834
        %v836 = vsel %vm829, %v835, 0.0
        %837 = vadd.xlane.f32.xlu0 %v836
        %v838 = vpop.xlane.xlu0 %837
        %v839 = vrcp.pop %v838
        %v840 = vmul.f32 %v835, %v839
        %841 = vrot.lane.b32.xlu0 %v736, 64
        %v842 = vpop.permute.xlu0 %841
        %v845 = vsel %vm829, %v840, 0
        %847 = vmatprep.subr.mxu0 0.0
        %848 = vmatpush1.msra.mxu0 %v842
        %849 = vmatprep.subr.mxu0 0.0
        %850 = vmatpush1.msra.mxu0 0.0
        %851 = vmatprep.subr.mxu0 0.0
        %852 = vmatpush1.msra.mxu0 0.0
        %853 = vmatprep.subr.mxu0 0.0
        %854 = vmatpush1.msra.mxu0 0.0
        %855 = vmatprep.subr.mxu0 0.0
        %856 = vmatpush1.msra.mxu0 0.0
        %857 = vmatprep.subr.mxu0 0.0
        %858 = vmatpush1.msra.mxu0 0.0
        %859 = vmatprep.subr.mxu0 0.0
        %860 = vmatpush1.msra.mxu0 0.0
        %861 = vmatprep.subr.mxu0 0.0
        %862 = vmatpush1.msra.mxu0 0.0
        %863 = vmatprep.subr.mxu0 0.0
        %864 = vmatpush1.msra.mxu0 0.0
        %865 = vmatprep.subr.mxu0 0.0
        %866 = vmatpush1.msra.mxu0 0.0
        %867 = vmatprep.subr.mxu0 0.0
        %868 = vmatpush1.msra.mxu0 0.0
        %869 = vmatprep.subr.mxu0 0.0
        %870 = vmatpush1.msra.mxu0 0.0
        %871 = vmatprep.subr.mxu0 0.0
        %872 = vmatpush1.msra.mxu0 0.0
        %873 = vmatprep.subr.mxu0 0.0
        %874 = vmatpush1.msra.mxu0 0.0
        %875 = vmatprep.subr.mxu0 0.0
        %876 = vmatpush1.msra.mxu0 0.0
        %877 = vmatprep.subr.mxu0 0.0
        %878 = vmatpush1.msra.mxu0 0.0
        %879 = vmatprep.subr.mxu0 0.0
        %880 = vmatpush1.msra.mxu0 0.0
        %881 = vmatprep.subr.mxu0 0.0
        %882 = vmatpush1.msra.mxu0 0.0
        %883 = vmatprep.subr.mxu0 0.0
        %884 = vmatpush1.msra.mxu0 0.0
        %885 = vmatprep.subr.mxu0 0.0
        %886 = vmatpush1.msra.mxu0 0.0
        %887 = vmatprep.subr.mxu0 0.0
        %888 = vmatpush1.msra.mxu0 0.0
        %889 = vmatprep.subr.mxu0 0.0
        %890 = vmatpush1.msra.mxu0 0.0
        %891 = vmatprep.subr.mxu0 0.0
        %892 = vmatpush1.msra.mxu0 0.0
        %893 = vmatprep.subr.mxu0 0.0
        %894 = vmatpush1.msra.mxu0 0.0
        %895 = vmatprep.subr.mxu0 0.0
        %896 = vmatpush1.msra.mxu0 0.0
        %897 = vmatprep.subr.mxu0 0.0
        %898 = vmatpush1.msra.mxu0 0.0
        %899 = vmatprep.subr.mxu0 0.0
        %900 = vmatpush1.msra.mxu0 0.0
        %901 = vmatprep.subr.mxu0 0.0
        %902 = vmatpush1.msra.mxu0 0.0
        %903 = vmatprep.subr.mxu0 0.0
        %904 = vmatpush1.msra.mxu0 0.0
        %905 = vmatprep.subr.mxu0 0.0
        %906 = vmatpush1.msra.mxu0 0.0
        %907 = vmatprep.subr.mxu0 0.0
        %908 = vmatpush1.msra.mxu0 0.0
        %909 = vmatprep.subr.mxu0 0.0
        %910 = vmatpush1.msra.mxu0 0.0
        %911 = vmatprep.mubr.f32.mxu0 0.0
        %912 = vmatmul.mubr.f32.gmra.mrb[0].mxu0 %v845
        %v913 = vpop.f32.mrb[0].mxu0
        %v914 = vadd.f32 0.0, %v913
        %v915 = vpop.f32.mrb[0].mxu0
        %916 = vdwg.mxu0
        %917 = vrot.lane.b32.xlu0 %v743, 112
        %v918 = vpop.permute.xlu0 %917
        %919 = vrot.lane.b32.xlu0 %v736, 80
        %v920 = vpop.permute.xlu0 %919
        %v921 = vsel %vm753, %v918, 0
        %v923 = vsel %vm753, %v920, 0
        %925 = vmatprep.subr.mxu0 0.0
        %926 = vmatpush1.xpose.msra.mxu0 %v923
        %927 = vmatprep.subr.mxu0 0.0
        %928 = vmatpush1.xpose.msra.mxu0 0.0
        %929 = vmatprep.subr.mxu0 0.0
        %930 = vmatpush1.xpose.msra.mxu0 0.0
        %931 = vmatprep.subr.mxu0 0.0
        %932 = vmatpush1.xpose.msra.mxu0 0.0
        %933 = vmatprep.subr.mxu0 0.0
        %934 = vmatpush1.xpose.msra.mxu0 0.0
        %935 = vmatprep.subr.mxu0 0.0
        %936 = vmatpush1.xpose.msra.mxu0 0.0
        %937 = vmatprep.subr.mxu0 0.0
        %938 = vmatpush1.xpose.msra.mxu0 0.0
        %939 = vmatprep.subr.mxu0 0.0
        %940 = vmatpush1.xpose.msra.mxu0 0.0
        %941 = vmatprep.subr.mxu0 0.0
        %942 = vmatpush1.xpose.msra.mxu0 0.0
        %943 = vmatprep.subr.mxu0 0.0
        %944 = vmatpush1.xpose.msra.mxu0 0.0
        %945 = vmatprep.subr.mxu0 0.0
        %946 = vmatpush1.xpose.msra.mxu0 0.0
        %947 = vmatprep.subr.mxu0 0.0
        %948 = vmatpush1.xpose.msra.mxu0 0.0
        %949 = vmatprep.subr.mxu0 0.0
        %950 = vmatpush1.xpose.msra.mxu0 0.0
        %951 = vmatprep.subr.mxu0 0.0
        %952 = vmatpush1.xpose.msra.mxu0 0.0
        %953 = vmatprep.subr.mxu0 0.0
        %954 = vmatpush1.xpose.msra.mxu0 0.0
        %955 = vmatprep.subr.mxu0 0.0
        %956 = vmatpush1.xpose.msra.mxu0 0.0
        %957 = vmatprep.subr.mxu0 0.0
        %958 = vmatpush1.xpose.msra.mxu0 0.0
        %959 = vmatprep.subr.mxu0 0.0
        %960 = vmatpush1.xpose.msra.mxu0 0.0
        %961 = vmatprep.subr.mxu0 0.0
        %962 = vmatpush1.xpose.msra.mxu0 0.0
        %963 = vmatprep.subr.mxu0 0.0
        %964 = vmatpush1.xpose.msra.mxu0 0.0
        %965 = vmatprep.subr.mxu0 0.0
        %966 = vmatpush1.xpose.msra.mxu0 0.0
        %967 = vmatprep.subr.mxu0 0.0
        %968 = vmatpush1.xpose.msra.mxu0 0.0
        %969 = vmatprep.subr.mxu0 0.0
        %970 = vmatpush1.xpose.msra.mxu0 0.0
        %971 = vmatprep.subr.mxu0 0.0
        %972 = vmatpush1.xpose.msra.mxu0 0.0
        %973 = vmatprep.subr.mxu0 0.0
        %974 = vmatpush1.xpose.msra.mxu0 0.0
        %975 = vmatprep.subr.mxu0 0.0
        %976 = vmatpush1.xpose.msra.mxu0 0.0
        %977 = vmatprep.subr.mxu0 0.0
        %978 = vmatpush1.xpose.msra.mxu0 0.0
        %979 = vmatprep.subr.mxu0 0.0
        %980 = vmatpush1.xpose.msra.mxu0 0.0
        %981 = vmatprep.subr.mxu0 0.0
        %982 = vmatpush1.xpose.msra.mxu0 0.0
        %983 = vmatprep.subr.mxu0 0.0
        %984 = vmatpush1.xpose.msra.mxu0 0.0
        %985 = vmatprep.subr.mxu0 0.0
        %986 = vmatpush1.xpose.msra.mxu0 0.0
        %987 = vmatprep.subr.mxu0 0.0
        %988 = vmatpush1.xpose.msra.mxu0 0.0
        %989 = vmatprep.mubr.f32.mxu0 0.0
        %990 = vmatmul.mubr.f32.gmra.mrb[0].mxu0 %v921
        %v991 = vpop.f32.mrb[0].mxu0
        %v992 = vadd.f32 %v748, %v991
        %v993 = vpop.f32.mrb[0].mxu0
        %994 = vdwg.mxu0
        %v995 = vsel %vm829, %v992, -inf
        %996 = vmax.xlane.f32.xlu0 %v995
        %v997 = vpop.xlane.xlu0 %996
        %v998 = vsub.f32 %v992, %v997
        %v999 = vmul.f32 %v998, 1.442695
        %v1000 = vpow.pop %v999
        %v1001 = vsel %vm829, %v1000, 0.0
        %1002 = vadd.xlane.f32.xlu0 %v1001
        %v1003 = vpop.xlane.xlu0 %1002
        %v1004 = vrcp.pop %v1003
        %v1005 = vmul.f32 %v1000, %v1004
        %1006 = vrot.lane.b32.xlu0 %v736, 48
        %v1007 = vpop.permute.xlu0 %1006
        %v1010 = vsel %vm829, %v1005, 0
        %1012 = vmatprep.subr.mxu0 0.0
        %1013 = vmatpush1.msra.mxu0 %v1007
        %1014 = vmatprep.subr.mxu0 0.0
        %1015 = vmatpush1.msra.mxu0 0.0
        %1016 = vmatprep.subr.mxu0 0.0
        %1017 = vmatpush1.msra.mxu0 0.0
        %1018 = vmatprep.subr.mxu0 0.0
        %1019 = vmatpush1.msra.mxu0 0.0
        %1020 = vmatprep.subr.mxu0 0.0
        %1021 = vmatpush1.msra.mxu0 0.0
        %1022 = vmatprep.subr.mxu0 0.0
        %1023 = vmatpush1.msra.mxu0 0.0
        %1024 = vmatprep.subr.mxu0 0.0
        %1025 = vmatpush1.msra.mxu0 0.0
        %1026 = vmatprep.subr.mxu0 0.0
        %1027 = vmatpush1.msra.mxu0 0.0
        %1028 = vmatprep.subr.mxu0 0.0
        %1029 = vmatpush1.msra.mxu0 0.0
        %1030 = vmatprep.subr.mxu0 0.0
        %1031 = vmatpush1.msra.mxu0 0.0
        %1032 = vmatprep.subr.mxu0 0.0
        %1033 = vmatpush1.msra.mxu0 0.0
        %1034 = vmatprep.subr.mxu0 0.0
        %1035 = vmatpush1.msra.mxu0 0.0
        %1036 = vmatprep.subr.mxu0 0.0
        %1037 = vmatpush1.msra.mxu0 0.0
        %1038 = vmatprep.subr.mxu0 0.0
        %1039 = vmatpush1.msra.mxu0 0.0
        %1040 = vmatprep.subr.mxu0 0.0
        %1041 = vmatpush1.msra.mxu0 0.0
        %1042 = vmatprep.subr.mxu0 0.0
        %1043 = vmatpush1.msra.mxu0 0.0
        %1044 = vmatprep.subr.mxu0 0.0
        %1045 = vmatpush1.msra.mxu0 0.0
        %1046 = vmatprep.subr.mxu0 0.0
        %1047 = vmatpush1.msra.mxu0 0.0
        %1048 = vmatprep.subr.mxu0 0.0
        %1049 = vmatpush1.msra.mxu0 0.0
        %1050 = vmatprep.subr.mxu0 0.0
        %1051 = vmatpush1.msra.mxu0 0.0
        %1052 = vmatprep.subr.mxu0 0.0
        %1053 = vmatpush1.msra.mxu0 0.0
        %1054 = vmatprep.subr.mxu0 0.0
        %1055 = vmatpush1.msra.mxu0 0.0
        %1056 = vmatprep.subr.mxu0 0.0
        %1057 = vmatpush1.msra.mxu0 0.0
        %1058 = vmatprep.subr.mxu0 0.0
        %1059 = vmatpush1.msra.mxu0 0.0
        %1060 = vmatprep.subr.mxu0 0.0
        %1061 = vmatpush1.msra.mxu0 0.0
        %1062 = vmatprep.subr.mxu0 0.0
        %1063 = vmatpush1.msra.mxu0 0.0
        %1064 = vmatprep.subr.mxu0 0.0
        %1065 = vmatpush1.msra.mxu0 0.0
        %1066 = vmatprep.subr.mxu0 0.0
        %1067 = vmatpush1.msra.mxu0 0.0
        %1068 = vmatprep.subr.mxu0 0.0
        %1069 = vmatpush1.msra.mxu0 0.0
        %1070 = vmatprep.subr.mxu0 0.0
        %1071 = vmatpush1.msra.mxu0 0.0
        %1072 = vmatprep.subr.mxu0 0.0
        %1073 = vmatpush1.msra.mxu0 0.0
        %1074 = vmatprep.subr.mxu0 0.0
        %1075 = vmatpush1.msra.mxu0 0.0
        %1076 = vmatprep.mubr.f32.mxu0 0.0
        %1077 = vmatmul.mubr.f32.gmra.mrb[0].mxu0 %v1010
        %v1078 = vpop.f32.mrb[0].mxu0
        %v1079 = vadd.f32 0.0, %v1078
        %v1080 = vpop.f32.mrb[0].mxu0
        %1081 = vdwg.mxu0
        %v1083 = vsel %vm753, %v1079, 0
        %1085 = vmatprep.subr.mxu0 0.0
        %1086 = vmatpush1.msra.mxu0 %v741
        %1087 = vmatprep.subr.mxu0 0.0
        %1088 = vmatpush1.msra.mxu0 %v742
        %1089 = vmatprep.subr.mxu0 0.0
        %1090 = vmatpush1.msra.mxu0 0.0
        %1091 = vmatprep.subr.mxu0 0.0
        %1092 = vmatpush1.msra.mxu0 0.0
        %1093 = vmatprep.subr.mxu0 0.0
        %1094 = vmatpush1.msra.mxu0 0.0
        %1095 = vmatprep.subr.mxu0 0.0
        %1096 = vmatpush1.msra.mxu0 0.0
        %1097 = vmatprep.subr.mxu0 0.0
        %1098 = vmatpush1.msra.mxu0 0.0
        %1099 = vmatprep.subr.mxu0 0.0
        %1100 = vmatpush1.msra.mxu0 0.0
        %1101 = vmatprep.subr.mxu0 0.0
        %1102 = vmatpush1.msra.mxu0 0.0
        %1103 = vmatprep.subr.mxu0 0.0
        %1104 = vmatpush1.msra.mxu0 0.0
        %1105 = vmatprep.subr.mxu0 0.0
        %1106 = vmatpush1.msra.mxu0 0.0
        %1107 = vmatprep.subr.mxu0 0.0
        %1108 = vmatpush1.msra.mxu0 0.0
        %1109 = vmatprep.subr.mxu0 0.0
        %1110 = vmatpush1.msra.mxu0 0.0
        %1111 = vmatprep.subr.mxu0 0.0
        %1112 = vmatpush1.msra.mxu0 0.0
        %1113 = vmatprep.subr.mxu0 0.0
        %1114 = vmatpush1.msra.mxu0 0.0
        %1115 = vmatprep.subr.mxu0 0.0
        %1116 = vmatpush1.msra.mxu0 0.0
        %1117 = vmatprep.subr.mxu0 0.0
        %1118 = vmatpush1.msra.mxu0 0.0
        %1119 = vmatprep.subr.mxu0 0.0
        %1120 = vmatpush1.msra.mxu0 0.0
        %1121 = vmatprep.subr.mxu0 0.0
        %1122 = vmatpush1.msra.mxu0 0.0
        %1123 = vmatprep.subr.mxu0 0.0
        %1124 = vmatpush1.msra.mxu0 0.0
        %1125 = vmatprep.subr.mxu0 0.0
        %1126 = vmatpush1.msra.mxu0 0.0
        %1127 = vmatprep.subr.mxu0 0.0
        %1128 = vmatpush1.msra.mxu0 0.0
        %1129 = vmatprep.subr.mxu0 0.0
        %1130 = vmatpush1.msra.mxu0 0.0
        %1131 = vmatprep.subr.mxu0 0.0
        %1132 = vmatpush1.msra.mxu0 0.0
        %1133 = vmatprep.subr.mxu0 0.0
        %1134 = vmatpush1.msra.mxu0 0.0
        %1135 = vmatprep.subr.mxu0 0.0
        %1136 = vmatpush1.msra.mxu0 0.0
        %1137 = vmatprep.subr.mxu0 0.0
        %1138 = vmatpush1.msra.mxu0 0.0
        %1139 = vmatprep.subr.mxu0 0.0
        %1140 = vmatpush1.msra.mxu0 0.0
        %1141 = vmatprep.subr.mxu0 0.0
        %1142 = vmatpush1.msra.mxu0 0.0
        %1143 = vmatprep.subr.mxu0 0.0
        %1144 = vmatpush1.msra.mxu0 0.0
        %1145 = vmatprep.subr.mxu0 0.0
        %1146 = vmatpush1.msra.mxu0 0.0
        %1147 = vmatprep.subr.mxu0 0.0
        %1148 = vmatpush1.msra.mxu0 0.0
        %1149 = vmatprep.mubr.f32.mxu0 0.0
        %1150 = vmatmul.mubr.f32.gmra.mrb[0].mxu0 %v1083
        %v1151 = vpop.f32.mrb[0].mxu0
        %v1152 = vadd.f32 0.0, %v1151
        %v1153 = vpop.f32.mrb[0].mxu0
        %1154 = vdwg.mxu0
        %v1156 = vsel %vm753, %v914, 0
        %1158 = vmatprep.subr.mxu0 0.0
        %1159 = vmatpush1.msra.mxu0 %v739
        %1160 = vmatprep.subr.mxu0 0.0
        %1161 = vmatpush1.msra.mxu0 %v740
        %1162 = vmatprep.subr.mxu0 0.0
        %1163 = vmatpush1.msra.mxu0 0.0
        %1164 = vmatprep.subr.mxu0 0.0
        %1165 = vmatpush1.msra.mxu0 0.0
        %1166 = vmatprep.subr.mxu0 0.0
        %1167 = vmatpush1.msra.mxu0 0.0
        %1168 = vmatprep.subr.mxu0 0.0
        %1169 = vmatpush1.msra.mxu0 0.0
        %1170 = vmatprep.subr.mxu0 0.0
        %1171 = vmatpush1.msra.mxu0 0.0
        %1172 = vmatprep.subr.mxu0 0.0
        %1173 = vmatpush1.msra.mxu0 0.0
        %1174 = vmatprep.subr.mxu0 0.0
        %1175 = vmatpush1.msra.mxu0 0.0
        %1176 = vmatprep.subr.mxu0 0.0
        %1177 = vmatpush1.msra.mxu0 0.0
        %1178 = vmatprep.subr.mxu0 0.0
        %1179 = vmatpush1.msra.mxu0 0.0
        %1180 = vmatprep.subr.mxu0 0.0
        %1181 = vmatpush1.msra.mxu0 0.0
        %1182 = vmatprep.subr.mxu0 0.0
        %1183 = vmatpush1.msra.mxu0 0.0
        %1184 = vmatprep.subr.mxu0 0.0
        %1185 = vmatpush1.msra.mxu0 0.0
        %1186 = vmatprep.subr.mxu0 0.0
        %1187 = vmatpush1.msra.mxu0 0.0
        %1188 = vmatprep.subr.mxu0 0.0
        %1189 = vmatpush1.msra.mxu0 0.0
        %1190 = vmatprep.subr.mxu0 0.0
        %1191 = vmatpush1.msra.mxu0 0.0
        %1192 = vmatprep.subr.mxu0 0.0
        %1193 = vmatpush1.msra.mxu0 0.0
        %1194 = vmatprep.subr.mxu0 0.0
        %1195 = vmatpush1.msra.mxu0 0.0
        %1196 = vmatprep.subr.mxu0 0.0
        %1197 = vmatpush1.msra.mxu0 0.0
        %1198 = vmatprep.subr.mxu0 0.0
        %1199 = vmatpush1.msra.mxu0 0.0
        %1200 = vmatprep.subr.mxu0 0.0
        %1201 = vmatpush1.msra.mxu0 0.0
        %1202 = vmatprep.subr.mxu0 0.0
        %1203 = vmatpush1.msra.mxu0 0.0
        %1204 = vmatprep.subr.mxu0 0.0
        %1205 = vmatpush1.msra.mxu0 0.0
        %1206 = vmatprep.subr.mxu0 0.0
        %1207 = vmatpush1.msra.mxu0 0.0
        %1208 = vmatprep.subr.mxu0 0.0
        %1209 = vmatpush1.msra.mxu0 0.0
        %1210 = vmatprep.subr.mxu0 0.0
        %1211 = vmatpush1.msra.mxu0 0.0
        %1212 = vmatprep.subr.mxu0 0.0
        %1213 = vmatpush1.msra.mxu0 0.0
        %1214 = vmatprep.subr.mxu0 0.0
        %1215 = vmatpush1.msra.mxu0 0.0
        %1216 = vmatprep.subr.mxu0 0.0
        %1217 = vmatpush1.msra.mxu0 0.0
        %1218 = vmatprep.subr.mxu0 0.0
        %1219 = vmatpush1.msra.mxu0 0.0
        %1220 = vmatprep.subr.mxu0 0.0
        %1221 = vmatpush1.msra.mxu0 0.0
        %1222 = vmatprep.mubr.f32.mxu0 0.0
        %1223 = vmatmul.mubr.f32.gmra.mrb[0].mxu0 %v1156
        %v1224 = vpop.f32.mrb[0].mxu0
        %v1225 = vadd.f32 %v1152, %v1224
        %v1226 = vpop.f32.mrb[0].mxu0
        %1227 = vdwg.mxu0
        %v1228 = vld [vmem:[%s5] sm:$0x1]
        %v1230 = vlaneseq
        %v1231 = vshrl.u32 %v1230, 7
        %v1232 = vsub.s32 0, %v1231
        %v1233 = vrot.slane %v1228, %v1232
        %v1235 = vadd.f32 %v1225, %v1233
        %v1236 = vadd.f32 %v654, %v1235
        %v1237 = vld [vmem:[%s6] sm:$0x1]
        %v1238 = vld [vmem:[%s7] sm:$0x1]
        %v1239 = vsel %vm626, %v1236, 0.0
        %1240 = vadd.xlane.f32.xlu0 %v1239
        %v1241 = vpop.xlane.xlu0 %1240
        %v1242 = vmul.f32 %v1241, %v630
        %v1243 = vsub.f32 %v1236, %v1242
        %v1244 = vmul.f32 %v1243, %v1243
        %v1245 = vsel %vm626, %v1244, 0.0
        %1246 = vadd.xlane.f32.xlu0 %v1245
        %v1247 = vpop.xlane.xlu0 %1246
        %v1248 = vmul.f32 %v1247, %v630
        %v1249 = vadd.f32 %v1248, 1e-12
        %v1250 = vrsqrt.pop %v1249
        %v1251 = vmul.f32 %v1243, %v1250
        %v1253 = vlaneseq
        %v1254 = vshrl.u32 %v1253, 7
        %v1255 = vsub.s32 0, %v1254
        %v1256 = vrot.slane %v1237, %v1255
        %v1258 = vmul.f32 %v1251, %v1256
        %v1260 = vlaneseq
        %v1261 = vshrl.u32 %v1260, 7
        %v1262 = vsub.s32 0, %v1261
        %v1263 = vrot.slane %v1238, %v1262
        %v1265 = vadd.f32 %v1258, %v1263
        %v1266 = vld [vmem:[%s8] sm:$0xff]
        %v1267 = vld [vmem:[%s8 + $0x8] sm:$0xff]
        %v1268 = vld [vmem:[%s8 + $0x10] sm:$0xff]
        %v1269 = vld [vmem:[%s8 + $0x18] sm:$0xff]
        %v1270 = vld [vmem:[%s9] sm:$0x1]
        %v1272 = vlaneseq
        %v1273 = vshrl.u32 %v1272, 7
        %v1274 = vsub.s32 0, %v1273
        %v1275 = vrot.slane %v1270, %v1274
        %v1278 = vsel %vm626, %v1265, 0
        %1280 = vmatprep.subr.mxu0 0.0
        %1281 = vmatpush1.msra.mxu0 %v1266
        %1282 = vmatprep.subr.mxu0 0.0
        %1283 = vmatpush1.msra.mxu0 %v1267
        %1284 = vmatprep.subr.mxu0 0.0
        %1285 = vmatpush1.msra.mxu0 %v1268
        %1286 = vmatprep.subr.mxu0 0.0
        %1287 = vmatpush1.msra.mxu0 %v1269
        %1288 = vmatprep.subr.mxu0 0.0
        %1289 = vmatpush1.msra.mxu0 0.0
        %1290 = vmatprep.subr.mxu0 0.0
        %1291 = vmatpush1.msra.mxu0 0.0
        %1292 = vmatprep.subr.mxu0 0.0
        %1293 = vmatpush1.msra.mxu0 0.0
        %1294 = vmatprep.subr.mxu0 0.0
        %1295 = vmatpush1.msra.mxu0 0.0
        %1296 = vmatprep.subr.mxu0 0.0
        %1297 = vmatpush1.msra.mxu0 0.0
        %1298 = vmatprep.subr.mxu0 0.0
        %1299 = vmatpush1.msra.mxu0 0.0
        %1300 = vmatprep.subr.mxu0 0.0
        %1301 = vmatpush1.msra.mxu0 0.0
        %1302 = vmatprep.subr.mxu0 0.0
        %1303 = vmatpush1.msra.mxu0 0.0
        %1304 = vmatprep.subr.mxu0 0.0
        %1305 = vmatpush1.msra.mxu0 0.0
        %1306 = vmatprep.subr.mxu0 0.0
        %1307 = vmatpush1.msra.mxu0 0.0
        %1308 = vmatprep.subr.mxu0 0.0
        %1309 = vmatpush1.msra.mxu0 0.0
        %1310 = vmatprep.subr.mxu0 0.0
        %1311 = vmatpush1.msra.mxu0 0.0
        %1312 = vmatprep.subr.mxu0 0.0
        %1313 = vmatpush1.msra.mxu0 0.0
        %1314 = vmatprep.subr.mxu0 0.0
        %1315 = vmatpush1.msra.mxu0 0.0
        %1316 = vmatprep.subr.mxu0 0.0
        %1317 = vmatpush1.msra.mxu0 0.0
        %1318 = vmatprep.subr.mxu0 0.0
        %1319 = vmatpush1.msra.mxu0 0.0
        %1320 = vmatprep.subr.mxu0 0.0
        %1321 = vmatpush1.msra.mxu0 0.0
        %1322 = vmatprep.subr.mxu0 0.0
        %1323 = vmatpush1.msra.mxu0 0.0
        %1324 = vmatprep.subr.mxu0 0.0
        %1325 = vmatpush1.msra.mxu0 0.0
        %1326 = vmatprep.subr.mxu0 0.0
        %1327 = vmatpush1.msra.mxu0 0.0
        %1328 = vmatprep.subr.mxu0 0.0
        %1329 = vmatpush1.msra.mxu0 0.0
        %1330 = vmatprep.subr.mxu0 0.0
        %1331 = vmatpush1.msra.mxu0 0.0
        %1332 = vmatprep.subr.mxu0 0.0
        %1333 = vmatpush1.msra.mxu0 0.0
        %1334 = vmatprep.subr.mxu0 0.0
        %1335 = vmatpush1.msra.mxu0 0.0
        %1336 = vmatprep.subr.mxu0 0.0
        %1337 = vmatpush1.msra.mxu0 0.0
        %1338 = vmatprep.subr.mxu0 0.0
        %1339 = vmatpush1.msra.mxu0 0.0
        %1340 = vmatprep.subr.mxu0 0.0
        %1341 = vmatpush1.msra.mxu0 0.0
        %1342 = vmatprep.subr.mxu0 0.0
        %1343 = vmatpush1.msra.mxu0 0.0
        %1344 = vmatprep.mubr.f32.mxu0 0.0
        %1345 = vmatmul.mubr.f32.gmra.mrb[0].mxu0 %v1278
        %v1346 = vpop.f32.mrb[0].mxu0
        %v1347 = vadd.f32 %v1275, %v1346
        %v1348 = vpop.f32.mrb[0].mxu0
        %1349 = vdwg.mxu0
        %v1350 = vmul.f32 %v1347, %v1347
        %v1351 = vmul.f32 %v1347, %v1350
        %v1352 = vmul.f32 %v1351, 0.044715
        %v1353 = vadd.f32 %v1347, %v1352
        %v1354 = vmul.f32 %v1353, 0.7978846
        %v1355 = vtanh.pop %v1354
        %v1356 = vadd.f32 %v1355, 1.0
        %v1357 = vmul.f32 %v1356, 0.5
        %v1358 = vmul.f32 %v1347, %v1357
        %v1359 = vld [vmem:[%s10] sm:$0xff]
        %v1360 = vld [vmem:[%s10 + $0x8] sm:$0xff]
        %v1361 = vld [vmem:[%s10 + $0x10] sm:$0xff]
        %v1362 = vld [vmem:[%s10 + $0x18] sm:$0xff]
        %v1363 = vld [vmem:[%s10 + $0x20] sm:$0xff]
        %v1364 = vld [vmem:[%s10 + $0x28] sm:$0xff]
        %v1365 = vld [vmem:[%s10 + $0x30] sm:$0xff]
        %v1366 = vld [vmem:[%s10 + $0x38] sm:$0xff]
        %v1367 = vld [vmem:[%s11] sm:$0x1]
        %v1369 = vlaneseq
        %v1370 = vshrl.u32 %v1369, 7
        %v1371 = vsub.s32 0, %v1370
        %v1372 = vrot.slane %v1367, %v1371
        %vm1374 = vcmask 523264
        %v1376 = vsel %vm1374, %v1358, 0
        %1378 = vmatprep.subr.mxu0 0.0
        %1379 = vmatpush1.msra.mxu0 %v1359
        %1380 = vmatprep.subr.mxu0 0.0
        %1381 = vmatpush1.msra.mxu0 %v1360
        %1382 = vmatprep.subr.mxu0 0.0
        %1383 = vmatpush1.msra.mxu0 %v1361
        %1384 = vmatprep.subr.mxu0 0.0
        %1385 = vmatpush1.msra.mxu0 %v1362
        %1386 = vmatprep.subr.mxu0 0.0
        %1387 = vmatpush1.msra.mxu0 %v1363
        %1388 = vmatprep.subr.mxu0 0.0
        %1389 = vmatpush1.msra.mxu0 %v1364
        %1390 = vmatprep.subr.mxu0 0.0
        %1391 = vmatpush1.msra.mxu0 %v1365
        %1392 = vmatprep.subr.mxu0 0.0
        %1393 = vmatpush1.msra.mxu0 %v1366
        %1394 = vmatprep.subr.mxu0 0.0
        %1395 = vmatpush1.msra.mxu0 0.0
        %1396 = vmatprep.subr.mxu0 0.0
        %1397 = vmatpush1.msra.mxu0 0.0
        %1398 = vmatprep.subr.mxu0 0.0
        %1399 = vmatpush1.msra.mxu0 0.0
        %1400 = vmatprep.subr.mxu0 0.0
        %1401 = vmatpush1.msra.mxu0 0.0
        %1402 = vmatprep.subr.mxu0 0.0
        %1403 = vmatpush1.msra.mxu0 0.0
        %1404 = vmatprep.subr.mxu0 0.0
        %1405 = vmatpush1.msra.mxu0 0.0
        %1406 = vmatprep.subr.mxu0 0.0
        %1407 = vmatpush1.msra.mxu0 0.0
        %1408 = vmatprep.subr.mxu0 0.0
        %1409 = vmatpush1.msra.mxu0 0.0
        %1410 = vmatprep.subr.mxu0 0.0
        %1411 = vmatpush1.msra.mxu0 0.0
        %1412 = vmatprep.subr.mxu0 0.0
        %1413 = vmatpush1.msra.mxu0 0.0
        %1414 = vmatprep.subr.mxu0 0.0
        %1415 = vmatpush1.msra.mxu0 0.0
        %1416 = vmatprep.subr.mxu0 0.0
        %1417 = vmatpush1.msra.mxu0 0.0
        %1418 = vmatprep.subr.mxu0 0.0
        %1419 = vmatpush1.msra.mxu0 0.0
        %1420 = vmatprep.subr.mxu0 0.0
        %1421 = vmatpush1.msra.mxu0 0.0
        %1422 = vmatprep.subr.mxu0 0.0
        %1423 = vmatpush1.msra.mxu0 0.0
        %1424 = vmatprep.subr.mxu0 0.0
        %1425 = vmatpush1.msra.mxu0 0.0
        %1426 = vmatprep.subr.mxu0 0.0
        %1427 = vmatpush1.msra.mxu0 0.0
        %1428 = vmatprep.subr.mxu0 0.0
        %1429 = vmatpush1.msra.mxu0 0.0
        %1430 = vmatprep.subr.mxu0 0.0
        %1431 = vmatpush1.msra.mxu0 0.0
        %1432 = vmatprep.subr.mxu0 0.0
        %1433 = vmatpush1.msra.mxu0 0.0
        %1434 = vmatprep.subr.mxu0 0.0
        %1435 = vmatpush1.msra.mxu0 0.0
        %1436 = vmatprep.subr.mxu0 0.0
        %1437 = vmatpush1.msra.mxu0 0.0
        %1438 = vmatprep.subr.mxu0 0.0
        %1439 = vmatpush1.msra.mxu0 0.0
        %1440 = vmatprep.subr.mxu0 0.0
        %1441 = vmatpush1.msra.mxu0 0.0
        %1442 = vmatprep.mubr.f32.mxu0 0.0
        %1443 = vmatmul.mubr.f32.gmra.mrb[0].mxu0 %v1376
        %v1444 = vpop.f32.mrb[0].mxu0
        %v1445 = vadd.f32 %v1372, %v1444
        %v1446 = vpop.f32.mrb[0].mxu0
        %1447 = vdwg.mxu0
        %v1448 = vadd.f32 %v1265, %v1445
        %v1449 = vld [vmem:[%s12] sm:$0x1]
        %v1450 = vld [vmem:[%s13] sm:$0x1]
        %v1451 = vsel %vm626, %v1448, 0.0
        %1452 = vadd.xlane.f32.xlu0 %v1451
        %v1453 = vpop.xlane.xlu0 %1452
        %v1454 = vmul.f32 %v1453, %v630
        %v1455 = vsub.f32 %v1448, %v1454
        %v1456 = vmul.f32 %v1455, %v1455
        %v1457 = vsel %vm626, %v1456, 0.0
        %1458 = vadd.xlane.f32.xlu0 %v1457
        %v1459 = vpop.xlane.xlu0 %1458
        %v1460 = vmul.f32 %v1459, %v630
        %v1461 = vadd.f32 %v1460, 1e-12
        %v1462 = vrsqrt.pop %v1461
        %v1463 = vmul.f32 %v1455, %v1462
        %v1465 = vlaneseq
        %v1466 = vshrl.u32 %v1465, 7
        %v1467 = vsub.s32 0, %v1466
        %v1468 = vrot.slane %v1449, %v1467
        %v1470 = vmul.f32 %v1463, %v1468
        %v1472 = vlaneseq
        %v1473 = vshrl.u32 %v1472, 7
        %v1474 = vsub.s32 0, %v1473
        %v1475 = vrot.slane %v1450, %v1474
        %v1477 = vadd.f32 %v1470, %v1475
        %s1478 = scalar_lea.vmem %s2, 32
        %v1479 = vld [vmem:[%s1478] sm:$0xff]
        %v1480 = vld [vmem:[%s1478 + $0x8] sm:$0xff]
        %v1481 = vld [vmem:[%s1478 + $0x10] sm:$0xff]
        %v1482 = vld [vmem:[%s1478 + $0x18] sm:$0xff]
        %s1483 = scalar_lea.vmem %s3, 1
        %v1484 = vld [vmem:[%s1483] sm:$0x1]
        %v1486 = vlaneseq
        %v1487 = vshrl.u32 %v1486, 7
        %v1488 = vsub.s32 0, %v1487
        %v1489 = vrot.slane %v1484, %v1488
        %v1492 = vsel %vm626, %v1477, 0
        %1494 = vmatprep.subr.mxu0 0.0
        %1495 = vmatpush1.msra.mxu0 %v1479
        %1496 = vmatprep.subr.mxu0 0.0
        %1497 = vmatpush1.msra.mxu0 %v1480
        %1498 = vmatprep.subr.mxu0 0.0
        %1499 = vmatpush1.msra.mxu0 %v1481
        %1500 = vmatprep.subr.mxu0 0.0
        %1501 = vmatpush1.msra.mxu0 %v1482
        %1502 = vmatprep.subr.mxu0 0.0
        %1503 = vmatpush1.msra.mxu0 0.0
        %1504 = vmatprep.subr.mxu0 0.0
        %1505 = vmatpush1.msra.mxu0 0.0
        %1506 = vmatprep.subr.mxu0 0.0
        %1507 = vmatpush1.msra.mxu0 0.0
        %1508 = vmatprep.subr.mxu0 0.0
        %1509 = vmatpush1.msra.mxu0 0.0
        %1510 = vmatprep.subr.mxu0 0.0
        %1511 = vmatpush1.msra.mxu0 0.0
        %1512 = vmatprep.subr.mxu0 0.0
        %1513 = vmatpush1.msra.mxu0 0.0
        %1514 = vmatprep.subr.mxu0 0.0
        %1515 = vmatpush1.msra.mxu0 0.0
        %1516 = vmatprep.subr.mxu0 0.0
        %1517 = vmatpush1.msra.mxu0 0.0
        %1518 = vmatprep.subr.mxu0 0.0
        %1519 = vmatpush1.msra.mxu0 0.0
        %1520 = vmatprep.subr.mxu0 0.0
        %1521 = vmatpush1.msra.mxu0 0.0
        %1522 = vmatprep.subr.mxu0 0.0
        %1523 = vmatpush1.msra.mxu0 0.0
        %1524 = vmatprep.subr.mxu0 0.0
        %1525 = vmatpush1.msra.mxu0 0.0
        %1526 = vmatprep.subr.mxu0 0.0
        %1527 = vmatpush1.msra.mxu0 0.0
        %1528 = vmatprep.subr.mxu0 0.0
        %1529 = vmatpush1.msra.mxu0 0.0
        %1530 = vmatprep.subr.mxu0 0.0
        %1531 = vmatpush1.msra.mxu0 0.0
        %1532 = vmatprep.subr.mxu0 0.0
        %1533 = vmatpush1.msra.mxu0 0.0
        %1534 = vmatprep.subr.mxu0 0.0
        %1535 = vmatpush1.msra.mxu0 0.0
        %1536 = vmatprep.subr.mxu0 0.0
        %1537 = vmatpush1.msra.mxu0 0.0
        %1538 = vmatprep.subr.mxu0 0.0
        %1539 = vmatpush1.msra.mxu0 0.0
        %1540 = vmatprep.subr.mxu0 0.0
        %1541 = vmatpush1.msra.mxu0 0.0
        %1542 = vmatprep.subr.mxu0 0.0
        %1543 = vmatpush1.msra.mxu0 0.0
        %1544 = vmatprep.subr.mxu0 0.0
        %1545 = vmatpush1.msra.mxu0 0.0
        %1546 = vmatprep.subr.mxu0 0.0
        %1547 = vmatpush1.msra.mxu0 0.0
        %1548 = vmatprep.subr.mxu0 0.0
        %1549 = vmatpush1.msra.mxu0 0.0
        %1550 = vmatprep.subr.mxu0 0.0
        %1551 = vmatpush1.msra.mxu0 0.0
        %1552 = vmatprep.subr.mxu0 0.0
        %1553 = vmatpush1.msra.mxu0 0.0
        %1554 = vmatprep.subr.mxu0 0.0
        %1555 = vmatpush1.msra.mxu0 0.0
        %1556 = vmatprep.subr.mxu0 0.0
        %1557 = vmatpush1.msra.mxu0 0.0
        %1558 = vmatprep.mubr.f32.mxu0 0.0
        %1559 = vmatmul.mubr.f32.gmra.mrb[0].mxu0 %v1492
        %v1560 = vpop.f32.mrb[0].mxu0
        %v1561 = vadd.f32 %v1489, %v1560
        %v1562 = vpop.f32.mrb[0].mxu0
        %1563 = vdwg.mxu0
        %s1564 = scalar_lea.vmem %s4, 32
        %v1565 = vld [vmem:[%s1564] sm:$0xff]
        %v1566 = vld [vmem:[%s1564 + $0x8] sm:$0xff]
        %v1567 = vld [vmem:[%s1564 + $0x10] sm:$0xff]
        %v1568 = vld [vmem:[%s1564 + $0x18] sm:$0xff]
        %v1569 = vmul.f32 %v1561, 0.25
        %1571 = vrot.lane.b32.xlu0 %v1561, 96
        %v1572 = vpop.permute.xlu0 %1571
        %v1574 = vsel %vm753, %v1569, 0
        %v1576 = vsel %vm753, %v1572, 0
        %1578 = vmatprep.subr.mxu0 0.0
        %1579 = vmatpush1.xpose.msra.mxu0 %v1576
        %1580 = vmatprep.subr.mxu0 0.0
        %1581 = vmatpush1.xpose.msra.mxu0 0.0
        %1582 = vmatprep.subr.mxu0 0.0
        %1583 = vmatpush1.xpose.msra.mxu0 0.0
        %1584 = vmatprep.subr.mxu0 0.0
        %1585 = vmatpush1.xpose.msra.mxu0 0.0
        %1586 = vmatprep.subr.mxu0 0.0
        %1587 = vmatpush1.xpose.msra.mxu0 0.0
        %1588 = vmatprep.subr.mxu0 0.0
        %1589 = vmatpush1.xpose.msra.mxu0 0.0
        %1590 = vmatprep.subr.mxu0 0.0
        %1591 = vmatpush1.xpose.msra.mxu0 0.0
        %1592 = vmatprep.subr.mxu0 0.0
        %1593 = vmatpush1.xpose.msra.mxu0 0.0
        %1594 = vmatprep.subr.mxu0 0.0
        %1595 = vmatpush1.xpose.msra.mxu0 0.0
        %1596 = vmatprep.subr.mxu0 0.0
        %1597 = vmatpush1.xpose.msra.mxu0 0.0
        %1598 = vmatprep.subr.mxu0 0.0
        %1599 = vmatpush1.xpose.msra.mxu0 0.0
        %1600 = vmatprep.subr.mxu0 0.0
        %1601 = vmatpush1.xpose.msra.mxu0 0.0
        %1602 = vmatprep.subr.mxu0 0.0
        %1603 = vmatpush1.xpose.msra.mxu0 0.0
        %1604 = vmatprep.subr.mxu0 0.0
        %1605 = vmatpush1.xpose.msra.mxu0 0.0
        %1606 = vmatprep.subr.mxu0 0.0
        %1607 = vmatpush1.xpose.msra.mxu0 0.0
        %1608 = vmatprep.subr.mxu0 0.0
        %1609 = vmatpush1.xpose.msra.mxu0 0.0
        %1610 = vmatprep.subr.mxu0 0.0
        %1611 = vmatpush1.xpose.msra.mxu0 0.0
        %1612 = vmatprep.subr.mxu0 0.0
        %1613 = vmatpush1.xpose.msra.mxu0 0.0
        %1614 = vmatprep.subr.mxu0 0.0
        %1615 = vmatpush1.xpose.msra.mxu0 0.0
        %1616 = vmatprep.subr.mxu0 0.0
        %1617 = vmatpush1.xpose.msra.mxu0 0.0
        %1618 = vmatprep.subr.mxu0 0.0
        %1619 = vmatpush1.xpose.msra.mxu0 0.0
        %1620 = vmatprep.subr.mxu0 0.0
        %1621 = vmatpush1.xpose.msra.mxu0 0.0
        %1622 = vmatprep.subr.mxu0 0.0
        %1623 = vmatpush1.xpose.msra.mxu0 0.0
        %1624 = vmatprep.subr.mxu0 0.0
        %1625 = vmatpush1.xpose.msra.mxu0 0.0
        %1626 = vmatprep.subr.mxu0 0.0
        %1627 = vmatpush1.xpose.msra.mxu0 0.0
        %1628 = vmatprep.subr.mxu0 0.0
        %1629 = vmatpush1.xpose.msra.mxu0 0.0
        %1630 = vmatprep.subr.mxu0 0.0
        %1631 = vmatpush1.xpose.msra.mxu0 0.0
        %1632 = vmatprep.subr.mxu0 0.0
        %1633 = vmatpush1.xpose.msra.mxu0 0.0
        %1634 = vmatprep.subr.mxu0 0.0
        %1635 = vmatpush1.xpose.msra.mxu0 0.0
        %1636 = vmatprep.subr.mxu0 0.0
        %1637 = vmatpush1.xpose.msra.mxu0 0.0
        %1638 = vmatprep.subr.mxu0 0.0
        %1639 = vmatpush1.xpose.msra.mxu0 0.0
        %1640 = vmatprep.subr.mxu0 0.0
        %1641 = vmatpush1.xpose.msra.mxu0 0.0
        %1642 = vmatprep.mubr.f32.mxu0 0.0
        %1643 = vmatmul.mubr.f32.gmra.mrb[0].mxu0 %v1574
        %v1644 = vpop.f32.mrb[0].mxu0
        %v1645 = vadd.f32 %v748, %v1644
        %v1646 = vpop.f32.mrb[0].mxu0
        %1647 = vdwg.mxu0
        %v1648 = vsel %vm829, %v1645, -inf
        %1649 = vmax.xlane.f32.xlu0 %v1648
        %v1650 = vpop.xlane.xlu0 %1649
        %v1651 = vsub.f32 %v1645, %v1650
        %v1652 = vmul.f32 %v1651, 1.442695
        %v1653 = vpow.pop %v1652
        %v1654 = vsel %vm829, %v1653, 0.0
        %1655 = vadd.xlane.f32.xlu0 %v1654
        %v1656 = vpop.xlane.xlu0 %1655
        %v1657 = vrcp.pop %v1656
        %v1658 = vmul.f32 %v1653, %v1657
        %1659 = vrot.lane.b32.xlu0 %v1561, 64
        %v1660 = vpop.permute.xlu0 %1659
        %v1663 = vsel %vm829, %v1658, 0
        %1665 = vmatprep.subr.mxu0 0.0
        %1666 = vmatpush1.msra.mxu0 %v1660
        %1667 = vmatprep.subr.mxu0 0.0
        %1668 = vmatpush1.msra.mxu0 0.0
        %1669 = vmatprep.subr.mxu0 0.0
        %1670 = vmatpush1.msra.mxu0 0.0
        %1671 = vmatprep.subr.mxu0 0.0
        %1672 = vmatpush1.msra.mxu0 0.0
        %1673 = vmatprep.subr.mxu0 0.0
        %1674 = vmatpush1.msra.mxu0 0.0
        %1675 = vmatprep.subr.mxu0 0.0
        %1676 = vmatpush1.msra.mxu0 0.0
        %1677 = vmatprep.subr.mxu0 0.0
        %1678 = vmatpush1.msra.mxu0 0.0
        %1679 = vmatprep.subr.mxu0 0.0
        %1680 = vmatpush1.msra.mxu0 0.0
        %1681 = vmatprep.subr.mxu0 0.0
        %1682 = vmatpush1.msra.mxu0 0.0
        %1683 = vmatprep.subr.mxu0 0.0
        %1684 = vmatpush1.msra.mxu0 0.0
        %1685 = vmatprep.subr.mxu0 0.0
        %1686 = vmatpush1.msra.mxu0 0.0
        %1687 = vmatprep.subr.mxu0 0.0
        %1688 = vmatpush1.msra.mxu0 0.0
        %1689 = vmatprep.subr.mxu0 0.0
        %1690 = vmatpush1.msra.mxu0 0.0
        %1691 = vmatprep.subr.mxu0 0.0
        %1692 = vmatpush1.msra.mxu0 0.0
        %1693 = vmatprep.subr.mxu0 0.0
        %1694 = vmatpush1.msra.mxu0 0.0
        %1695 = vmatprep.subr.mxu0 0.0
        %1696 = vmatpush1.msra.mxu0 0.0
        %1697 = vmatprep.subr.mxu0 0.0
        %1698 = vmatpush1.msra.mxu0 0.0
        %1699 = vmatprep.subr.mxu0 0.0
        %1700 = vmatpush1.msra.mxu0 0.0
        %1701 = vmatprep.subr.mxu0 0.0
        %1702 = vmatpush1.msra.mxu0 0.0
        %1703 = vmatprep.subr.mxu0 0.0
        %1704 = vmatpush1.msra.mxu0 0.0
        %1705 = vmatprep.subr.mxu0 0.0
        %1706 = vmatpush1.msra.mxu0 0.0
        %1707 = vmatprep.subr.mxu0 0.0
        %1708 = vmatpush1.msra.mxu0 0.0
        %1709 = vmatprep.subr.mxu0 0.0
        %1710 = vmatpush1.msra.mxu0 0.0
        %1711 = vmatprep.subr.mxu0 0.0
        %1712 = vmatpush1.msra.mxu0 0.0
        %1713 = vmatprep.subr.mxu0 0.0
        %1714 = vmatpush1.msra.mxu0 0.0
        %1715 = vmatprep.subr.mxu0 0.0
        %1716 = vmatpush1.msra.mxu0 0.0
        %1717 = vmatprep.subr.mxu0 0.0
        %1718 = vmatpush1.msra.mxu0 0.0
        %1719 = vmatprep.subr.mxu0 0.0
        %1720 = vmatpush1.msra.mxu0 0.0
        %1721 = vmatprep.subr.mxu0 0.0
        %1722 = vmatpush1.msra.mxu0 0.0
        %1723 = vmatprep.subr.mxu0 0.0
        %1724 = vmatpush1.msra.mxu0 0.0
        %1725 = vmatprep.subr.mxu0 0.0
        %1726 = vmatpush1.msra.mxu0 0.0
        %1727 = vmatprep.subr.mxu0 0.0
        %1728 = vmatpush1.msra.mxu0 0.0
        %1729 = vmatprep.mubr.f32.mxu0 0.0
        %1730 = vmatmul.mubr.f32.gmra.mrb[0].mxu0 %v1663
        %v1731 = vpop.f32.mrb[0].mxu0
        %v1732 = vadd.f32 0.0, %v1731
        %v1733 = vpop.f32.mrb[0].mxu0
        %1734 = vdwg.mxu0
        %1735 = vrot.lane.b32.xlu0 %v1569, 112
        %v1736 = vpop.permute.xlu0 %1735
        %1737 = vrot.lane.b32.xlu0 %v1561, 80
        %v1738 = vpop.permute.xlu0 %1737
        %v1739 = vsel %vm753, %v1736, 0
        %v1741 = vsel %vm753, %v1738, 0
        %1743 = vmatprep.subr.mxu0 0.0
        %1744 = vmatpush1.xpose.msra.mxu0 %v1741
        %1745 = vmatprep.subr.mxu0 0.0
        %1746 = vmatpush1.xpose.msra.mxu0 0.0
        %1747 = vmatprep.subr.mxu0 0.0
        %1748 = vmatpush1.xpose.msra.mxu0 0.0
        %1749 = vmatprep.subr.mxu0 0.0
        %1750 = vmatpush1.xpose.msra.mxu0 0.0
        %1751 = vmatprep.subr.mxu0 0.0
        %1752 = vmatpush1.xpose.msra.mxu0 0.0
        %1753 = vmatprep.subr.mxu0 0.0
        %1754 = vmatpush1.xpose.msra.mxu0 0.0
        %1755 = vmatprep.subr.mxu0 0.0
        %1756 = vmatpush1.xpose.msra.mxu0 0.0
        %1757 = vmatprep.subr.mxu0 0.0
        %1758 = vmatpush1.xpose.msra.mxu0 0.0
        %1759 = vmatprep.subr.mxu0 0.0
        %1760 = vmatpush1.xpose.msra.mxu0 0.0
        %1761 = vmatprep.subr.mxu0 0.0
        %1762 = vmatpush1.xpose.msra.mxu0 0.0
        %1763 = vmatprep.subr.mxu0 0.0
        %1764 = vmatpush1.xpose.msra.mxu0 0.0
        %1765 = vmatprep.subr.mxu0 0.0
        %1766 = vmatpush1.xpose.msra.mxu0 0.0
        %1767 = vmatprep.subr.mxu0 0.0
        %1768 = vmatpush1.xpose.msra.mxu0 0.0
        %1769 = vmatprep.subr.mxu0 0.0
        %1770 = vmatpush1.xpose.msra.mxu0 0.0
        %1771 = vmatprep.subr.mxu0 0.0
        %1772 = vmatpush1.xpose.msra.mxu0 0.0
        %1773 = vmatprep.subr.mxu0 0.0
        %1774 = vmatpush1.xpose.msra.mxu0 0.0
        %1775 = vmatprep.subr.mxu0 0.0
        %1776 = vmatpush1.xpose.msra.mxu0 0.0
        %1777 = vmatprep.subr.mxu0 0.0
        %1778 = vmatpush1.xpose.msra.mxu0 0.0
        %1779 = vmatprep.subr.mxu0 0.0
        %1780 = vmatpush1.xpose.msra.mxu0 0.0
        %1781 = vmatprep.subr.mxu0 0.0
        %1782 = vmatpush1.xpose.msra.mxu0 0.0
        %1783 = vmatprep.subr.mxu0 0.0
        %1784 = vmatpush1.xpose.msra.mxu0 0.0
        %1785 = vmatprep.subr.mxu0 0.0
        %1786 = vmatpush1.xpose.msra.mxu0 0.0
        %1787 = vmatprep.subr.mxu0 0.0
        %1788 = vmatpush1.xpose.msra.mxu0 0.0
        %1789 = vmatprep.subr.mxu0 0.0
        %1790 = vmatpush1.xpose.msra.mxu0 0.0
        %1791 = vmatprep.subr.mxu0 0.0
        %1792 = vmatpush1.xpose.msra.mxu0 0.0
        %1793 = vmatprep.subr.mxu0 0.0
        %1794 = vmatpush1.xpose.msra.mxu0 0.0
        %1795 = vmatprep.subr.mxu0 0.0
        %1796 = vmatpush1.xpose.msra.mxu0 0.0
        %1797 = vmatprep.subr.mxu0 0.0
        %1798 = vmatpush1.xpose.msra.mxu0 0.0
        %1799 = vmatprep.subr.mxu0 0.0
        %1800 = vmatpush1.xpose.msra.mxu0 0.0
        %1801 = vmatprep.subr.mxu0 0.0
        %1802 = vmatpush1.xpose.msra.mxu0 0.0
        %1803 = vmatprep.subr.mxu0 0.0
        %1804 = vmatpush1.xpose.msra.mxu0 0.0
        %1805 = vmatprep.subr.mxu0 0.0
        %1806 = vmatpush1.xpose.msra.mxu0 0.0
        %1807 = vmatprep.mubr.f32.mxu0 0.0
        %1808 = vmatmul.mubr.f32.gmra.mrb[0].mxu0 %v1739
        %v1809 = vpop.f32.mrb[0].mxu0
        %v1810 = vadd.f32 %v748, %v1809
        %v1811 = vpop.f32.mrb[0].mxu0
        %1812 = vdwg.mxu0
        %v1813 = vsel %vm829, %v1810, -inf
        %1814 = vmax.xlane.f32.xlu0 %v1813
        %v1815 = vpop.xlane.xlu0 %1814
        %v1816 = vsub.f32 %v1810, %v1815
        %v1817 = vmul.f32 %v1816, 1.442695
        %v1818 = vpow.pop %v1817
        %v1819 = vsel %vm829, %v1818, 0.0
        %1820 = vadd.xlane.f32.xlu0 %v1819
        %v1821 = vpop.xlane.xlu0 %1820
        %v1822 = vrcp.pop %v1821
        %v1823 = vmul.f32 %v1818, %v1822
        %1824 = vrot.lane.b32.xlu0 %v1561, 48
        %v1825 = vpop.permute.xlu0 %1824
        %v1828 = vsel %vm829, %v1823, 0
        %1830 = vmatprep.subr.mxu0 0.0
        %1831 = vmatpush1.msra.mxu0 %v1825
        %1832 = vmatprep.subr.mxu0 0.0
        %1833 = vmatpush1.msra.mxu0 0.0
        %1834 = vmatprep.subr.mxu0 0.0
        %1835 = vmatpush1.msra.mxu0 0.0
        %1836 = vmatprep.subr.mxu0 0.0
        %1837 = vmatpush1.msra.mxu0 0.0
        %1838 = vmatprep.subr.mxu0 0.0
        %1839 = vmatpush1.msra.mxu0 0.0
        %1840 = vmatprep.subr.mxu0 0.0
        %1841 = vmatpush1.msra.mxu0 0.0
        %1842 = vmatprep.subr.mxu0 0.0
        %1843 = vmatpush1.msra.mxu0 0.0
        %1844 = vmatprep.subr.mxu0 0.0
        %1845 = vmatpush1.msra.mxu0 0.0
        %1846 = vmatprep.subr.mxu0 0.0
        %1847 = vmatpush1.msra.mxu0 0.0
        %1848 = vmatprep.subr.mxu0 0.0
        %1849 = vmatpush1.msra.mxu0 0.0
        %1850 = vmatprep.subr.mxu0 0.0
        %1851 = vmatpush1.msra.mxu0 0.0
        %1852 = vmatprep.subr.mxu0 0.0
        %1853 = vmatpush1.msra.mxu0 0.0
        %1854 = vmatprep.subr.mxu0 0.0
        %1855 = vmatpush1.msra.mxu0 0.0
        %1856 = vmatprep.subr.mxu0 0.0
        %1857 = vmatpush1.msra.mxu0 0.0
        %1858 = vmatprep.subr.mxu0 0.0
        %1859 = vmatpush1.msra.mxu0 0.0
        %1860 = vmatprep.subr.mxu0 0.0
        %1861 = vmatpush1.msra.mxu0 0.0
        %1862 = vmatprep.subr.mxu0 0.0
        %1863 = vmatpush1.msra.mxu0 0.0
        %1864 = vmatprep.subr.mxu0 0.0
        %1865 = vmatpush1.msra.mxu0 0.0
        %1866 = vmatprep.subr.mxu0 0.0
        %1867 = vmatpush1.msra.mxu0 0.0
        %1868 = vmatprep.subr.mxu0 0.0
        %1869 = vmatpush1.msra.mxu0 0.0
        %1870 = vmatprep.subr.mxu0 0.0
        %1871 = vmatpush1.msra.mxu0 0.0
        %1872 = vmatprep.subr.mxu0 0.0
        %1873 = vmatpush1.msra.mxu0 0.0
        %1874 = vmatprep.subr.mxu0 0.0
        %1875 = vmatpush1.msra.mxu0 0.0
        %1876 = vmatprep.subr.mxu0 0.0
        %1877 = vmatpush1.msra.mxu0 0.0
        %1878 = vmatprep.subr.mxu0 0.0
        %1879 = vmatpush1.msra.mxu0 0.0
        %1880 = vmatprep.subr.mxu0 0.0
        %1881 = vmatpush1.msra.mxu0 0.0
        %1882 = vmatprep.subr.mxu0 0.0
        %1883 = vmatpush1.msra.mxu0 0.0
        %1884 = vmatprep.subr.mxu0 0.0
        %1885 = vmatpush1.msra.mxu0 0.0
        %1886 = vmatprep.subr.mxu0 0.0
        %1887 = vmatpush1.msra.mxu0 0.0
        %1888 = vmatprep.subr.mxu0 0.0
        %1889 = vmatpush1.msra.mxu0 0.0
        %1890 = vmatprep.subr.mxu0 0.0
        %1891 = vmatpush1.msra.mxu0 0.0
        %1892 = vmatprep.subr.mxu0 0.0
        %1893 = vmatpush1.msra.mxu0 0.0
        %1894 = vmatprep.mubr.f32.mxu0 0.0
        %1895 = vmatmul.mubr.f32.gmra.mrb[0].mxu0 %v1828
        %v1896 = vpop.f32.mrb[0].mxu0
        %v1897 = vadd.f32 0.0, %v1896
        %v1898 = vpop.f32.mrb[0].mxu0
        %1899 = vdwg.mxu0
        %v1901 = vsel %vm753, %v1897, 0
        %1903 = vmatprep.subr.mxu0 0.0
        %1904 = vmatpush1.msra.mxu0 %v1567
        %1905 = vmatprep.subr.mxu0 0.0
        %1906 = vmatpush1.msra.mxu0 %v1568
        %1907 = vmatprep.subr.mxu0 0.0
        %1908 = vmatpush1.msra.mxu0 0.0
        %1909 = vmatprep.subr.mxu0 0.0
        %1910 = vmatpush1.msra.mxu0 0.0
        %1911 = vmatprep.subr.mxu0 0.0
        %1912 = vmatpush1.msra.mxu0 0.0
        %1913 = vmatprep.subr.mxu0 0.0
        %1914 = vmatpush1.msra.mxu0 0.0
        %1915 = vmatprep.subr.mxu0 0.0
        %1916 = vmatpush1.msra.mxu0 0.0
        %1917 = vmatprep.subr.mxu0 0.0
        %1918 = vmatpush1.msra.mxu0 0.0
        %1919 = vmatprep.subr.mxu0 0.0
        %1920 = vmatpush1.msra.mxu0 0.0
        %1921 = vmatprep.subr.mxu0 0.0
        %1922 = vmatpush1.msra.mxu0 0.0
        %1923 = vmatprep.subr.mxu0 0.0
        %1924 = vmatpush1.msra.mxu0 0.0
        %1925 = vmatprep.subr.mxu0 0.0
        %1926 = vmatpush1.msra.mxu0 0.0
        %1927 = vmatprep.subr.mxu0 0.0
        %1928 = vmatpush1.msra.mxu0 0.0
        %1929 = vmatprep.subr.mxu0 0.0
        %1930 = vmatpush1.msra.mxu0 0.0
        %1931 = vmatprep.subr.mxu0 0.0
        %1932 = vmatpush1.msra.mxu0 0.0
        %1933 = vmatprep.subr.mxu0 0.0
        %1934 = vmatpush1.msra.mxu0 0.0
        %1935 = vmatprep.subr.mxu0 0.0
        %1936 = vmatpush1.msra.mxu0 0.0
        %1937 = vmatprep.subr.mxu0 0.0
        %1938 = vmatpush1.msra.mxu0 0.0
        %1939 = vmatprep.subr.mxu0 0.0
        %1940 = vmatpush1.msra.mxu0 0.0
        %1941 = vmatprep.subr.mxu0 0.0
        %1942 = vmatpush1.msra.mxu0 0.0
        %1943 = vmatprep.subr.mxu0 0.0
        %1944 = vmatpush1.msra.mxu0 0.0
        %1945 = vmatprep.subr.mxu0 0.0
        %1946 = vmatpush1.msra.mxu0 0.0
        %1947 = vmatprep.subr.mxu0 0.0
        %1948 = vmatpush1.msra.mxu0 0.0
        %1949 = vmatprep.subr.mxu0 0.0
        %1950 = vmatpush1.msra.mxu0 0.0
        %1951 = vmatprep.subr.mxu0 0.0
        %1952 = vmatpush1.msra.mxu0 0.0
        %1953 = vmatprep.subr.mxu0 0.0
        %1954 = vmatpush1.msra.mxu0 0.0
        %1955 = vmatprep.subr.mxu0 0.0
        %1956 = vmatpush1.msra.mxu0 0.0
        %1957 = vmatprep.subr.mxu0 0.0
        %1958 = vmatpush1.msra.mxu0 0.0
        %1959 = vmatprep.subr.mxu0 0.0
        %1960 = vmatpush1.msra.mxu0 0.0
        %1961 = vmatprep.subr.mxu0 0.0
        %1962 = vmatpush1.msra.mxu0 0.0
        %1963 = vmatprep.subr.mxu0 0.0
        %1964 = vmatpush1.msra.mxu0 0.0
        %1965 = vmatprep.subr.mxu0 0.0
        %1966 = vmatpush1.msra.mxu0 0.0
        %1967 = vmatprep.mubr.f32.mxu0 0.0
        %1968 = vmatmul.mubr.f32.gmra.mrb[0].mxu0 %v1901
        %v1969 = vpop.f32.mrb[0].mxu0
        %v1970 = vadd.f32 0.0, %v1969
        %v1971 = vpop.f32.mrb[0].mxu0
        %1972 = vdwg.mxu0
        %v1974 = vsel %vm753, %v1732, 0
        %1976 = vmatprep.subr.mxu0 0.0
        %1977 = vmatpush1.msra.mxu0 %v1565
        %1978 = vmatprep.subr.mxu0 0.0
        %1979 = vmatpush1.msra.mxu0 %v1566
        %1980 = vmatprep.subr.mxu0 0.0
        %1981 = vmatpush1.msra.mxu0 0.0
        %1982 = vmatprep.subr.mxu0 0.0
        %1983 = vmatpush1.msra.mxu0 0.0
        %1984 = vmatprep.subr.mxu0 0.0
        %1985 = vmatpush1.msra.mxu0 0.0
        %1986 = vmatprep.subr.mxu0 0.0
        %1987 = vmatpush1.msra.mxu0 0.0
        %1988 = vmatprep.subr.mxu0 0.0
        %1989 = vmatpush1.msra.mxu0 0.0
        %1990 = vmatprep.subr.mxu0 0.0
        %1991 = vmatpush1.msra.mxu0 0.0
        %1992 = vmatprep.subr.mxu0 0.0
        %1993 = vmatpush1.msra.mxu0 0.0
        %1994 = vmatprep.subr.mxu0 0.0
        %1995 = vmatpush1.msra.mxu0 0.0
        %1996 = vmatprep.subr.mxu0 0.0
        %1997 = vmatpush1.msra.mxu0 0.0
        %1998 = vmatprep.subr.mxu0 0.0
        %1999 = vmatpush1.msra.mxu0 0.0
        %2000 = vmatprep.subr.mxu0 0.0
        %2001 = vmatpush1.msra.mxu0 0.0
        %2002 = vmatprep.subr.mxu0 0.0
        %2003 = vmatpush1.msra.mxu0 0.0
        %2004 = vmatprep.subr.mxu0 0.0
        %2005 = vmatpush1.msra.mxu0 0.0
        %2006 = vmatprep.subr.mxu0 0.0
        %2007 = vmatpush1.msra.mxu0 0.0
        %2008 = vmatprep.subr.mxu0 0.0
        %2009 = vmatpush1.msra.mxu0 0.0
        %2010 = vmatprep.subr.mxu0 0.0
        %2011 = vmatpush1.msra.mxu0 0.0
        %2012 = vmatprep.subr.mxu0 0.0
        %2013 = vmatpush1.msra.mxu0 0.0
        %2014 = vmatprep.subr.mxu0 0.0
        %2015 = vmatpush1.msra.mxu0 0.0
        %2016 = vmatprep.subr.mxu0 0.0
        %2017 = vmatpush1.msra.mxu0 0.0
        %2018 = vmatprep.subr.mxu0 0.0
        %2019 = vmatpush1.msra.mxu0 0.0
        %2020 = vmatprep.subr.mxu0 0.0
        %2021 = vmatpush1.msra.mxu0 0.0
        %2022 = vmatprep.subr.mxu0 0.0
        %2023 = vmatpush1.msra.mxu0 0.0
        %2024 = vmatprep.subr.mxu0 0.0
        %2025 = vmatpush1.msra.mxu0 0.0
        %2026 = vmatprep.subr.mxu0 0.0
        %2027 = vmatpush1.msra.mxu0 0.0
        %2028 = vmatprep.subr.mxu0 0.0
        %2029 = vmatpush1.msra.mxu0 0.0
        %2030 = vmatprep.subr.mxu0 0.0
        %2031 = vmatpush1.msra.mxu0 0.0
        %2032 = vmatprep.subr.mxu0 0.0
        %2033 = vmatpush1.msra.mxu0 0.0
        %2034 = vmatprep.subr.mxu0 0.0
        %2035 = vmatpush1.msra.mxu0 0.0
        %2036 = vmatprep.subr.mxu0 0.0
        %2037 = vmatpush1.msra.mxu0 0.0
        %2038 = vmatprep.subr.mxu0 0.0
        %2039 = vmatpush1.msra.mxu0 0.0
        %2040 = vmatprep.mubr.f32.mxu0 0.0
        %2041 = vmatmul.mubr.f32.gmra.mrb[0].mxu0 %v1974
        %v2042 = vpop.f32.mrb[0].mxu0
        %v2043 = vadd.f32 %v1970, %v2042
        %v2044 = vpop.f32.mrb[0].mxu0
        %2045 = vdwg.mxu0
        %s2046 = scalar_lea.vmem %s5, 1
        %v2047 = vld [vmem:[%s2046] sm:$0x1]
        %v2049 = vlaneseq
        %v2050 = vshrl.u32 %v2049, 7
        %v2051 = vsub.s32 0, %v2050
        %v2052 = vrot.slane %v2047, %v2051
        %v2054 = vadd.f32 %v2043, %v2052
        %v2055 = vadd.f32 %v1477, %v2054
        %s2056 = scalar_lea.vmem %s6, 1
        %v2057 = vld [vmem:[%s2056] sm:$0x1]
        %s2058 = scalar_lea.vmem %s7, 1
        %v2059 = vld [vmem:[%s2058] sm:$0x1]
        %v2060 = vsel %vm626, %v2055, 0.0
        %2061 = vadd.xlane.f32.xlu0 %v2060
        %v2062 = vpop.xlane.xlu0 %2061
        %v2063 = vmul.f32 %v2062, %v630
        %v2064 = vsub.f32 %v2055, %v2063
        %v2065 = vmul.f32 %v2064, %v2064
        %v2066 = vsel %vm626, %v2065, 0.0
        %2067 = vadd.xlane.f32.xlu0 %v2066
        %v2068 = vpop.xlane.xlu0 %2067
        %v2069 = vmul.f32 %v2068, %v630
        %v2070 = vadd.f32 %v2069, 1e-12
        %v2071 = vrsqrt.pop %v2070
        %v2072 = vmul.f32 %v2064, %v2071
        %v2074 = vlaneseq
        %v2075 = vshrl.u32 %v2074, 7
        %v2076 = vsub.s32 0, %v2075
        %v2077 = vrot.slane %v2057, %v2076
        %v2079 = vmul.f32 %v2072, %v2077
        %v2081 = vlaneseq
        %v2082 = vshrl.u32 %v2081, 7
        %v2083 = vsub.s32 0, %v2082
        %v2084 = vrot.slane %v2059, %v2083
        %v2086 = vadd.f32 %v2079, %v2084
        %s2087 = scalar_lea.vmem %s8, 32
        %v2088 = vld [vmem:[%s2087] sm:$0xff]
        %v2089 = vld [vmem:[%s2087 + $0x8] sm:$0xff]
        %v2090 = vld [vmem:[%s2087 + $0x10] sm:$0xff]
        %v2091 = vld [vmem:[%s2087 + $0x18] sm:$0xff]
        %s2092 = scalar_lea.vmem %s9, 1
        %v2093 = vld [vmem:[%s2092] sm:$0x1]
        %v2095 = vlaneseq
        %v2096 = vshrl.u32 %v2095, 7
        %v2097 = vsub.s32 0, %v2096
        %v2098 = vrot.slane %v2093, %v2097
        %v2101 = vsel %vm626, %v2086, 0
        %2103 = vmatprep.subr.mxu0 0.0
        %2104 = vmatpush1.msra.mxu0 %v2088
        %2105 = vmatprep.subr.mxu0 0.0
        %2106 = vmatpush1.msra.mxu0 %v2089
        %2107 = vmatprep.subr.mxu0 0.0
        %2108 = vmatpush1.msra.mxu0 %v2090
        %2109 = vmatprep.subr.mxu0 0.0
        %2110 = vmatpush1.msra.mxu0 %v2091
        %2111 = vmatprep.subr.mxu0 0.0
        %2112 = vmatpush1.msra.mxu0 0.0
        %2113 = vmatprep.subr.mxu0 0.0
        %2114 = vmatpush1.msra.mxu0 0.0
        %2115 = vmatprep.subr.mxu0 0.0
        %2116 = vmatpush1.msra.mxu0 0.0
        %2117 = vmatprep.subr.mxu0 0.0
        %2118 = vmatpush1.msra.mxu0 0.0
        %2119 = vmatprep.subr.mxu0 0.0
        %2120 = vmatpush1.msra.mxu0 0.0
        %2121 = vmatprep.subr.mxu0 0.0
        %2122 = vmatpush1.msra.mxu0 0.0
        %2123 = vmatprep.subr.mxu0 0.0
        %2124 = vmatpush1.msra.mxu0 0.0
        %2125 = vmatprep.subr.mxu0 0.0
        %2126 = vmatpush1.msra.mxu0 0.0
        %2127 = vmatprep.subr.mxu0 0.0
        %2128 = vmatpush1.msra.mxu0 0.0
        %2129 = vmatprep.subr.mxu0 0.0
        %2130 = vmatpush1.msra.mxu0 0.0
        %2131 = vmatprep.subr.mxu0 0.0
        %2132 = vmatpush1.msra.mxu0 0.0
        %2133 = vmatprep.subr.mxu0 0.0
        %2134 = vmatpush1.msra.mxu0 0.0
        %2135 = vmatprep.subr.mxu0 0.0
        %2136 = vmatpush1.msra.mxu0 0.0
        %2137 = vmatprep.subr.mxu0 0.0
        %2138 = vmatpush1.msra.mxu0 0.0
        %2139 = vmatprep.subr.mxu0 0.0
        %2140 = vmatpush1.msra.mxu0 0.0
        %2141 = vmatprep.subr.mxu0 0.0
        %2142 = vmatpush1.msra.mxu0 0.0
        %2143 = vmatprep.subr.mxu0 0.0
        %2144 = vmatpush1.msra.mxu0 0.0
        %2145 = vmatprep.subr.mxu0 0.0
        %2146 = vmatpush1.msra.mxu0 0.0
        %2147 = vmatprep.subr.mxu0 0.0
        %2148 = vmatpush1.msra.mxu0 0.0
        %2149 = vmatprep.subr.mxu0 0.0
        %2150 = vmatpush1.msra.mxu0 0.0
        %2151 = vmatprep.subr.mxu0 0.0
        %2152 = vmatpush1.msra.mxu0 0.0
        %2153 = vmatprep.subr.mxu0 0.0
        %2154 = vmatpush1.msra.mxu0 0.0
        %2155 = vmatprep.subr.mxu0 0.0
        %2156 = vmatpush1.msra.mxu0 0.0
        %2157 = vmatprep.subr.mxu0 0.0
        %2158 = vmatpush1.msra.mxu0 0.0
        %2159 = vmatprep.subr.mxu0 0.0
        %2160 = vmatpush1.msra.mxu0 0.0
        %2161 = vmatprep.subr.mxu0 0.0
        %2162 = vmatpush1.msra.mxu0 0.0
        %2163 = vmatprep.subr.mxu0 0.0
        %2164 = vmatpush1.msra.mxu0 0.0
        %2165 = vmatprep.subr.mxu0 0.0
        %2166 = vmatpush1.msra.mxu0 0.0
        %2167 = vmatprep.mubr.f32.mxu0 0.0
        %2168 = vmatmul.mubr.f32.gmra.mrb[0].mxu0 %v2101
        %v2169 = vpop.f32.mrb[0].mxu0
        %v2170 = vadd.f32 %v2098, %v2169
        %v2171 = vpop.f32.mrb[0].mxu0
        %2172 = vdwg.mxu0
        %v2173 = vmul.f32 %v2170, %v2170
        %v2174 = vmul.f32 %v2170, %v2173
        %v2175 = vmul.f32 %v2174, 0.044715
        %v2176 = vadd.f32 %v2170, %v2175
        %v2177 = vmul.f32 %v2176, 0.7978846
        %v2178 = vtanh.pop %v2177
        %v2179 = vadd.f32 %v2178, 1.0
        %v2180 = vmul.f32 %v2179, 0.5
        %v2181 = vmul.f32 %v2170, %v2180
        %s2182 = scalar_lea.vmem %s10, 64
        %v2183 = vld [vmem:[%s2182] sm:$0xff]
        %v2184 = vld [vmem:[%s2182 + $0x8] sm:$0xff]
        %v2185 = vld [vmem:[%s2182 + $0x10] sm:$0xff]
        %v2186 = vld [vmem:[%s2182 + $0x18] sm:$0xff]
        %v2187 = vld [vmem:[%s2182 + $0x20] sm:$0xff]
        %v2188 = vld [vmem:[%s2182 + $0x28] sm:$0xff]
        %v2189 = vld [vmem:[%s2182 + $0x30] sm:$0xff]
        %v2190 = vld [vmem:[%s2182 + $0x38] sm:$0xff]
        %s2191 = scalar_lea.vmem %s11, 1
        %v2192 = vld [vmem:[%s2191] sm:$0x1]
        %v2194 = vlaneseq
        %v2195 = vshrl.u32 %v2194, 7
        %v2196 = vsub.s32 0, %v2195
        %v2197 = vrot.slane %v2192, %v2196
        %v2200 = vsel %vm1374, %v2181, 0
        %2202 = vmatprep.subr.mxu0 0.0
        %2203 = vmatpush1.msra.mxu0 %v2183
        %2204 = vmatprep.subr.mxu0 0.0
        %2205 = vmatpush1.msra.mxu0 %v2184
        %2206 = vmatprep.subr.mxu0 0.0
        %2207 = vmatpush1.msra.mxu0 %v2185
        %2208 = vmatprep.subr.mxu0 0.0
        %2209 = vmatpush1.msra.mxu0 %v2186
        %2210 = vmatprep.subr.mxu0 0.0
        %2211 = vmatpush1.msra.mxu0 %v2187
        %2212 = vmatprep.subr.mxu0 0.0
        %2213 = vmatpush1.msra.mxu0 %v2188
        %2214 = vmatprep.subr.mxu0 0.0
        %2215 = vmatpush1.msra.mxu0 %v2189
        %2216 = vmatprep.subr.mxu0 0.0
        %2217 = vmatpush1.msra.mxu0 %v2190
        %2218 = vmatprep.subr.mxu0 0.0
        %2219 = vmatpush1.msra.mxu0 0.0
        %2220 = vmatprep.subr.mxu0 0.0
        %2221 = vmatpush1.msra.mxu0 0.0
        %2222 = vmatprep.subr.mxu0 0.0
        %2223 = vmatpush1.msra.mxu0 0.0
        %2224 = vmatprep.subr.mxu0 0.0
        %2225 = vmatpush1.msra.mxu0 0.0
        %2226 = vmatprep.subr.mxu0 0.0
        %2227 = vmatpush1.msra.mxu0 0.0
        %2228 = vmatprep.subr.mxu0 0.0
        %2229 = vmatpush1.msra.mxu0 0.0
        %2230 = vmatprep.subr.mxu0 0.0
        %2231 = vmatpush1.msra.mxu0 0.0
        %2232 = vmatprep.subr.mxu0 0.0
        %2233 = vmatpush1.msra.mxu0 0.0
        %2234 = vmatprep.subr.mxu0 0.0
        %2235 = vmatpush1.msra.mxu0 0.0
        %2236 = vmatprep.subr.mxu0 0.0
        %2237 = vmatpush1.msra.mxu0 0.0
        %2238 = vmatprep.subr.mxu0 0.0
        %2239 = vmatpush1.msra.mxu0 0.0
        %2240 = vmatprep.subr.mxu0 0.0
        %2241 = vmatpush1.msra.mxu0 0.0
        %2242 = vmatprep.subr.mxu0 0.0
        %2243 = vmatpush1.msra.mxu0 0.0
        %2244 = vmatprep.subr.mxu0 0.0
        %2245 = vmatpush1.msra.mxu0 0.0
        %2246 = vmatprep.subr.mxu0 0.0
        %2247 = vmatpush1.msra.mxu0 0.0
        %2248 = vmatprep.subr.mxu0 0.0
        %2249 = vmatpush1.msra.mxu0 0.0
        %2250 = vmatprep.subr.mxu0 0.0
        %2251 = vmatpush1.msra.mxu0 0.0
        %2252 = vmatprep.subr.mxu0 0.0
        %2253 = vmatpush1.msra.mxu0 0.0
        %2254 = vmatprep.subr.mxu0 0.0
        %2255 = vmatpush1.msra.mxu0 0.0
        %2256 = vmatprep.subr.mxu0 0.0
        %2257 = vmatpush1.msra.mxu0 0.0
        %2258 = vmatprep.subr.mxu0 0.0
        %2259 = vmatpush1.msra.mxu0 0.0
        %2260 = vmatprep.subr.mxu0 0.0
        %2261 = vmatpush1.msra.mxu0 0.0
        %2262 = vmatprep.subr.mxu0 0.0
        %2263 = vmatpush1.msra.mxu0 0.0
        %2264 = vmatprep.subr.mxu0 0.0
        %2265 = vmatpush1.msra.mxu0 0.0
        %2266 = vmatprep.mubr.f32.mxu0 0.0
        %2267 = vmatmul.mubr.f32.gmra.mrb[0].mxu0 %v2200
        %v2268 = vpop.f32.mrb[0].mxu0
        %v2269 = vadd.f32 %v2197, %v2268
        %v2270 = vpop.f32.mrb[0].mxu0
        %2271 = vdwg.mxu0
        %v2272 = vadd.f32 %v2086, %v2269
        %s2273 = scalar_lea.vmem %s12, 1
        %v2274 = vld [vmem:[%s2273] sm:$0x1]
        %s2275 = scalar_lea.vmem %s13, 1
        %v2276 = vld [vmem:[%s2275] sm:$0x1]
        %v2277 = vsel %vm626, %v2272, 0.0
        %2278 = vadd.xlane.f32.xlu0 %v2277
        %v2279 = vpop.xlane.xlu0 %2278
        %v2280 = vmul.f32 %v2279, %v630
        %v2281 = vsub.f32 %v2272, %v2280
        %v2282 = vmul.f32 %v2281, %v2281
        %v2283 = vsel %vm626, %v2282, 0.0
        %2284 = vadd.xlane.f32.xlu0 %v2283
        %v2285 = vpop.xlane.xlu0 %2284
        %v2286 = vmul.f32 %v2285, %v630
        %v2287 = vadd.f32 %v2286, 1e-12
        %v2288 = vrsqrt.pop %v2287
        %v2289 = vmul.f32 %v2281, %v2288
        %v2291 = vlaneseq
        %v2292 = vshrl.u32 %v2291, 7
        %v2293 = vsub.s32 0, %v2292
        %v2294 = vrot.slane %v2274, %v2293
        %v2296 = vmul.f32 %v2289, %v2294
        %v2298 = vlaneseq
        %v2299 = vshrl.u32 %v2298, 7
        %v2300 = vsub.s32 0, %v2299
        %v2301 = vrot.slane %v2276, %v2300
        %v2303 = vadd.f32 %v2296, %v2301
        %2304 = vst.msk [vmem:[%s608] sm:$0xff] %vm626, %v2303
        %v2305 = vld [vmem:[%s16] sm:$0xff]
        %v2306 = vld [vmem:[%s16 + $0x8] sm:$0xff]
        %v2307 = vld [vmem:[%s16 + $0x10] sm:$0xff]
        %v2308 = vld [vmem:[%s16 + $0x18] sm:$0xff]
        %v2309 = vld [vmem:[%s17] sm:$0x1]
        %v2311 = vsel %vm626, %v2303, 0
        %2313 = vmatprep.subr.mxu0 0.0
        %2314 = vmatpush1.msra.mxu0 %v2305
        %2315 = vmatprep.subr.mxu0 0.0
        %2316 = vmatpush1.msra.mxu0 %v2306
        %2317 = vmatprep.subr.mxu0 0.0
        %2318 = vmatpush1.msra.mxu0 %v2307
        %2319 = vmatprep.subr.mxu0 0.0
        %2320 = vmatpush1.msra.mxu0 %v2308
        %2321 = vmatprep.subr.mxu0 0.0
        %2322 = vmatpush1.msra.mxu0 0.0
        %2323 = vmatprep.subr.mxu0 0.0
        %2324 = vmatpush1.msra.mxu0 0.0
        %2325 = vmatprep.subr.mxu0 0.0
        %2326 = vmatpush1.msra.mxu0 0.0
        %2327 = vmatprep.subr.mxu0 0.0
        %2328 = vmatpush1.msra.mxu0 0.0
        %2329 = vmatprep.subr.mxu0 0.0
        %2330 = vmatpush1.msra.mxu0 0.0
        %2331 = vmatprep.subr.mxu0 0.0
        %2332 = vmatpush1.msra.mxu0 0.0
        %2333 = vmatprep.subr.mxu0 0.0
        %2334 = vmatpush1.msra.mxu0 0.0
        %2335 = vmatprep.subr.mxu0 0.0
        %2336 = vmatpush1.msra.mxu0 0.0
        %2337 = vmatprep.subr.mxu0 0.0
        %2338 = vmatpush1.msra.mxu0 0.0
        %2339 = vmatprep.subr.mxu0 0.0
        %2340 = vmatpush1.msra.mxu0 0.0
        %2341 = vmatprep.subr.mxu0 0.0
        %2342 = vmatpush1.msra.mxu0 0.0
        %2343 = vmatprep.subr.mxu0 0.0
        %2344 = vmatpush1.msra.mxu0 0.0
        %2345 = vmatprep.subr.mxu0 0.0
        %2346 = vmatpush1.msra.mxu0 0.0
        %2347 = vmatprep.subr.mxu0 0.0
        %2348 = vmatpush1.msra.mxu0 0.0
        %2349 = vmatprep.subr.mxu0 0.0
        %2350 = vmatpush1.msra.mxu0 0.0
        %2351 = vmatprep.subr.mxu0 0.0
        %2352 = vmatpush1.msra.mxu0 0.0
        %2353 = vmatprep.subr.mxu0 0.0
        %2354 = vmatpush1.msra.mxu0 0.0
        %2355 = vmatprep.subr.mxu0 0.0
        %2356 = vmatpush1.msra.mxu0 0.0
        %2357 = vmatprep.subr.mxu0 0.0
        %2358 = vmatpush1.msra.mxu0 0.0
        %2359 = vmatprep.subr.mxu0 0.0
        %2360 = vmatpush1.msra.mxu0 0.0
        %2361 = vmatprep.subr.mxu0 0.0
        %2362 = vmatpush1.msra.mxu0 0.0
        %2363 = vmatprep.subr.mxu0 0.0
        %2364 = vmatpush1.msra.mxu0 0.0
        %2365 = vmatprep.subr.mxu0 0.0
        %2366 = vmatpush1.msra.mxu0 0.0
        %2367 = vmatprep.subr.mxu0 0.0
        %2368 = vmatpush1.msra.mxu0 0.0
        %2369 = vmatprep.subr.mxu0 0.0
        %2370 = vmatpush1.msra.mxu0 0.0
        %2371 = vmatprep.subr.mxu0 0.0
        %2372 = vmatpush1.msra.mxu0 0.0
        %2373 = vmatprep.subr.mxu0 0.0
        %2374 = vmatpush1.msra.mxu0 0.0
        %2375 = vmatprep.subr.mxu0 0.0
        %2376 = vmatpush1.msra.mxu0 0.0
        %2377 = vmatprep.mubr.f32.mxu0 0.0
        %2378 = vmatmul.mubr.f32.gmra.mrb[0].mxu0 %v2311
        %v2379 = vpop.f32.mrb[0].mxu0
        %v2380 = vadd.f32 %v2309, %v2379
        %v2381 = vpop.f32.mrb[0].mxu0
        %2382 = vdwg.mxu0
        %v2383 = vtanh.pop %v2380
        %vm2384 = vcmask 253952
        %2385 = vst.msk [vmem:[%s614] sm:$0x1] %vm2384, %v2383
        %s2386 = sand.u32 %s433, 1
        %s2387 = scalar_lea.sflag [#allocation3], %s2386
        %s2388 = sand.u32 %s433, 1
        %s2389 = smul.addr %s2388, 8
        %s2390 = scalar_lea.vmem [#allocation2], %s2389
        %s2391 = sand.u32 %s459, 1
        %s2392 = scalar_lea.sflag [#allocation5], %s2391
        %s2393 = sand.u32 %s459, 1
        %s2394 = scalar_lea.vmem [#allocation4], %s2393
        // Predicated region
        $region93: #{bert_layer_forward.1} parent=91 // pred_check
          %p2395 = pneg %p443
        $region94: #{bert_layer_forward.1} parent=91 // pred_check_branch
          %2397 = sbr.rel (%p2395) target = $region96
        $region95: #{bert_layer_forward.1} parent=91 // pred_region
          %s2399 = ssub.s32 128, 128
          %2400 = vsyncadd %s2387, %s2399
          %s2401 = smul.addr %s37, 128
          %s2402 = scalar_lea.hbm %s18, %s2401
          %s2404 = sshll.u32 %s2390, 4
          %s2405 = int_to_ptr.vmem [resolvable:$true] %s2404
          %2407 = dma.vmem_to_hbm [thread:$0]  %s2405, 128, %s2402, %s2387
        $region96: #{bert_layer_forward.1} parent=91 // pred_fallthru
          _
        // Predicated region
        $region97: #{bert_layer_forward.1} parent=91 // pred_check
          %p2408 = pneg %p469
        $region98: #{bert_layer_forward.1} parent=91 // pred_check_branch
          %2410 = sbr.rel (%p2408) target = $region100
        $region99: #{bert_layer_forward.1} parent=91 // pred_region
          %s2412 = ssub.s32 16, 16
          %2413 = vsyncadd %s2392, %s2412
          %s2414 = smul.addr %s37, 16
          %s2415 = scalar_lea.hbm %s19, %s2414
          %s2417 = sshll.u32 %s2394, 4
          %s2418 = int_to_ptr.vmem [resolvable:$true] %s2417
          %2420 = dma.vmem_to_hbm [thread:$0]  %s2418, 16, %s2415, %s2392
        $region100: #{bert_layer_forward.1} parent=91 // pred_fallthru
          _
      $region92: #{bert_layer_forward.1} parent=5 // pred_fallthru
        _
      %p2421 = scmp.le.s32.totalorder 2, %s32
      // Predicated region
      $region101: #{bert_layer_forward.1} parent=5 // pred_check
        %p2422 = pneg %p2421
      $region102: #{bert_layer_forward.1} parent=5 // pred_check_branch
        %2424 = sbr.rel (%p2422) target = $region104
      $region103: #{bert_layer_forward.1} parent=5 // pred_region
        %s2425 = ssub.s32 %s32, 2
        // Predicated region
        $region105: #{bert_layer_forward.1} parent=103 // pred_check
          %p2426 = pneg %p449
        $region106: #{bert_layer_forward.1} parent=103 // pred_check_branch
          %2428 = sbr.rel (%p2426) target = $region108
        $region107: #{bert_layer_forward.1} parent=103 // pred_region
          %s2429 = sand.u32 %s434, 1
          %s2430 = scalar_lea.sflag [#allocation3], %s2429
          %s2431 = sand.u32 %s434, 1
          %s2432 = smul.addr %s2431, 8
          %s2433 = scalar_lea.vmem [#allocation2], %s2432
          %2434 = dma.done %s2430, 128
        $region108: #{bert_layer_forward.1} parent=103 // pred_fallthru
          _
        // Predicated region
        $region109: #{bert_layer_forward.1} parent=103 // pred_check
          %p2435 = pneg %p475
        $region110: #{bert_layer_forward.1} parent=103 // pred_check_branch
          %2437 = sbr.rel (%p2435) target = $region112
        $region111: #{bert_layer_forward.1} parent=103 // pred_region
          %s2438 = sand.u32 %s460, 1
          %s2439 = scalar_lea.sflag [#allocation5], %s2438
          %s2440 = sand.u32 %s460, 1
          %s2441 = scalar_lea.vmem [#allocation4], %s2440
          %2442 = dma.done %s2439, 16
        $region112: #{bert_layer_forward.1} parent=103 // pred_fallthru
          _
      $region104: #{bert_layer_forward.1} parent=5 // pred_fallthru
        _
    $region6: #{bert_layer_forward.1} parent=1 // loop_footer
      %s36 = sadd.s32 1, %s32
    $region7: #{bert_layer_forward.1} parent=1 // loop_footer_branch
      %31 = sbr.rel target = $region3
    $region8: #{bert_layer_forward.1} parent=1 // loop_exit
      _
    %2443 = vsyncpa [#allocation3], 1
    %s2444 = scalar_lea.sflag [#allocation3], 1
    %2445 = vsyncpa %s2444, 1
    %2446 = vsyncpa [#allocation5], 1
    %s2447 = scalar_lea.sflag [#allocation5], 1
    %2448 = vsyncpa %s2447, 1

</llo_original>
